<compile_context>
chip_gen: v7x
topology: tpu7x:2x2x1
jax: 0.10.0
libtpu: 0.0.40
codegen_flags: <defaults>
</compile_context>

<pallas_src>
import jax
import jax.numpy as jnp
import numpy as np
from jax.experimental import pallas as pl
from jax.experimental.pallas import tpu as pltpu


# ------------------------------ Pallas kernel ------------------------------ #
def _mm(a, b):
    # Mosaic lowers f32 matmuls with near-f32 accuracy by default; K <= 128
    # here, so no explicit precision override is needed (verified vs HIGHEST
    # reference at 1e-4).
    return jnp.dot(a, b, preferred_element_type=jnp.float32)


def _make_cnn_kernel(n_blocks):
    """Refs: (x, [s_dn, s_cv, m_sc, b_sc, m_cv, b_cv, m_dn, b_dn]*blocks, out).

    x      : (H, Kpad)        packed (w, c) activation of one sample
    s_dn   : (ks, Ho, H)      0/1 row selectors for the stride-2 'valid' convs
    s_cv   : (ks, H, H)       0/1 row shifters (zero-pad) for the 'same' conv
    m_*    : (ks, Kpad, Npad) per-kernel-row packed-(w,c)->(wo,co) operators
    b_*    : (1, Npad)        packed, lane-padded biases
    """
    def kernel(*refs):
        x_ref, o_ref = refs[0], refs[-1]
        w_refs = refs[1:-1]
        x = x_ref[...].astype(jnp.float32)
        for blk in range(n_blocks):
            (s_dn, s_cv, m_sc, b_sc, m_cv, b_cv, m_dn, b_dn) = \
                w_refs[8 * blk: 8 * blk + 8]
            ks = s_dn.shape[0]
            a = jnp.maximum(x, 0.0)                       # relu(x)
            sc = None
            cv = None
            for kh in range(ks):
                # shortcut: stride-2 'valid' conv on the raw block input
                sc_t = _mm(_mm(s_dn[kh], x), m_sc[kh])
                sc = sc_t if sc is None else sc + sc_t
                # 'same' conv on relu(x)
                cv_t = _mm(_mm(s_cv[kh], a), m_cv[kh])
                cv = cv_t if cv is None else cv + cv_t
            sc = sc + b_sc[...]
            cv = jnp.maximum(cv + b_cv[...], 0.0)         # relu(conv(...))
            dn = None
            for kh in range(ks):
                # downscale: stride-2 'valid' conv on relu(conv(...))
                dn_t = _mm(_mm(s_dn[kh], cv), m_dn[kh])
                dn = dn_t if dn is None else dn + dn_t
            x = dn + b_dn[...] + sc                       # + skip
        o_ref[...] = x.astype(o_ref.dtype)
    return kernel


# --------------------------- init-time operator build ----------------------- #
def _pad128(n):
    return ((n + 127) // 128) * 128


def make_cnn_params(key, ny, *, kernel_size=3, features_ups_factor=1.5,
                    downscale_factor=2):
    """Mirror of CNN_chained_downscales.__init__ (PyTorch-default conv init)."""
    assert kernel_size % 2 == 1, "odd kernel_size only"
    if len(ny) == 2:
        none_nchannels = True
        c_in, (h, w) = 1, ny
    else:
        none_nchannels = False
        c_in, h, w = ny

    ks, ds = kernel_size, downscale_factor
    pad_same = (ks - 1) // 2

    def conv_init(k, cout, cin, ksz):
        fan_in = cin * ksz * ksz
        bound = 1.0 / np.sqrt(fan_in)
        kw_, kb_ = jax.random.split(k)
        w_ = jax.random.uniform(kw_, (cout, cin, ksz, ksz), jnp.float32,
                                -bound, bound)
        b_ = jax.random.uniform(kb_, (cout,), jnp.float32, -bound, bound)
        return w_, b_

    def row_tap_matrix(wgt, kh, cin, w_in, stride, same):
        """Exact packed-(w,ci)->(wo,co) operator of kernel row `kh`."""
        cout = wgt.shape[0]
        kdim = cin * w_in
        basis = jnp.eye(kdim, dtype=jnp.float32).reshape(kdim, w_in, cin)
        basis = jnp.transpose(basis, (0, 2, 1))[:, :, None, :]  # (kdim,ci,1,w)
        tap = wgt[:, :, kh:kh + 1, :]                            # (co,ci,1,ks)
        pad_w = (pad_same, pad_same) if same else (0, 0)
        out = jax.lax.conv_general_dilated(
            basis, tap, window_strides=(1, stride),
            padding=((0, 0), pad_w),
            dimension_numbers=("NCHW", "OIHW", "NCHW"),
            precision=jax.lax.Precision.HIGHEST)                 # (kdim,co,1,wo)
        w_out = out.shape[-1]
        m = jnp.transpose(out[:, :, 0, :], (0, 2, 1)).reshape(kdim, w_out * cout)
        return m

    def pad_mat(m, rows, cols):
        return jnp.zeros((rows, cols), jnp.float32).at[:m.shape[0],
                                                       :m.shape[1]].set(m)

    blocks, operands = [], []
    c_now, h_now, w_now = c_in, h, w
    feat_base = float(c_in)
    flops_per_sample = 0
    while h_now >= 2 * ds + 1 and w_now >= 2 * ds + 1:
        feat_base *= features_ups_factor
        c_out = int(feat_base)
        key, k1, k2, k3 = jax.random.split(key, 4)
        w_sc, b_sc = conv_init(k1, c_out, c_now, ks)
        w_cv, b_cv = conv_init(k2, c_now, c_now, ks)
        w_dn, b_dn = conv_init(k3, c_out, c_now, ks)
        blocks.append(dict(w_sc=w_sc, b_sc=b_sc, w_cv=w_cv, b_cv=b_cv,
                           w_dn=w_dn, b_dn=b_dn))

        h_out = (h_now - ks) // ds + 1
        w_out = (w_now - ks) // ds + 1
        k_pad = _pad128(c_now * w_now)
        n_pad = _pad128(c_out * w_out)

        # 0/1 row selectors (stride-2 'valid') and row shifters ('same', zero pad)
        s_dn = np.zeros((ks, h_out, h_now), np.float32)
        for kh in range(ks):
            for ho in range(h_out):
                s_dn[kh, ho, ds * ho + kh] = 1.0
        s_cv = np.zeros((ks, h_now, h_now), np.float32)
        for kh in range(ks):
            for ho in range(h_now):
                hh = ho + kh - pad_same
                if 0 <= hh < h_now:
                    s_cv[kh, ho, hh] = 1.0

        m_sc = jnp.stack([pad_mat(row_tap_matrix(w_sc, kh, c_now, w_now, ds, False),
                                  k_pad, n_pad) for kh in range(ks)])
        m_cv = jnp.stack([pad_mat(row_tap_matrix(w_cv, kh, c_now, w_now, 1, True),
                                  k_pad, k_pad) for kh in range(ks)])
        m_dn = jnp.stack([pad_mat(row_tap_matrix(w_dn, kh, c_now, w_now, ds, False),
                                  k_pad, n_pad) for kh in range(ks)])
        bias_sc = pad_mat(jnp.tile(b_sc, w_out)[None, :], 1, n_pad)
        bias_cv = pad_mat(jnp.tile(b_cv, w_now)[None, :], 1, k_pad)
        bias_dn = pad_mat(jnp.tile(b_dn, w_out)[None, :], 1, n_pad)

        operands += [jnp.asarray(s_dn), jnp.asarray(s_cv),
                     m_sc, bias_sc, m_cv, bias_cv, m_dn, bias_dn]

        flops_per_sample += ks * 2 * (
            2 * h_out * h_now * k_pad + 2 * h_out * k_pad * n_pad +
            h_now * h_now * k_pad + h_now * k_pad * k_pad)

        c_now, h_now, w_now = c_out, h_out, w_out

    return dict(blocks=blocks, operands=operands, none_nchannels=none_nchannels,
                downscale_factor=ds, kernel_size=ks,
                features0=c_now, height0=h_now, width0=w_now,
                nout=c_now * h_now * w_now,
                k0_pad=_pad128(c_in * w),
                nout_pad=_pad128(c_now * w_now),
                n_blocks=len(blocks),
                flops_per_sample=int(flops_per_sample))


# ------------------------------ Python wrapper ------------------------------ #
def cnn_chained_downscales_forward(params, y):
    B = y.shape[0]
    if params["none_nchannels"]:
        y = y[:, None, :, :]
    if params["n_blocks"] == 0:                       # degenerate: no downblocks
        return y.reshape(B, -1).astype(jnp.float32)

    _, C, H, W = y.shape
    # pack to per-sample (H, W*C) rows, lane-pad to a multiple of 128
    x = jnp.transpose(y, (0, 2, 3, 1)).reshape(B, H, W * C).astype(jnp.float32)
    k0, k0p = W * C, params["k0_pad"]
    if k0p > k0:
        x = jnp.pad(x, ((0, 0), (0, 0), (0, k0p - k0)))

    ops = params["operands"]
    hf, wf, cf = params["height0"], params["width0"], params["features0"]
    nfp = params["nout_pad"]

    in_specs = [pl.BlockSpec((None, H, k0p), lambda i: (i, 0, 0))]
    for op in ops:   # whole (tiny) weight operators, fetched once (constant idx)
        in_specs.append(pl.BlockSpec(op.shape, lambda i, nd=op.ndim: (0,) * nd))
    out_specs = pl.BlockSpec((None, hf, nfp), lambda i: (i, 0, 0))

    flops = B * params["flops_per_sample"]
    bytes_accessed = 4 * (int(x.size) + sum(int(o.size) for o in ops)
                          + B * hf * nfp)

    out = pl.pallas_call(
        _make_cnn_kernel(params["n_blocks"]),
        out_shape=jax.ShapeDtypeStruct((B, hf, nfp), jnp.float32),
        grid=(B,),
        in_specs=in_specs,
        out_specs=out_specs,
        compiler_params=pltpu.CompilerParams(
            dimension_semantics=("parallel",),
            vmem_limit_bytes=16 * 1024 * 1024),
        cost_estimate=pl.CostEstimate(flops=flops, transcendentals=0,
                                      bytes_accessed=bytes_accessed),
    )(x, *ops)

    # un-pack lane-padded (h, w, c) rows back to PyTorch's flattened-NCHW order
    out = out[:, :, : wf * cf].reshape(B, hf, wf, cf)
    return jnp.transpose(out, (0, 3, 1, 2)).reshape(B, -1)


# ------------------------------ pure-JAX reference -------------------------- #
def _conv2d(x, w, b, stride, padding):
    out = jax.lax.conv_general_dilated(
        x, w, window_strides=(stride, stride), padding=padding,
        dimension_numbers=("NCHW", "OIHW", "NCHW"),
        precision=jax.lax.Precision.HIGHEST)
    return out + b[None, :, None, None]


def _reference_forward(params, y):
    B = y.shape[0]
    ds = params["downscale_factor"]
    if params["none_nchannels"]:
        y = y[:, None, :, :]
    x = y.astype(jnp.float32)
    for blk in params["blocks"]:
        shortcut = _conv2d(x, blk["w_sc"], blk["b_sc"], ds, "VALID")
        a = jax.nn.relu(x)
        a = jax.nn.relu(_conv2d(a, blk["w_cv"], blk["b_cv"], 1, "SAME"))
        x = _conv2d(a, blk["w_dn"], blk["b_dn"], ds, "VALID") + shortcut
    return x.reshape(B, -1)


if __name__ == "__main__":
    # batch=2, ny=(channels=4, height=16, width=16):
    # builds 2 down blocks (4,16,16) -> (6,7,7) -> (9,3,3), nout = 81.
    B, C, H, W = 2, 4, 16, 16
    key = jax.random.PRNGKey(0)
    kp, ky = jax.random.split(key)

    params = make_cnn_params(kp, (C, H, W))
    y = jax.random.normal(ky, (B, C, H, W), jnp.float32)

    out = jax.block_until_ready(cnn_chained_downscales_forward(params, y))

    ref = _reference_forward(params, y)
    assert out.shape == (B, params["nout"])
    np.testing.assert_allclose(np.asarray(out), np.asarray(ref),
                               rtol=1e-4, atol=1e-4)
    print("KERNEL_OK")
</pallas_src>

<mosaic_0001>
module attributes {stable_mosaic.version = 11 : i64} {
  func.func @kernel(%arg0: i32, %arg1: memref<1x16x128xf32, #tpu.memory_space<vmem>>, %arg2: memref<3x7x16xf32, #tpu.memory_space<vmem>>, %arg3: memref<3x16x16xf32, #tpu.memory_space<vmem>>, %arg4: memref<3x128x128xf32, #tpu.memory_space<vmem>>, %arg5: memref<1x128xf32, #tpu.memory_space<vmem>>, %arg6: memref<3x128x128xf32, #tpu.memory_space<vmem>>, %arg7: memref<1x128xf32, #tpu.memory_space<vmem>>, %arg8: memref<3x128x128xf32, #tpu.memory_space<vmem>>, %arg9: memref<1x128xf32, #tpu.memory_space<vmem>>, %arg10: memref<3x3x7xf32, #tpu.memory_space<vmem>>, %arg11: memref<3x7x7xf32, #tpu.memory_space<vmem>>, %arg12: memref<3x128x128xf32, #tpu.memory_space<vmem>>, %arg13: memref<1x128xf32, #tpu.memory_space<vmem>>, %arg14: memref<3x128x128xf32, #tpu.memory_space<vmem>>, %arg15: memref<1x128xf32, #tpu.memory_space<vmem>>, %arg16: memref<3x128x128xf32, #tpu.memory_space<vmem>>, %arg17: memref<1x128xf32, #tpu.memory_space<vmem>>, %arg18: memref<1x3x128xf32, #tpu.memory_space<vmem>>) attributes {dimension_semantics = [#tpu.dimension_semantics<parallel>], iteration_bounds = array<i64: 2>, scalar_prefetch = 0 : i64, scratch_operands = 0 : i64, tpu.core_type = #tpu.core_type<tc>, window_params = [{transform_indices = @transform_0, window_bounds = array<i64: 1, 16, 128>}, {pipeline_mode = #tpu.pipeline_mode<synchronous>, transform_indices = @transform_1, window_bounds = array<i64: 3, 7, 16>}, {pipeline_mode = #tpu.pipeline_mode<synchronous>, transform_indices = @transform_2, window_bounds = array<i64: 3, 16, 16>}, {pipeline_mode = #tpu.pipeline_mode<synchronous>, transform_indices = @transform_3, window_bounds = array<i64: 3, 128, 128>}, {pipeline_mode = #tpu.pipeline_mode<synchronous>, transform_indices = @transform_4, window_bounds = array<i64: 1, 128>}, {pipeline_mode = #tpu.pipeline_mode<synchronous>, transform_indices = @transform_5, window_bounds = array<i64: 3, 128, 128>}, {pipeline_mode = #tpu.pipeline_mode<synchronous>, transform_indices = @transform_6, window_bounds = array<i64: 1, 128>}, {pipeline_mode = #tpu.pipeline_mode<synchronous>, transform_indices = @transform_7, window_bounds = array<i64: 3, 128, 128>}, {pipeline_mode = #tpu.pipeline_mode<synchronous>, transform_indices = @transform_8, window_bounds = array<i64: 1, 128>}, {pipeline_mode = #tpu.pipeline_mode<synchronous>, transform_indices = @transform_9, window_bounds = array<i64: 3, 3, 7>}, {pipeline_mode = #tpu.pipeline_mode<synchronous>, transform_indices = @transform_10, window_bounds = array<i64: 3, 7, 7>}, {pipeline_mode = #tpu.pipeline_mode<synchronous>, transform_indices = @transform_11, window_bounds = array<i64: 3, 128, 128>}, {pipeline_mode = #tpu.pipeline_mode<synchronous>, transform_indices = @transform_12, window_bounds = array<i64: 1, 128>}, {pipeline_mode = #tpu.pipeline_mode<synchronous>, transform_indices = @transform_13, window_bounds = array<i64: 3, 128, 128>}, {pipeline_mode = #tpu.pipeline_mode<synchronous>, transform_indices = @transform_14, window_bounds = array<i64: 1, 128>}, {pipeline_mode = #tpu.pipeline_mode<synchronous>, transform_indices = @transform_15, window_bounds = array<i64: 3, 128, 128>}, {pipeline_mode = #tpu.pipeline_mode<synchronous>, transform_indices = @transform_16, window_bounds = array<i64: 1, 128>}, {transform_indices = @transform_17, window_bounds = array<i64: 1, 3, 128>}]} {
    %c0 = arith.constant 0 : index
    %c0_0 = arith.constant 0 : index
    %c0_1 = arith.constant 0 : index
    %0 = vector.load %arg1[%c0, %c0_0, %c0_1] : memref<1x16x128xf32, #tpu.memory_space<vmem>>, vector<1x16x128xf32>
    %1 = vector.shape_cast %0 : vector<1x16x128xf32> to vector<16x128xf32>
    %cst = arith.constant 0.000000e+00 : f32
    %2 = vector.broadcast %cst : f32 to vector<16x128xf32>
    %3 = arith.maximumf %1, %2 : vector<16x128xf32>
    %c0_2 = arith.constant 0 : index
    %c0_3 = arith.constant 0 : index
    %c0_4 = arith.constant 0 : index
    %4 = vector.load %arg2[%c0_2, %c0_3, %c0_4] : memref<3x7x16xf32, #tpu.memory_space<vmem>>, vector<1x7x16xf32>
    %5 = vector.shape_cast %4 : vector<1x7x16xf32> to vector<7x16xf32>
    %cst_5 = arith.constant dense<0.000000e+00> : vector<7x128xf32>
    %6 = tpu.matmul %5, %1, %cst_5 {dimension_numbers = #tpu.dot_dimension_numbers<[1], [0], [0], [1], [0, 0, 1, 1], [], []>} : vector<7x16xf32>, vector<16x128xf32>, vector<7x128xf32> -> vector<7x128xf32>
    %c0_6 = arith.constant 0 : index
    %c0_7 = arith.constant 0 : index
    %c0_8 = arith.constant 0 : index
    %7 = vector.load %arg4[%c0_6, %c0_7, %c0_8] : memref<3x128x128xf32, #tpu.memory_space<vmem>>, vector<1x128x128xf32>
    %8 = vector.shape_cast %7 : vector<1x128x128xf32> to vector<128x128xf32>
    %cst_9 = arith.constant dense<0.000000e+00> : vector<7x128xf32>
    %9 = tpu.matmul %6, %8, %cst_9 {dimension_numbers = #tpu.dot_dimension_numbers<[1], [0], [0], [1], [0, 0, 1, 1], [], []>} : vector<7x128xf32>, vector<128x128xf32>, vector<7x128xf32> -> vector<7x128xf32>
    %c0_10 = arith.constant 0 : index
    %c0_11 = arith.constant 0 : index
    %c0_12 = arith.constant 0 : index
    %10 = vector.load %arg3[%c0_10, %c0_11, %c0_12] : memref<3x16x16xf32, #tpu.memory_space<vmem>>, vector<1x16x16xf32>
    %11 = vector.shape_cast %10 : vector<1x16x16xf32> to vector<16x16xf32>
    %cst_13 = arith.constant dense<0.000000e+00> : vector<16x128xf32>
    %12 = tpu.matmul %11, %3, %cst_13 {dimension_numbers = #tpu.dot_dimension_numbers<[1], [0], [0], [1], [0, 0, 1, 1], [], []>} : vector<16x16xf32>, vector<16x128xf32>, vector<16x128xf32> -> vector<16x128xf32>
    %c0_14 = arith.constant 0 : index
    %c0_15 = arith.constant 0 : index
    %c0_16 = arith.constant 0 : index
    %13 = vector.load %arg6[%c0_14, %c0_15, %c0_16] : memref<3x128x128xf32, #tpu.memory_space<vmem>>, vector<1x128x128xf32>
    %14 = vector.shape_cast %13 : vector<1x128x128xf32> to vector<128x128xf32>
    %cst_17 = arith.constant dense<0.000000e+00> : vector<16x128xf32>
    %15 = tpu.matmul %12, %14, %cst_17 {dimension_numbers = #tpu.dot_dimension_numbers<[1], [0], [0], [1], [0, 0, 1, 1], [], []>} : vector<16x128xf32>, vector<128x128xf32>, vector<16x128xf32> -> vector<16x128xf32>
    %c1 = arith.constant 1 : index
    %c0_18 = arith.constant 0 : index
    %c0_19 = arith.constant 0 : index
    %16 = vector.load %arg2[%c1, %c0_18, %c0_19] : memref<3x7x16xf32, #tpu.memory_space<vmem>>, vector<1x7x16xf32>
    %17 = vector.shape_cast %16 : vector<1x7x16xf32> to vector<7x16xf32>
    %cst_20 = arith.constant dense<0.000000e+00> : vector<7x128xf32>
    %18 = tpu.matmul %17, %1, %cst_20 {dimension_numbers = #tpu.dot_dimension_numbers<[1], [0], [0], [1], [0, 0, 1, 1], [], []>} : vector<7x16xf32>, vector<16x128xf32>, vector<7x128xf32> -> vector<7x128xf32>
    %c1_21 = arith.constant 1 : index
    %c0_22 = arith.constant 0 : index
    %c0_23 = arith.constant 0 : index
    %19 = vector.load %arg4[%c1_21, %c0_22, %c0_23] : memref<3x128x128xf32, #tpu.memory_space<vmem>>, vector<1x128x128xf32>
    %20 = vector.shape_cast %19 : vector<1x128x128xf32> to vector<128x128xf32>
    %cst_24 = arith.constant dense<0.000000e+00> : vector<7x128xf32>
    %21 = tpu.matmul %18, %20, %cst_24 {dimension_numbers = #tpu.dot_dimension_numbers<[1], [0], [0], [1], [0, 0, 1, 1], [], []>} : vector<7x128xf32>, vector<128x128xf32>, vector<7x128xf32> -> vector<7x128xf32>
    %22 = arith.addf %9, %21 : vector<7x128xf32>
    %c1_25 = arith.constant 1 : index
    %c0_26 = arith.constant 0 : index
    %c0_27 = arith.constant 0 : index
    %23 = vector.load %arg3[%c1_25, %c0_26, %c0_27] : memref<3x16x16xf32, #tpu.memory_space<vmem>>, vector<1x16x16xf32>
    %24 = vector.shape_cast %23 : vector<1x16x16xf32> to vector<16x16xf32>
    %cst_28 = arith.constant dense<0.000000e+00> : vector<16x128xf32>
    %25 = tpu.matmul %24, %3, %cst_28 {dimension_numbers = #tpu.dot_dimension_numbers<[1], [0], [0], [1], [0, 0, 1, 1], [], []>} : vector<16x16xf32>, vector<16x128xf32>, vector<16x128xf32> -> vector<16x128xf32>
    %c1_29 = arith.constant 1 : index
    %c0_30 = arith.constant 0 : index
    %c0_31 = arith.constant 0 : index
    %26 = vector.load %arg6[%c1_29, %c0_30, %c0_31] : memref<3x128x128xf32, #tpu.memory_space<vmem>>, vector<1x128x128xf32>
    %27 = vector.shape_cast %26 : vector<1x128x128xf32> to vector<128x128xf32>
    %cst_32 = arith.constant dense<0.000000e+00> : vector<16x128xf32>
    %28 = tpu.matmul %25, %27, %cst_32 {dimension_numbers = #tpu.dot_dimension_numbers<[1], [0], [0], [1], [0, 0, 1, 1], [], []>} : vector<16x128xf32>, vector<128x128xf32>, vector<16x128xf32> -> vector<16x128xf32>
    %29 = arith.addf %15, %28 : vector<16x128xf32>
    %c2 = arith.constant 2 : index
    %c0_33 = arith.constant 0 : index
    %c0_34 = arith.constant 0 : index
    %30 = vector.load %arg2[%c2, %c0_33, %c0_34] : memref<3x7x16xf32, #tpu.memory_space<vmem>>, vector<1x7x16xf32>
    %31 = vector.shape_cast %30 : vector<1x7x16xf32> to vector<7x16xf32>
    %cst_35 = arith.constant dense<0.000000e+00> : vector<7x128xf32>
    %32 = tpu.matmul %31, %1, %cst_35 {dimension_numbers = #tpu.dot_dimension_numbers<[1], [0], [0], [1], [0, 0, 1, 1], [], []>} : vector<7x16xf32>, vector<16x128xf32>, vector<7x128xf32> -> vector<7x128xf32>
    %c2_36 = arith.constant 2 : index
    %c0_37 = arith.constant 0 : index
    %c0_38 = arith.constant 0 : index
    %33 = vector.load %arg4[%c2_36, %c0_37, %c0_38] : memref<3x128x128xf32, #tpu.memory_space<vmem>>, vector<1x128x128xf32>
    %34 = vector.shape_cast %33 : vector<1x128x128xf32> to vector<128x128xf32>
    %cst_39 = arith.constant dense<0.000000e+00> : vector<7x128xf32>
    %35 = tpu.matmul %32, %34, %cst_39 {dimension_numbers = #tpu.dot_dimension_numbers<[1], [0], [0], [1], [0, 0, 1, 1], [], []>} : vector<7x128xf32>, vector<128x128xf32>, vector<7x128xf32> -> vector<7x128xf32>
    %36 = arith.addf %22, %35 : vector<7x128xf32>
    %c2_40 = arith.constant 2 : index
    %c0_41 = arith.constant 0 : index
    %c0_42 = arith.constant 0 : index
    %37 = vector.load %arg3[%c2_40, %c0_41, %c0_42] : memref<3x16x16xf32, #tpu.memory_space<vmem>>, vector<1x16x16xf32>
    %38 = vector.shape_cast %37 : vector<1x16x16xf32> to vector<16x16xf32>
    %cst_43 = arith.constant dense<0.000000e+00> : vector<16x128xf32>
    %39 = tpu.matmul %38, %3, %cst_43 {dimension_numbers = #tpu.dot_dimension_numbers<[1], [0], [0], [1], [0, 0, 1, 1], [], []>} : vector<16x16xf32>, vector<16x128xf32>, vector<16x128xf32> -> vector<16x128xf32>
    %c2_44 = arith.constant 2 : index
    %c0_45 = arith.constant 0 : index
    %c0_46 = arith.constant 0 : index
    %40 = vector.load %arg6[%c2_44, %c0_45, %c0_46] : memref<3x128x128xf32, #tpu.memory_space<vmem>>, vector<1x128x128xf32>
    %41 = vector.shape_cast %40 : vector<1x128x128xf32> to vector<128x128xf32>
    %cst_47 = arith.constant dense<0.000000e+00> : vector<16x128xf32>
    %42 = tpu.matmul %39, %41, %cst_47 {dimension_numbers = #tpu.dot_dimension_numbers<[1], [0], [0], [1], [0, 0, 1, 1], [], []>} : vector<16x128xf32>, vector<128x128xf32>, vector<16x128xf32> -> vector<16x128xf32>
    %43 = arith.addf %29, %42 : vector<16x128xf32>
    %c0_48 = arith.constant 0 : index
    %c0_49 = arith.constant 0 : index
    %44 = vector.load %arg5[%c0_48, %c0_49] : memref<1x128xf32, #tpu.memory_space<vmem>>, vector<1x128xf32>
    %45 = vector.broadcast %44 : vector<1x128xf32> to vector<7x128xf32>
    %46 = arith.addf %36, %45 : vector<7x128xf32>
    %c0_50 = arith.constant 0 : index
    %c0_51 = arith.constant 0 : index
    %47 = vector.load %arg7[%c0_50, %c0_51] : memref<1x128xf32, #tpu.memory_space<vmem>>, vector<1x128xf32>
    %48 = vector.broadcast %47 : vector<1x128xf32> to vector<16x128xf32>
    %49 = arith.addf %43, %48 : vector<16x128xf32>
    %cst_52 = arith.constant 0.000000e+00 : f32
    %50 = vector.broadcast %cst_52 : f32 to vector<16x128xf32>
    %51 = arith.maximumf %49, %50 : vector<16x128xf32>
    %c0_53 = arith.constant 0 : index
    %c0_54 = arith.constant 0 : index
    %c0_55 = arith.constant 0 : index
    %52 = vector.load %arg2[%c0_53, %c0_54, %c0_55] : memref<3x7x16xf32, #tpu.memory_space<vmem>>, vector<1x7x16xf32>
    %53 = vector.shape_cast %52 : vector<1x7x16xf32> to vector<7x16xf32>
    %cst_56 = arith.constant dense<0.000000e+00> : vector<7x128xf32>
    %54 = tpu.matmul %53, %51, %cst_56 {dimension_numbers = #tpu.dot_dimension_numbers<[1], [0], [0], [1], [0, 0, 1, 1], [], []>} : vector<7x16xf32>, vector<16x128xf32>, vector<7x128xf32> -> vector<7x128xf32>
    %c0_57 = arith.constant 0 : index
    %c0_58 = arith.constant 0 : index
    %c0_59 = arith.constant 0 : index
    %55 = vector.load %arg8[%c0_57, %c0_58, %c0_59] : memref<3x128x128xf32, #tpu.memory_space<vmem>>, vector<1x128x128xf32>
    %56 = vector.shape_cast %55 : vector<1x128x128xf32> to vector<128x128xf32>
    %cst_60 = arith.constant dense<0.000000e+00> : vector<7x128xf32>
    %57 = tpu.matmul %54, %56, %cst_60 {dimension_numbers = #tpu.dot_dimension_numbers<[1], [0], [0], [1], [0, 0, 1, 1], [], []>} : vector<7x128xf32>, vector<128x128xf32>, vector<7x128xf32> -> vector<7x128xf32>
    %c1_61 = arith.constant 1 : index
    %c0_62 = arith.constant 0 : index
    %c0_63 = arith.constant 0 : index
    %58 = vector.load %arg2[%c1_61, %c0_62, %c0_63] : memref<3x7x16xf32, #tpu.memory_space<vmem>>, vector<1x7x16xf32>
    %59 = vector.shape_cast %58 : vector<1x7x16xf32> to vector<7x16xf32>
    %cst_64 = arith.constant dense<0.000000e+00> : vector<7x128xf32>
    %60 = tpu.matmul %59, %51, %cst_64 {dimension_numbers = #tpu.dot_dimension_numbers<[1], [0], [0], [1], [0, 0, 1, 1], [], []>} : vector<7x16xf32>, vector<16x128xf32>, vector<7x128xf32> -> vector<7x128xf32>
    %c1_65 = arith.constant 1 : index
    %c0_66 = arith.constant 0 : index
    %c0_67 = arith.constant 0 : index
    %61 = vector.load %arg8[%c1_65, %c0_66, %c0_67] : memref<3x128x128xf32, #tpu.memory_space<vmem>>, vector<1x128x128xf32>
    %62 = vector.shape_cast %61 : vector<1x128x128xf32> to vector<128x128xf32>
    %cst_68 = arith.constant dense<0.000000e+00> : vector<7x128xf32>
    %63 = tpu.matmul %60, %62, %cst_68 {dimension_numbers = #tpu.dot_dimension_numbers<[1], [0], [0], [1], [0, 0, 1, 1], [], []>} : vector<7x128xf32>, vector<128x128xf32>, vector<7x128xf32> -> vector<7x128xf32>
    %64 = arith.addf %57, %63 : vector<7x128xf32>
    %c2_69 = arith.constant 2 : index
    %c0_70 = arith.constant 0 : index
    %c0_71 = arith.constant 0 : index
    %65 = vector.load %arg2[%c2_69, %c0_70, %c0_71] : memref<3x7x16xf32, #tpu.memory_space<vmem>>, vector<1x7x16xf32>
    %66 = vector.shape_cast %65 : vector<1x7x16xf32> to vector<7x16xf32>
    %cst_72 = arith.constant dense<0.000000e+00> : vector<7x128xf32>
    %67 = tpu.matmul %66, %51, %cst_72 {dimension_numbers = #tpu.dot_dimension_numbers<[1], [0], [0], [1], [0, 0, 1, 1], [], []>} : vector<7x16xf32>, vector<16x128xf32>, vector<7x128xf32> -> vector<7x128xf32>
    %c2_73 = arith.constant 2 : index
    %c0_74 = arith.constant 0 : index
    %c0_75 = arith.constant 0 : index
    %68 = vector.load %arg8[%c2_73, %c0_74, %c0_75] : memref<3x128x128xf32, #tpu.memory_space<vmem>>, vector<1x128x128xf32>
    %69 = vector.shape_cast %68 : vector<1x128x128xf32> to vector<128x128xf32>
    %cst_76 = arith.constant dense<0.000000e+00> : vector<7x128xf32>
    %70 = tpu.matmul %67, %69, %cst_76 {dimension_numbers = #tpu.dot_dimension_numbers<[1], [0], [0], [1], [0, 0, 1, 1], [], []>} : vector<7x128xf32>, vector<128x128xf32>, vector<7x128xf32> -> vector<7x128xf32>
    %71 = arith.addf %64, %70 : vector<7x128xf32>
    %c0_77 = arith.constant 0 : index
    %c0_78 = arith.constant 0 : index
    %72 = vector.load %arg9[%c0_77, %c0_78] : memref<1x128xf32, #tpu.memory_space<vmem>>, vector<1x128xf32>
    %73 = vector.broadcast %72 : vector<1x128xf32> to vector<7x128xf32>
    %74 = arith.addf %71, %73 : vector<7x128xf32>
    %75 = arith.addf %74, %46 : vector<7x128xf32>
    %cst_79 = arith.constant 0.000000e+00 : f32
    %76 = vector.broadcast %cst_79 : f32 to vector<7x128xf32>
    %77 = arith.maximumf %75, %76 : vector<7x128xf32>
    %c0_80 = arith.constant 0 : index
    %c0_81 = arith.constant 0 : index
    %c0_82 = arith.constant 0 : index
    %78 = vector.load %arg10[%c0_80, %c0_81, %c0_82] : memref<3x3x7xf32, #tpu.memory_space<vmem>>, vector<1x3x7xf32>
    %79 = vector.shape_cast %78 : vector<1x3x7xf32> to vector<3x7xf32>
    %cst_83 = arith.constant dense<0.000000e+00> : vector<3x128xf32>
    %80 = tpu.matmul %79, %75, %cst_83 {dimension_numbers = #tpu.dot_dimension_numbers<[1], [0], [0], [1], [0, 0, 1, 1], [], []>} : vector<3x7xf32>, vector<7x128xf32>, vector<3x128xf32> -> vector<3x128xf32>
    %c0_84 = arith.constant 0 : index
    %c0_85 = arith.constant 0 : index
    %c0_86 = arith.constant 0 : index
    %81 = vector.load %arg12[%c0_84, %c0_85, %c0_86] : memref<3x128x128xf32, #tpu.memory_space<vmem>>, vector<1x128x128xf32>
    %82 = vector.shape_cast %81 : vector<1x128x128xf32> to vector<128x128xf32>
    %cst_87 = arith.constant dense<0.000000e+00> : vector<3x128xf32>
    %83 = tpu.matmul %80, %82, %cst_87 {dimension_numbers = #tpu.dot_dimension_numbers<[1], [0], [0], [1], [0, 0, 1, 1], [], []>} : vector<3x128xf32>, vector<128x128xf32>, vector<3x128xf32> -> vector<3x128xf32>
    %c0_88 = arith.constant 0 : index
    %c0_89 = arith.constant 0 : index
    %c0_90 = arith.constant 0 : index
    %84 = vector.load %arg11[%c0_88, %c0_89, %c0_90] : memref<3x7x7xf32, #tpu.memory_space<vmem>>, vector<1x7x7xf32>
    %85 = vector.shape_cast %84 : vector<1x7x7xf32> to vector<7x7xf32>
    %cst_91 = arith.constant dense<0.000000e+00> : vector<7x128xf32>
    %86 = tpu.matmul %85, %77, %cst_91 {dimension_numbers = #tpu.dot_dimension_numbers<[1], [0], [0], [1], [0, 0, 1, 1], [], []>} : vector<7x7xf32>, vector<7x128xf32>, vector<7x128xf32> -> vector<7x128xf32>
    %c0_92 = arith.constant 0 : index
    %c0_93 = arith.constant 0 : index
    %c0_94 = arith.constant 0 : index
    %87 = vector.load %arg14[%c0_92, %c0_93, %c0_94] : memref<3x128x128xf32, #tpu.memory_space<vmem>>, vector<1x128x128xf32>
    %88 = vector.shape_cast %87 : vector<1x128x128xf32> to vector<128x128xf32>
    %cst_95 = arith.constant dense<0.000000e+00> : vector<7x128xf32>
    %89 = tpu.matmul %86, %88, %cst_95 {dimension_numbers = #tpu.dot_dimension_numbers<[1], [0], [0], [1], [0, 0, 1, 1], [], []>} : vector<7x128xf32>, vector<128x128xf32>, vector<7x128xf32> -> vector<7x128xf32>
    %c1_96 = arith.constant 1 : index
    %c0_97 = arith.constant 0 : index
    %c0_98 = arith.constant 0 : index
    %90 = vector.load %arg10[%c1_96, %c0_97, %c0_98] : memref<3x3x7xf32, #tpu.memory_space<vmem>>, vector<1x3x7xf32>
    %91 = vector.shape_cast %90 : vector<1x3x7xf32> to vector<3x7xf32>
    %cst_99 = arith.constant dense<0.000000e+00> : vector<3x128xf32>
    %92 = tpu.matmul %91, %75, %cst_99 {dimension_numbers = #tpu.dot_dimension_numbers<[1], [0], [0], [1], [0, 0, 1, 1], [], []>} : vector<3x7xf32>, vector<7x128xf32>, vector<3x128xf32> -> vector<3x128xf32>
    %c1_100 = arith.constant 1 : index
    %c0_101 = arith.constant 0 : index
    %c0_102 = arith.constant 0 : index
    %93 = vector.load %arg12[%c1_100, %c0_101, %c0_102] : memref<3x128x128xf32, #tpu.memory_space<vmem>>, vector<1x128x128xf32>
    %94 = vector.shape_cast %93 : vector<1x128x128xf32> to vector<128x128xf32>
    %cst_103 = arith.constant dense<0.000000e+00> : vector<3x128xf32>
    %95 = tpu.matmul %92, %94, %cst_103 {dimension_numbers = #tpu.dot_dimension_numbers<[1], [0], [0], [1], [0, 0, 1, 1], [], []>} : vector<3x128xf32>, vector<128x128xf32>, vector<3x128xf32> -> vector<3x128xf32>
    %96 = arith.addf %83, %95 : vector<3x128xf32>
    %c1_104 = arith.constant 1 : index
    %c0_105 = arith.constant 0 : index
    %c0_106 = arith.constant 0 : index
    %97 = vector.load %arg11[%c1_104, %c0_105, %c0_106] : memref<3x7x7xf32, #tpu.memory_space<vmem>>, vector<1x7x7xf32>
    %98 = vector.shape_cast %97 : vector<1x7x7xf32> to vector<7x7xf32>
    %cst_107 = arith.constant dense<0.000000e+00> : vector<7x128xf32>
    %99 = tpu.matmul %98, %77, %cst_107 {dimension_numbers = #tpu.dot_dimension_numbers<[1], [0], [0], [1], [0, 0, 1, 1], [], []>} : vector<7x7xf32>, vector<7x128xf32>, vector<7x128xf32> -> vector<7x128xf32>
    %c1_108 = arith.constant 1 : index
    %c0_109 = arith.constant 0 : index
    %c0_110 = arith.constant 0 : index
    %100 = vector.load %arg14[%c1_108, %c0_109, %c0_110] : memref<3x128x128xf32, #tpu.memory_space<vmem>>, vector<1x128x128xf32>
    %101 = vector.shape_cast %100 : vector<1x128x128xf32> to vector<128x128xf32>
    %cst_111 = arith.constant dense<0.000000e+00> : vector<7x128xf32>
    %102 = tpu.matmul %99, %101, %cst_111 {dimension_numbers = #tpu.dot_dimension_numbers<[1], [0], [0], [1], [0, 0, 1, 1], [], []>} : vector<7x128xf32>, vector<128x128xf32>, vector<7x128xf32> -> vector<7x128xf32>
    %103 = arith.addf %89, %102 : vector<7x128xf32>
    %c2_112 = arith.constant 2 : index
    %c0_113 = arith.constant 0 : index
    %c0_114 = arith.constant 0 : index
    %104 = vector.load %arg10[%c2_112, %c0_113, %c0_114] : memref<3x3x7xf32, #tpu.memory_space<vmem>>, vector<1x3x7xf32>
    %105 = vector.shape_cast %104 : vector<1x3x7xf32> to vector<3x7xf32>
    %cst_115 = arith.constant dense<0.000000e+00> : vector<3x128xf32>
    %106 = tpu.matmul %105, %75, %cst_115 {dimension_numbers = #tpu.dot_dimension_numbers<[1], [0], [0], [1], [0, 0, 1, 1], [], []>} : vector<3x7xf32>, vector<7x128xf32>, vector<3x128xf32> -> vector<3x128xf32>
    %c2_116 = arith.constant 2 : index
    %c0_117 = arith.constant 0 : index
    %c0_118 = arith.constant 0 : index
    %107 = vector.load %arg12[%c2_116, %c0_117, %c0_118] : memref<3x128x128xf32, #tpu.memory_space<vmem>>, vector<1x128x128xf32>
    %108 = vector.shape_cast %107 : vector<1x128x128xf32> to vector<128x128xf32>
    %cst_119 = arith.constant dense<0.000000e+00> : vector<3x128xf32>
    %109 = tpu.matmul %106, %108, %cst_119 {dimension_numbers = #tpu.dot_dimension_numbers<[1], [0], [0], [1], [0, 0, 1, 1], [], []>} : vector<3x128xf32>, vector<128x128xf32>, vector<3x128xf32> -> vector<3x128xf32>
    %110 = arith.addf %96, %109 : vector<3x128xf32>
    %c2_120 = arith.constant 2 : index
    %c0_121 = arith.constant 0 : index
    %c0_122 = arith.constant 0 : index
    %111 = vector.load %arg11[%c2_120, %c0_121, %c0_122] : memref<3x7x7xf32, #tpu.memory_space<vmem>>, vector<1x7x7xf32>
    %112 = vector.shape_cast %111 : vector<1x7x7xf32> to vector<7x7xf32>
    %cst_123 = arith.constant dense<0.000000e+00> : vector<7x128xf32>
    %113 = tpu.matmul %112, %77, %cst_123 {dimension_numbers = #tpu.dot_dimension_numbers<[1], [0], [0], [1], [0, 0, 1, 1], [], []>} : vector<7x7xf32>, vector<7x128xf32>, vector<7x128xf32> -> vector<7x128xf32>
    %c2_124 = arith.constant 2 : index
    %c0_125 = arith.constant 0 : index
    %c0_126 = arith.constant 0 : index
    %114 = vector.load %arg14[%c2_124, %c0_125, %c0_126] : memref<3x128x128xf32, #tpu.memory_space<vmem>>, vector<1x128x128xf32>
    %115 = vector.shape_cast %114 : vector<1x128x128xf32> to vector<128x128xf32>
    %cst_127 = arith.constant dense<0.000000e+00> : vector<7x128xf32>
    %116 = tpu.matmul %113, %115, %cst_127 {dimension_numbers = #tpu.dot_dimension_numbers<[1], [0], [0], [1], [0, 0, 1, 1], [], []>} : vector<7x128xf32>, vector<128x128xf32>, vector<7x128xf32> -> vector<7x128xf32>
    %117 = arith.addf %103, %116 : vector<7x128xf32>
    %c0_128 = arith.constant 0 : index
    %c0_129 = arith.constant 0 : index
    %118 = vector.load %arg13[%c0_128, %c0_129] : memref<1x128xf32, #tpu.memory_space<vmem>>, vector<1x128xf32>
    %119 = vector.broadcast %118 : vector<1x128xf32> to vector<3x128xf32>
    %120 = arith.addf %110, %119 : vector<3x128xf32>
    %c0_130 = arith.constant 0 : index
    %c0_131 = arith.constant 0 : index
    %121 = vector.load %arg15[%c0_130, %c0_131] : memref<1x128xf32, #tpu.memory_space<vmem>>, vector<1x128xf32>
    %122 = vector.broadcast %121 : vector<1x128xf32> to vector<7x128xf32>
    %123 = arith.addf %117, %122 : vector<7x128xf32>
    %cst_132 = arith.constant 0.000000e+00 : f32
    %124 = vector.broadcast %cst_132 : f32 to vector<7x128xf32>
    %125 = arith.maximumf %123, %124 : vector<7x128xf32>
    %c0_133 = arith.constant 0 : index
    %c0_134 = arith.constant 0 : index
    %c0_135 = arith.constant 0 : index
    %126 = vector.load %arg10[%c0_133, %c0_134, %c0_135] : memref<3x3x7xf32, #tpu.memory_space<vmem>>, vector<1x3x7xf32>
    %127 = vector.shape_cast %126 : vector<1x3x7xf32> to vector<3x7xf32>
    %cst_136 = arith.constant dense<0.000000e+00> : vector<3x128xf32>
    %128 = tpu.matmul %127, %125, %cst_136 {dimension_numbers = #tpu.dot_dimension_numbers<[1], [0], [0], [1], [0, 0, 1, 1], [], []>} : vector<3x7xf32>, vector<7x128xf32>, vector<3x128xf32> -> vector<3x128xf32>
    %c0_137 = arith.constant 0 : index
    %c0_138 = arith.constant 0 : index
    %c0_139 = arith.constant 0 : index
    %129 = vector.load %arg16[%c0_137, %c0_138, %c0_139] : memref<3x128x128xf32, #tpu.memory_space<vmem>>, vector<1x128x128xf32>
    %130 = vector.shape_cast %129 : vector<1x128x128xf32> to vector<128x128xf32>
    %cst_140 = arith.constant dense<0.000000e+00> : vector<3x128xf32>
    %131 = tpu.matmul %128, %130, %cst_140 {dimension_numbers = #tpu.dot_dimension_numbers<[1], [0], [0], [1], [0, 0, 1, 1], [], []>} : vector<3x128xf32>, vector<128x128xf32>, vector<3x128xf32> -> vector<3x128xf32>
    %c1_141 = arith.constant 1 : index
    %c0_142 = arith.constant 0 : index
    %c0_143 = arith.constant 0 : index
    %132 = vector.load %arg10[%c1_141, %c0_142, %c0_143] : memref<3x3x7xf32, #tpu.memory_space<vmem>>, vector<1x3x7xf32>
    %133 = vector.shape_cast %132 : vector<1x3x7xf32> to vector<3x7xf32>
    %cst_144 = arith.constant dense<0.000000e+00> : vector<3x128xf32>
    %134 = tpu.matmul %133, %125, %cst_144 {dimension_numbers = #tpu.dot_dimension_numbers<[1], [0], [0], [1], [0, 0, 1, 1], [], []>} : vector<3x7xf32>, vector<7x128xf32>, vector<3x128xf32> -> vector<3x128xf32>
    %c1_145 = arith.constant 1 : index
    %c0_146 = arith.constant 0 : index
    %c0_147 = arith.constant 0 : index
    %135 = vector.load %arg16[%c1_145, %c0_146, %c0_147] : memref<3x128x128xf32, #tpu.memory_space<vmem>>, vector<1x128x128xf32>
    %136 = vector.shape_cast %135 : vector<1x128x128xf32> to vector<128x128xf32>
    %cst_148 = arith.constant dense<0.000000e+00> : vector<3x128xf32>
    %137 = tpu.matmul %134, %136, %cst_148 {dimension_numbers = #tpu.dot_dimension_numbers<[1], [0], [0], [1], [0, 0, 1, 1], [], []>} : vector<3x128xf32>, vector<128x128xf32>, vector<3x128xf32> -> vector<3x128xf32>
    %138 = arith.addf %131, %137 : vector<3x128xf32>
    %c2_149 = arith.constant 2 : index
    %c0_150 = arith.constant 0 : index
    %c0_151 = arith.constant 0 : index
    %139 = vector.load %arg10[%c2_149, %c0_150, %c0_151] : memref<3x3x7xf32, #tpu.memory_space<vmem>>, vector<1x3x7xf32>
    %140 = vector.shape_cast %139 : vector<1x3x7xf32> to vector<3x7xf32>
    %cst_152 = arith.constant dense<0.000000e+00> : vector<3x128xf32>
    %141 = tpu.matmul %140, %125, %cst_152 {dimension_numbers = #tpu.dot_dimension_numbers<[1], [0], [0], [1], [0, 0, 1, 1], [], []>} : vector<3x7xf32>, vector<7x128xf32>, vector<3x128xf32> -> vector<3x128xf32>
    %c2_153 = arith.constant 2 : index
    %c0_154 = arith.constant 0 : index
    %c0_155 = arith.constant 0 : index
    %142 = vector.load %arg16[%c2_153, %c0_154, %c0_155] : memref<3x128x128xf32, #tpu.memory_space<vmem>>, vector<1x128x128xf32>
    %143 = vector.shape_cast %142 : vector<1x128x128xf32> to vector<128x128xf32>
    %cst_156 = arith.constant dense<0.000000e+00> : vector<3x128xf32>
    %144 = tpu.matmul %141, %143, %cst_156 {dimension_numbers = #tpu.dot_dimension_numbers<[1], [0], [0], [1], [0, 0, 1, 1], [], []>} : vector<3x128xf32>, vector<128x128xf32>, vector<3x128xf32> -> vector<3x128xf32>
    %145 = arith.addf %138, %144 : vector<3x128xf32>
    %c0_157 = arith.constant 0 : index
    %c0_158 = arith.constant 0 : index
    %146 = vector.load %arg17[%c0_157, %c0_158] : memref<1x128xf32, #tpu.memory_space<vmem>>, vector<1x128xf32>
    %147 = vector.broadcast %146 : vector<1x128xf32> to vector<3x128xf32>
    %148 = arith.addf %145, %147 : vector<3x128xf32>
    %149 = arith.addf %148, %120 : vector<3x128xf32>
    %c0_159 = arith.constant 0 : index
    %c0_160 = arith.constant 0 : index
    %c0_161 = arith.constant 0 : index
    %150 = vector.load %arg18[%c0_159, %c0_160, %c0_161] : memref<1x3x128xf32, #tpu.memory_space<vmem>>, vector<1x3x128xf32>
    %151 = vector.shape_cast %150 : vector<1x3x128xf32> to vector<3x128xf32>
    %152 = vector.shape_cast %149 : vector<3x128xf32> to vector<1x3x128xf32>
    tpu.vector_store %arg18[%c0_159, %c0_160, %c0_161], %152 {strides = array<i32>} : memref<1x3x128xf32, #tpu.memory_space<vmem>>, vector<1x3x128xf32>,
    return
  }
  func.func @transform_0(%arg0: i32) -> (i32, i32, i32) {
    %c0_i32 = arith.constant 0 : i32
    %c0_i32_0 = arith.constant 0 : i32
    %c0_i32_1 = arith.constant 0 : i32
    return %arg0, %c0_i32, %c0_i32_0 : i32, i32, i32
  }
  func.func @transform_1(%arg0: i32) -> (i32, i32, i32) {
    %c0_i32 = arith.constant 0 : i32
    %c0_i32_0 = arith.constant 0 : i32
    %c0_i32_1 = arith.constant 0 : i32
    %c0_i32_2 = arith.constant 0 : i32
    return %c0_i32, %c0_i32_0, %c0_i32_1 : i32, i32, i32
  }
  func.func @transform_2(%arg0: i32) -> (i32, i32, i32) {
    %c0_i32 = arith.constant 0 : i32
    %c0_i32_0 = arith.constant 0 : i32
    %c0_i32_1 = arith.constant 0 : i32
    %c0_i32_2 = arith.constant 0 : i32
    return %c0_i32, %c0_i32_0, %c0_i32_1 : i32, i32, i32
  }
  func.func @transform_3(%arg0: i32) -> (i32, i32, i32) {
    %c0_i32 = arith.constant 0 : i32
    %c0_i32_0 = arith.constant 0 : i32
    %c0_i32_1 = arith.constant 0 : i32
    %c0_i32_2 = arith.constant 0 : i32
    return %c0_i32, %c0_i32_0, %c0_i32_1 : i32, i32, i32
  }
  func.func @transform_4(%arg0: i32) -> (i32, i32) {
    %c0_i32 = arith.constant 0 : i32
    %c0_i32_0 = arith.constant 0 : i32
    %c0_i32_1 = arith.constant 0 : i32
    return %c0_i32, %c0_i32_0 : i32, i32
  }
  func.func @transform_5(%arg0: i32) -> (i32, i32, i32) {
    %c0_i32 = arith.constant 0 : i32
    %c0_i32_0 = arith.constant 0 : i32
    %c0_i32_1 = arith.constant 0 : i32
    %c0_i32_2 = arith.constant 0 : i32
    return %c0_i32, %c0_i32_0, %c0_i32_1 : i32, i32, i32
  }
  func.func @transform_6(%arg0: i32) -> (i32, i32) {
    %c0_i32 = arith.constant 0 : i32
    %c0_i32_0 = arith.constant 0 : i32
    %c0_i32_1 = arith.constant 0 : i32
    return %c0_i32, %c0_i32_0 : i32, i32
  }
  func.func @transform_7(%arg0: i32) -> (i32, i32, i32) {
    %c0_i32 = arith.constant 0 : i32
    %c0_i32_0 = arith.constant 0 : i32
    %c0_i32_1 = arith.constant 0 : i32
    %c0_i32_2 = arith.constant 0 : i32
    return %c0_i32, %c0_i32_0, %c0_i32_1 : i32, i32, i32
  }
  func.func @transform_8(%arg0: i32) -> (i32, i32) {
    %c0_i32 = arith.constant 0 : i32
    %c0_i32_0 = arith.constant 0 : i32
    %c0_i32_1 = arith.constant 0 : i32
    return %c0_i32, %c0_i32_0 : i32, i32
  }
  func.func @transform_9(%arg0: i32) -> (i32, i32, i32) {
    %c0_i32 = arith.constant 0 : i32
    %c0_i32_0 = arith.constant 0 : i32
    %c0_i32_1 = arith.constant 0 : i32
    %c0_i32_2 = arith.constant 0 : i32
    return %c0_i32, %c0_i32_0, %c0_i32_1 : i32, i32, i32
  }
  func.func @transform_10(%arg0: i32) -> (i32, i32, i32) {
    %c0_i32 = arith.constant 0 : i32
    %c0_i32_0 = arith.constant 0 : i32
    %c0_i32_1 = arith.constant 0 : i32
    %c0_i32_2 = arith.constant 0 : i32
    return %c0_i32, %c0_i32_0, %c0_i32_1 : i32, i32, i32
  }
  func.func @transform_11(%arg0: i32) -> (i32, i32, i32) {
    %c0_i32 = arith.constant 0 : i32
    %c0_i32_0 = arith.constant 0 : i32
    %c0_i32_1 = arith.constant 0 : i32
    %c0_i32_2 = arith.constant 0 : i32
    return %c0_i32, %c0_i32_0, %c0_i32_1 : i32, i32, i32
  }
  func.func @transform_12(%arg0: i32) -> (i32, i32) {
    %c0_i32 = arith.constant 0 : i32
    %c0_i32_0 = arith.constant 0 : i32
    %c0_i32_1 = arith.constant 0 : i32
    return %c0_i32, %c0_i32_0 : i32, i32
  }
  func.func @transform_13(%arg0: i32) -> (i32, i32, i32) {
    %c0_i32 = arith.constant 0 : i32
    %c0_i32_0 = arith.constant 0 : i32
    %c0_i32_1 = arith.constant 0 : i32
    %c0_i32_2 = arith.constant 0 : i32
    return %c0_i32, %c0_i32_0, %c0_i32_1 : i32, i32, i32
  }
  func.func @transform_14(%arg0: i32) -> (i32, i32) {
    %c0_i32 = arith.constant 0 : i32
    %c0_i32_0 = arith.constant 0 : i32
    %c0_i32_1 = arith.constant 0 : i32
    return %c0_i32, %c0_i32_0 : i32, i32
  }
  func.func @transform_15(%arg0: i32) -> (i32, i32, i32) {
    %c0_i32 = arith.constant 0 : i32
    %c0_i32_0 = arith.constant 0 : i32
    %c0_i32_1 = arith.constant 0 : i32
    %c0_i32_2 = arith.constant 0 : i32
    return %c0_i32, %c0_i32_0, %c0_i32_1 : i32, i32, i32
  }
  func.func @transform_16(%arg0: i32) -> (i32, i32) {
    %c0_i32 = arith.constant 0 : i32
    %c0_i32_0 = arith.constant 0 : i32
    %c0_i32_1 = arith.constant 0 : i32
    return %c0_i32, %c0_i32_0 : i32, i32
  }
  func.func @transform_17(%arg0: i32) -> (i32, i32, i32) {
    %c0_i32 = arith.constant 0 : i32
    %c0_i32_0 = arith.constant 0 : i32
    %c0_i32_1 = arith.constant 0 : i32
    return %arg0, %c0_i32, %c0_i32_0 : i32, i32, i32
  }
}

</mosaic_0001>

<llo_original>
// kernel: tpu_custom_call.1
$region0: #{tpu_custom_call.1}
  #allocation0 [shape = 'u32[]', space=smem, size = 0x4, offset = 0x4, fixed_abs, tag = 'smem constant byte address 0x4 - core index']
  #allocation1 [shape = 'u32[144,128]{1,0:T(1,128)}', space=vmem, size = 0x12000, scoped, tag = 'internal scratch']
  %s0 = inlined_call_operand.hbm [shape: f32[2,16,128], index: 0, kind: input, shape index: {}]
  %s1 = inlined_call_operand.hbm [shape: f32[3,7,16], index: 1, kind: input, shape index: {}]
  %s2 = inlined_call_operand.hbm [shape: f32[3,16,16], index: 2, kind: input, shape index: {}]
  %s3 = inlined_call_operand.hbm [shape: f32[3,128,128], index: 3, kind: input, shape index: {}]
  %s4 = inlined_call_operand.vmem [shape: f32[1,128], index: 4, kind: input, shape index: {}]
  %s5 = inlined_call_operand.hbm [shape: f32[3,128,128], index: 5, kind: input, shape index: {}]
  %s6 = inlined_call_operand.hbm [shape: f32[1,128], index: 6, kind: input, shape index: {}]
  %s7 = inlined_call_operand.hbm [shape: f32[3,128,128], index: 7, kind: input, shape index: {}]
  %s8 = inlined_call_operand.hbm [shape: f32[1,128], index: 8, kind: input, shape index: {}]
  %s9 = inlined_call_operand.vmem [shape: f32[3,3,7], index: 9, kind: input, shape index: {}]
  %s10 = inlined_call_operand.vmem [shape: f32[3,7,7], index: 10, kind: input, shape index: {}]
  %s11 = inlined_call_operand.hbm [shape: f32[3,128,128], index: 11, kind: input, shape index: {}]
  %s12 = inlined_call_operand.vmem [shape: f32[1,128], index: 12, kind: input, shape index: {}]
  %s13 = inlined_call_operand.hbm [shape: f32[3,128,128], index: 13, kind: input, shape index: {}]
  %s14 = inlined_call_operand.vmem [shape: f32[1,128], index: 14, kind: input, shape index: {}]
  %s15 = inlined_call_operand.hbm [shape: f32[3,128,128], index: 15, kind: input, shape index: {}]
  %s16 = inlined_call_operand.vmem [shape: f32[1,128], index: 16, kind: input, shape index: {}]
  %s17 = inlined_call_operand.vmem [shape: f32[2,3,128], index: 17, kind: output, shape index: {}]
  %s18 = sld [smem:[#allocation0]]
  $region145: #{tpu_custom_call.1} parent=0
    _
  %s20 = ssub.s32 1, %s18
  %s21 = scalar_select 0, %s20, %s18
  $region1: #{tpu_custom_call.1} parent=0
    #allocation2 [shape = 'u8[16384]{0}', space=vmem, size = 0x4000, scoped, tag = 'input window, operand 0']
    #allocation3 [shape = 's32[2]{0}', space=sflag, size = 0x8, scoped, tag = 'scoped memory for tpu_custom_call.1']
    #allocation4 [shape = 'u8[12288]{0}', space=vmem, size = 0x3000, scoped, tag = 'input window, operand 1, single buffered']
    #allocation5 [shape = 's32[1]{0}', space=sflag, size = 0x4, scoped, tag = 'scoped memory for tpu_custom_call.1']
    #allocation6 [shape = 'u8[24576]{0}', space=vmem, size = 0x6000, scoped, tag = 'input window, operand 2, single buffered']
    #allocation7 [shape = 'u8[196608]{0}', space=vmem, size = 0x30000, scoped, tag = 'input window, operand 3, single buffered']
    #allocation8 [shape = 's32[1]{0}', space=sflag, size = 0x4, scoped, tag = 'scoped memory for tpu_custom_call.1']
    #allocation9 [shape = 'u8[196608]{0}', space=vmem, size = 0x30000, scoped, tag = 'input window, operand 5, single buffered']
    #allocation10 [shape = 'u8[512]{0}', space=vmem, size = 0x400, scoped, tag = 'input window, operand 6, single buffered']
    #allocation11 [shape = 's32[1]{0}', space=sflag, size = 0x4, scoped, tag = 'scoped memory for tpu_custom_call.1']
    #allocation12 [shape = 'u8[196608]{0}', space=vmem, size = 0x30000, scoped, tag = 'input window, operand 7, single buffered']
    #allocation13 [shape = 'u8[512]{0}', space=vmem, size = 0x400, scoped, tag = 'input window, operand 8, single buffered']
    #allocation14 [shape = 's32[1]{0}', space=sflag, size = 0x4, scoped, tag = 'scoped memory for tpu_custom_call.1']
    #allocation15 [shape = 'u8[196608]{0}', space=vmem, size = 0x30000, scoped, tag = 'input window, operand 11, single buffered']
    #allocation16 [shape = 'u8[196608]{0}', space=vmem, size = 0x30000, scoped, tag = 'input window, operand 13, single buffered']
    #allocation17 [shape = 's32[1]{0}', space=sflag, size = 0x4, scoped, tag = 'scoped memory for tpu_custom_call.1']
    #allocation18 [shape = 'u8[196608]{0}', space=vmem, size = 0x30000, scoped, tag = 'input window, operand 15, single buffered']
    %22 = vsyncpa [#allocation3], 0
    %s23 = scalar_lea.sflag [#allocation3], 1
    %24 = vsyncpa %s23, 0
    %25 = vsyncpa [#allocation5], 0
    %26 = vsyncpa [#allocation8], 0
    %27 = vsyncpa [#allocation11], 0
    %28 = vsyncpa [#allocation14], 0
    %29 = vsyncpa [#allocation17], 0
    loop: start=0, step=1, limit=4
    $region2: #{tpu_custom_call.1} parent=1 // loop_pre_header
      _
    $region3: #{tpu_custom_call.1} parent=1 // loop_header
      %s31 = sphi 0, %s35
      %p32 = scmp.ge.s32.totalorder %s31, 4
      %s41 = sphi 0, %s43
      %s44 = sphi 0, %s41
      %s45 = sphi 0, %s44
      %s61 = sphi 0, %s45
      %s65 = sphi 0, %s65
      %s67 = sphi 0, %s65
      %s68 = sphi 0, %s67
      %s82 = sphi 0, %s68
      %s86 = sphi 0, %s86
      %s88 = sphi 0, %s86
      %s89 = sphi 0, %s88
      %s103 = sphi 0, %s89
      %s107 = sphi 0, %s107
      %s109 = sphi 0, %s107
      %s110 = sphi 0, %s109
      %s124 = sphi 0, %s110
      %s128 = sphi 0, %s128
      %s130 = sphi 0, %s128
      %s131 = sphi 0, %s130
      %s145 = sphi 0, %s131
      %s149 = sphi 0, %s149
      %s151 = sphi 0, %s149
      %s152 = sphi 0, %s151
      %s166 = sphi 0, %s152
      %s170 = sphi 0, %s170
      %s172 = sphi 0, %s170
      %s173 = sphi 0, %s172
      %s187 = sphi 0, %s173
      %s191 = sphi 0, %s191
      %s193 = sphi 0, %s191
      %s194 = sphi 0, %s193
      %s208 = sphi 0, %s194
      %s212 = sphi 0, %s212
      %s214 = sphi 0, %s212
      %s215 = sphi 0, %s214
      %s229 = sphi 0, %s215
      %s233 = sphi 0, %s233
      %s235 = sphi 0, %s233
      %s236 = sphi 0, %s235
      %s250 = sphi 0, %s236
      %s254 = sphi 0, %s254
      %s256 = sphi 0, %s254
      %s257 = sphi 0, %s256
      %s271 = sphi 0, %s257
      %s275 = sphi 0, %s275
      %s277 = sphi 0, %s275
      %s278 = sphi 0, %s277
      %s292 = sphi 0, %s278
      %s296 = sphi 0, %s296
      %s298 = sphi 0, %s296
      %s299 = sphi 0, %s298
      %s313 = sphi 0, %s299
      %s317 = sphi 0, %s317
      %s319 = sphi 0, %s317
      %s320 = sphi 0, %s319
      %s334 = sphi 0, %s320
      %s338 = sphi 0, %s338
      %s340 = sphi 0, %s338
      %s341 = sphi 0, %s340
      %s355 = sphi 0, %s341
      %s359 = sphi 0, %s359
      %s361 = sphi 0, %s359
      %s362 = sphi 0, %s361
      %s376 = sphi 0, %s362
      %s380 = sphi 0, %s380
      %s382 = sphi 0, %s380
      %s383 = sphi 0, %s382
      %s397 = sphi 0, %s383
      %s403 = sphi 0, %s405
      %s406 = sphi 0, %s403
      %s407 = sphi 0, %s406
      %s423 = sphi 0, %s407
    $region4: #{tpu_custom_call.1} parent=1 // loop_header_branch
      %34 = sbr.rel (%p32) target = $region8
    $region5: #{tpu_custom_call.1} parent=1 // loop_body
      %s36 = ssub.s32 %s31, 1
      %s37 = ssub.s32 %s31, 2
      %s38 = sadd.s32 %s31, 1
      %s39 = ssub.s32 %s31, %s38
      %p40 = scmp.eq.s32.totalorder %s39, 0
      %s42 = sadd.s32 %s41, 1
      %s43 = scalar_select %p40, %s41, %s42
      %p46 = pneg %p40
      %p47 = scmp.eq.s32.totalorder %s31, 1
      %p48 = por %p46, %p47
      %p49 = scmp.ne.s32.totalorder %s41, %s44
      %p50 = scmp.eq.s32.totalorder %s31, 0
      %p51 = por %p49, %p50
      %p52 = scmp.ne.s32.totalorder %s41, %s44
      %p53 = scmp.eq.s32.totalorder %s36, 1
      %p54 = por %p52, %p53
      %p55 = scmp.ne.s32.totalorder %s44, %s45
      %p56 = scmp.eq.s32.totalorder %s36, 0
      %p57 = por %p55, %p56
      %p58 = scmp.ne.s32.totalorder %s44, %s45
      %p59 = scmp.eq.s32.totalorder %s37, 1
      %p60 = por %p58, %p59
      %p62 = scmp.ne.s32.totalorder %s45, %s61
      %p63 = scmp.eq.s32.totalorder %s37, 0
      %p64 = por %p62, %p63
      %s66 = sadd.s32 %s65, 1
      %p69 = scmp.eq.s32.totalorder %s31, 1
      %p70 = scmp.ne.s32.totalorder %s65, %s67
      %p71 = scmp.eq.s32.totalorder %s31, 0
      %p72 = por %p70, %p71
      %p73 = scmp.ne.s32.totalorder %s65, %s67
      %p74 = scmp.eq.s32.totalorder %s36, 1
      %p75 = por %p73, %p74
      %p76 = scmp.ne.s32.totalorder %s67, %s68
      %p77 = scmp.eq.s32.totalorder %s36, 0
      %p78 = por %p76, %p77
      %p79 = scmp.ne.s32.totalorder %s67, %s68
      %p80 = scmp.eq.s32.totalorder %s37, 1
      %p81 = por %p79, %p80
      %p83 = scmp.ne.s32.totalorder %s68, %s82
      %p84 = scmp.eq.s32.totalorder %s37, 0
      %p85 = por %p83, %p84
      %s87 = sadd.s32 %s86, 1
      %p90 = scmp.eq.s32.totalorder %s31, 1
      %p91 = scmp.ne.s32.totalorder %s86, %s88
      %p92 = scmp.eq.s32.totalorder %s31, 0
      %p93 = por %p91, %p92
      %p94 = scmp.ne.s32.totalorder %s86, %s88
      %p95 = scmp.eq.s32.totalorder %s36, 1
      %p96 = por %p94, %p95
      %p97 = scmp.ne.s32.totalorder %s88, %s89
      %p98 = scmp.eq.s32.totalorder %s36, 0
      %p99 = por %p97, %p98
      %p100 = scmp.ne.s32.totalorder %s88, %s89
      %p101 = scmp.eq.s32.totalorder %s37, 1
      %p102 = por %p100, %p101
      %p104 = scmp.ne.s32.totalorder %s89, %s103
      %p105 = scmp.eq.s32.totalorder %s37, 0
      %p106 = por %p104, %p105
      %s108 = sadd.s32 %s107, 1
      %p111 = scmp.eq.s32.totalorder %s31, 1
      %p112 = scmp.ne.s32.totalorder %s107, %s109
      %p113 = scmp.eq.s32.totalorder %s31, 0
      %p114 = por %p112, %p113
      %p115 = scmp.ne.s32.totalorder %s107, %s109
      %p116 = scmp.eq.s32.totalorder %s36, 1
      %p117 = por %p115, %p116
      %p118 = scmp.ne.s32.totalorder %s109, %s110
      %p119 = scmp.eq.s32.totalorder %s36, 0
      %p120 = por %p118, %p119
      %p121 = scmp.ne.s32.totalorder %s109, %s110
      %p122 = scmp.eq.s32.totalorder %s37, 1
      %p123 = por %p121, %p122
      %p125 = scmp.ne.s32.totalorder %s110, %s124
      %p126 = scmp.eq.s32.totalorder %s37, 0
      %p127 = por %p125, %p126
      %s129 = sadd.s32 %s128, 1
      %p132 = scmp.eq.s32.totalorder %s31, 1
      %p133 = scmp.ne.s32.totalorder %s128, %s130
      %p134 = scmp.eq.s32.totalorder %s31, 0
      %p135 = por %p133, %p134
      %p136 = scmp.ne.s32.totalorder %s128, %s130
      %p137 = scmp.eq.s32.totalorder %s36, 1
      %p138 = por %p136, %p137
      %p139 = scmp.ne.s32.totalorder %s130, %s131
      %p140 = scmp.eq.s32.totalorder %s36, 0
      %p141 = por %p139, %p140
      %p142 = scmp.ne.s32.totalorder %s130, %s131
      %p143 = scmp.eq.s32.totalorder %s37, 1
      %p144 = por %p142, %p143
      %p146 = scmp.ne.s32.totalorder %s131, %s145
      %p147 = scmp.eq.s32.totalorder %s37, 0
      %p148 = por %p146, %p147
      %s150 = sadd.s32 %s149, 1
      %p153 = scmp.eq.s32.totalorder %s31, 1
      %p154 = scmp.ne.s32.totalorder %s149, %s151
      %p155 = scmp.eq.s32.totalorder %s31, 0
      %p156 = por %p154, %p155
      %p157 = scmp.ne.s32.totalorder %s149, %s151
      %p158 = scmp.eq.s32.totalorder %s36, 1
      %p159 = por %p157, %p158
      %p160 = scmp.ne.s32.totalorder %s151, %s152
      %p161 = scmp.eq.s32.totalorder %s36, 0
      %p162 = por %p160, %p161
      %p163 = scmp.ne.s32.totalorder %s151, %s152
      %p164 = scmp.eq.s32.totalorder %s37, 1
      %p165 = por %p163, %p164
      %p167 = scmp.ne.s32.totalorder %s152, %s166
      %p168 = scmp.eq.s32.totalorder %s37, 0
      %p169 = por %p167, %p168
      %s171 = sadd.s32 %s170, 1
      %p174 = scmp.eq.s32.totalorder %s31, 1
      %p175 = scmp.ne.s32.totalorder %s170, %s172
      %p176 = scmp.eq.s32.totalorder %s31, 0
      %p177 = por %p175, %p176
      %p178 = scmp.ne.s32.totalorder %s170, %s172
      %p179 = scmp.eq.s32.totalorder %s36, 1
      %p180 = por %p178, %p179
      %p181 = scmp.ne.s32.totalorder %s172, %s173
      %p182 = scmp.eq.s32.totalorder %s36, 0
      %p183 = por %p181, %p182
      %p184 = scmp.ne.s32.totalorder %s172, %s173
      %p185 = scmp.eq.s32.totalorder %s37, 1
      %p186 = por %p184, %p185
      %p188 = scmp.ne.s32.totalorder %s173, %s187
      %p189 = scmp.eq.s32.totalorder %s37, 0
      %p190 = por %p188, %p189
      %s192 = sadd.s32 %s191, 1
      %p195 = scmp.eq.s32.totalorder %s31, 1
      %p196 = scmp.ne.s32.totalorder %s191, %s193
      %p197 = scmp.eq.s32.totalorder %s31, 0
      %p198 = por %p196, %p197
      %p199 = scmp.ne.s32.totalorder %s191, %s193
      %p200 = scmp.eq.s32.totalorder %s36, 1
      %p201 = por %p199, %p200
      %p202 = scmp.ne.s32.totalorder %s193, %s194
      %p203 = scmp.eq.s32.totalorder %s36, 0
      %p204 = por %p202, %p203
      %p205 = scmp.ne.s32.totalorder %s193, %s194
      %p206 = scmp.eq.s32.totalorder %s37, 1
      %p207 = por %p205, %p206
      %p209 = scmp.ne.s32.totalorder %s194, %s208
      %p210 = scmp.eq.s32.totalorder %s37, 0
      %p211 = por %p209, %p210
      %s213 = sadd.s32 %s212, 1
      %p216 = scmp.eq.s32.totalorder %s31, 1
      %p217 = scmp.ne.s32.totalorder %s212, %s214
      %p218 = scmp.eq.s32.totalorder %s31, 0
      %p219 = por %p217, %p218
      %p220 = scmp.ne.s32.totalorder %s212, %s214
      %p221 = scmp.eq.s32.totalorder %s36, 1
      %p222 = por %p220, %p221
      %p223 = scmp.ne.s32.totalorder %s214, %s215
      %p224 = scmp.eq.s32.totalorder %s36, 0
      %p225 = por %p223, %p224
      %p226 = scmp.ne.s32.totalorder %s214, %s215
      %p227 = scmp.eq.s32.totalorder %s37, 1
      %p228 = por %p226, %p227
      %p230 = scmp.ne.s32.totalorder %s215, %s229
      %p231 = scmp.eq.s32.totalorder %s37, 0
      %p232 = por %p230, %p231
      %s234 = sadd.s32 %s233, 1
      %p237 = scmp.eq.s32.totalorder %s31, 1
      %p238 = scmp.ne.s32.totalorder %s233, %s235
      %p239 = scmp.eq.s32.totalorder %s31, 0
      %p240 = por %p238, %p239
      %p241 = scmp.ne.s32.totalorder %s233, %s235
      %p242 = scmp.eq.s32.totalorder %s36, 1
      %p243 = por %p241, %p242
      %p244 = scmp.ne.s32.totalorder %s235, %s236
      %p245 = scmp.eq.s32.totalorder %s36, 0
      %p246 = por %p244, %p245
      %p247 = scmp.ne.s32.totalorder %s235, %s236
      %p248 = scmp.eq.s32.totalorder %s37, 1
      %p249 = por %p247, %p248
      %p251 = scmp.ne.s32.totalorder %s236, %s250
      %p252 = scmp.eq.s32.totalorder %s37, 0
      %p253 = por %p251, %p252
      %s255 = sadd.s32 %s254, 1
      %p258 = scmp.eq.s32.totalorder %s31, 1
      %p259 = scmp.ne.s32.totalorder %s254, %s256
      %p260 = scmp.eq.s32.totalorder %s31, 0
      %p261 = por %p259, %p260
      %p262 = scmp.ne.s32.totalorder %s254, %s256
      %p263 = scmp.eq.s32.totalorder %s36, 1
      %p264 = por %p262, %p263
      %p265 = scmp.ne.s32.totalorder %s256, %s257
      %p266 = scmp.eq.s32.totalorder %s36, 0
      %p267 = por %p265, %p266
      %p268 = scmp.ne.s32.totalorder %s256, %s257
      %p269 = scmp.eq.s32.totalorder %s37, 1
      %p270 = por %p268, %p269
      %p272 = scmp.ne.s32.totalorder %s257, %s271
      %p273 = scmp.eq.s32.totalorder %s37, 0
      %p274 = por %p272, %p273
      %s276 = sadd.s32 %s275, 1
      %p279 = scmp.eq.s32.totalorder %s31, 1
      %p280 = scmp.ne.s32.totalorder %s275, %s277
      %p281 = scmp.eq.s32.totalorder %s31, 0
      %p282 = por %p280, %p281
      %p283 = scmp.ne.s32.totalorder %s275, %s277
      %p284 = scmp.eq.s32.totalorder %s36, 1
      %p285 = por %p283, %p284
      %p286 = scmp.ne.s32.totalorder %s277, %s278
      %p287 = scmp.eq.s32.totalorder %s36, 0
      %p288 = por %p286, %p287
      %p289 = scmp.ne.s32.totalorder %s277, %s278
      %p290 = scmp.eq.s32.totalorder %s37, 1
      %p291 = por %p289, %p290
      %p293 = scmp.ne.s32.totalorder %s278, %s292
      %p294 = scmp.eq.s32.totalorder %s37, 0
      %p295 = por %p293, %p294
      %s297 = sadd.s32 %s296, 1
      %p300 = scmp.eq.s32.totalorder %s31, 1
      %p301 = scmp.ne.s32.totalorder %s296, %s298
      %p302 = scmp.eq.s32.totalorder %s31, 0
      %p303 = por %p301, %p302
      %p304 = scmp.ne.s32.totalorder %s296, %s298
      %p305 = scmp.eq.s32.totalorder %s36, 1
      %p306 = por %p304, %p305
      %p307 = scmp.ne.s32.totalorder %s298, %s299
      %p308 = scmp.eq.s32.totalorder %s36, 0
      %p309 = por %p307, %p308
      %p310 = scmp.ne.s32.totalorder %s298, %s299
      %p311 = scmp.eq.s32.totalorder %s37, 1
      %p312 = por %p310, %p311
      %p314 = scmp.ne.s32.totalorder %s299, %s313
      %p315 = scmp.eq.s32.totalorder %s37, 0
      %p316 = por %p314, %p315
      %s318 = sadd.s32 %s317, 1
      %p321 = scmp.eq.s32.totalorder %s31, 1
      %p322 = scmp.ne.s32.totalorder %s317, %s319
      %p323 = scmp.eq.s32.totalorder %s31, 0
      %p324 = por %p322, %p323
      %p325 = scmp.ne.s32.totalorder %s317, %s319
      %p326 = scmp.eq.s32.totalorder %s36, 1
      %p327 = por %p325, %p326
      %p328 = scmp.ne.s32.totalorder %s319, %s320
      %p329 = scmp.eq.s32.totalorder %s36, 0
      %p330 = por %p328, %p329
      %p331 = scmp.ne.s32.totalorder %s319, %s320
      %p332 = scmp.eq.s32.totalorder %s37, 1
      %p333 = por %p331, %p332
      %p335 = scmp.ne.s32.totalorder %s320, %s334
      %p336 = scmp.eq.s32.totalorder %s37, 0
      %p337 = por %p335, %p336
      %s339 = sadd.s32 %s338, 1
      %p342 = scmp.eq.s32.totalorder %s31, 1
      %p343 = scmp.ne.s32.totalorder %s338, %s340
      %p344 = scmp.eq.s32.totalorder %s31, 0
      %p345 = por %p343, %p344
      %p346 = scmp.ne.s32.totalorder %s338, %s340
      %p347 = scmp.eq.s32.totalorder %s36, 1
      %p348 = por %p346, %p347
      %p349 = scmp.ne.s32.totalorder %s340, %s341
      %p350 = scmp.eq.s32.totalorder %s36, 0
      %p351 = por %p349, %p350
      %p352 = scmp.ne.s32.totalorder %s340, %s341
      %p353 = scmp.eq.s32.totalorder %s37, 1
      %p354 = por %p352, %p353
      %p356 = scmp.ne.s32.totalorder %s341, %s355
      %p357 = scmp.eq.s32.totalorder %s37, 0
      %p358 = por %p356, %p357
      %s360 = sadd.s32 %s359, 1
      %p363 = scmp.eq.s32.totalorder %s31, 1
      %p364 = scmp.ne.s32.totalorder %s359, %s361
      %p365 = scmp.eq.s32.totalorder %s31, 0
      %p366 = por %p364, %p365
      %p367 = scmp.ne.s32.totalorder %s359, %s361
      %p368 = scmp.eq.s32.totalorder %s36, 1
      %p369 = por %p367, %p368
      %p370 = scmp.ne.s32.totalorder %s361, %s362
      %p371 = scmp.eq.s32.totalorder %s36, 0
      %p372 = por %p370, %p371
      %p373 = scmp.ne.s32.totalorder %s361, %s362
      %p374 = scmp.eq.s32.totalorder %s37, 1
      %p375 = por %p373, %p374
      %p377 = scmp.ne.s32.totalorder %s362, %s376
      %p378 = scmp.eq.s32.totalorder %s37, 0
      %p379 = por %p377, %p378
      %s381 = sadd.s32 %s380, 1
      %p384 = scmp.eq.s32.totalorder %s31, 1
      %p385 = scmp.ne.s32.totalorder %s380, %s382
      %p386 = scmp.eq.s32.totalorder %s31, 0
      %p387 = por %p385, %p386
      %p388 = scmp.ne.s32.totalorder %s380, %s382
      %p389 = scmp.eq.s32.totalorder %s36, 1
      %p390 = por %p388, %p389
      %p391 = scmp.ne.s32.totalorder %s382, %s383
      %p392 = scmp.eq.s32.totalorder %s36, 0
      %p393 = por %p391, %p392
      %p394 = scmp.ne.s32.totalorder %s382, %s383
      %p395 = scmp.eq.s32.totalorder %s37, 1
      %p396 = por %p394, %p395
      %p398 = scmp.ne.s32.totalorder %s383, %s397
      %p399 = scmp.eq.s32.totalorder %s37, 0
      %p400 = por %p398, %p399
      %s401 = ssub.s32 %s31, %s38
      %p402 = scmp.eq.s32.totalorder %s401, 0
      %s404 = sadd.s32 %s403, 1
      %s405 = scalar_select %p402, %s403, %s404
      %p408 = pneg %p402
      %p409 = scmp.eq.s32.totalorder %s31, 1
      %p410 = por %p408, %p409
      %p411 = scmp.ne.s32.totalorder %s403, %s406
      %p412 = scmp.eq.s32.totalorder %s31, 0
      %p413 = por %p411, %p412
      %p414 = scmp.ne.s32.totalorder %s403, %s406
      %p415 = scmp.eq.s32.totalorder %s36, 1
      %p416 = por %p414, %p415
      %p417 = scmp.ne.s32.totalorder %s406, %s407
      %p418 = scmp.eq.s32.totalorder %s36, 0
      %p419 = por %p417, %p418
      %p420 = scmp.ne.s32.totalorder %s406, %s407
      %p421 = scmp.eq.s32.totalorder %s37, 1
      %p422 = por %p420, %p421
      %p424 = scmp.ne.s32.totalorder %s407, %s423
      %p425 = scmp.eq.s32.totalorder %s37, 0
      %p426 = por %p424, %p425
      %p427 = scmp.le.s32.totalorder 1, %s31
      %p428 = scmp.lt.s32.totalorder %s31, 3
      %p429 = pnand %p427, %p428
      %p430 = pneg %p429
      // Predicated region
      $region9: #{tpu_custom_call.1} parent=5 // pred_check
        _
      $region10: #{tpu_custom_call.1} parent=5 // pred_check_branch
        %432 = sbr.rel (%p429) target = $region12
      $region11: #{tpu_custom_call.1} parent=5 // pred_region
        %s433 = ssub.s32 %s31, 1
        // Predicated region
        $region13: #{tpu_custom_call.1} parent=11 // pred_check
          %p434 = pneg %p78
        $region14: #{tpu_custom_call.1} parent=11 // pred_check_branch
          %436 = sbr.rel (%p434) target = $region16
        $region15: #{tpu_custom_call.1} parent=11 // pred_region
          %s438 = ssub.s32 384, 384
          %439 = vsyncadd [#allocation5], %s438
          %s440 = sshll.u32 [#allocation4], 4
          %s441 = int_to_ptr.vmem [resolvable:$true] %s440
          %446 = dma.hbm_to_vmem [thread:$0]  %s1, 384, %s441, [#allocation5], 128, 128, 8
        $region16: #{tpu_custom_call.1} parent=11 // pred_fallthru
          _
        // Predicated region
        $region17: #{tpu_custom_call.1} parent=11 // pred_check
          %p447 = pneg %p99
        $region18: #{tpu_custom_call.1} parent=11 // pred_check_branch
          %449 = sbr.rel (%p447) target = $region20
        $region19: #{tpu_custom_call.1} parent=11 // pred_region
          %s451 = ssub.s32 768, 768
          %452 = vsyncadd [#allocation5], %s451
          %s453 = sshll.u32 [#allocation6], 4
          %s454 = int_to_ptr.vmem [resolvable:$true] %s453
          %459 = dma.hbm_to_vmem [thread:$0]  %s2, 768, %s454, [#allocation5], 128, 128, 8
        $region20: #{tpu_custom_call.1} parent=11 // pred_fallthru
          _
        // Predicated region
        $region21: #{tpu_custom_call.1} parent=11 // pred_check
          %p460 = pneg %p120
        $region22: #{tpu_custom_call.1} parent=11 // pred_check_branch
          %462 = sbr.rel (%p460) target = $region24
        $region23: #{tpu_custom_call.1} parent=11 // pred_region
          %s464 = ssub.s32 6144, 6144
          %465 = vsyncadd [#allocation8], %s464
          %s466 = sshll.u32 [#allocation7], 4
          %s467 = int_to_ptr.vmem [resolvable:$true] %s466
          %472 = dma.hbm_to_vmem [thread:$0]  %s3, 6144, %s467, [#allocation8], 128, 128, 8
        $region24: #{tpu_custom_call.1} parent=11 // pred_fallthru
          _
        // Predicated region
        $region25: #{tpu_custom_call.1} parent=11 // pred_check
          %p473 = pneg %p141
        $region26: #{tpu_custom_call.1} parent=11 // pred_check_branch
          %475 = sbr.rel (%p473) target = $region28
        $region27: #{tpu_custom_call.1} parent=11 // pred_region
          _
        $region28: #{tpu_custom_call.1} parent=11 // pred_fallthru
          _
        // Predicated region
        $region29: #{tpu_custom_call.1} parent=11 // pred_check
          %p476 = pneg %p162
        $region30: #{tpu_custom_call.1} parent=11 // pred_check_branch
          %478 = sbr.rel (%p476) target = $region32
        $region31: #{tpu_custom_call.1} parent=11 // pred_region
          %s480 = ssub.s32 6144, 6144
          %481 = vsyncadd [#allocation8], %s480
          %s482 = sshll.u32 [#allocation9], 4
          %s483 = int_to_ptr.vmem [resolvable:$true] %s482
          %488 = dma.hbm_to_vmem [thread:$0]  %s5, 6144, %s483, [#allocation8], 128, 128, 8
        $region32: #{tpu_custom_call.1} parent=11 // pred_fallthru
          _
        // Predicated region
        $region33: #{tpu_custom_call.1} parent=11 // pred_check
          %p489 = pneg %p183
        $region34: #{tpu_custom_call.1} parent=11 // pred_check_branch
          %491 = sbr.rel (%p489) target = $region36
        $region35: #{tpu_custom_call.1} parent=11 // pred_region
          %s493 = ssub.s32 16, 16
          %494 = vsyncadd [#allocation11], %s493
          %s496 = sshll.u32 [#allocation10], 4
          %s497 = int_to_ptr.vmem [resolvable:$true] %s496
          %499 = dma.hbm_to_vmem [thread:$0]  %s6, 16, %s497, [#allocation11]
        $region36: #{tpu_custom_call.1} parent=11 // pred_fallthru
          _
        // Predicated region
        $region37: #{tpu_custom_call.1} parent=11 // pred_check
          %p500 = pneg %p204
        $region38: #{tpu_custom_call.1} parent=11 // pred_check_branch
          %502 = sbr.rel (%p500) target = $region40
        $region39: #{tpu_custom_call.1} parent=11 // pred_region
          %s504 = ssub.s32 6144, 6144
          %505 = vsyncadd [#allocation11], %s504
          %s506 = sshll.u32 [#allocation12], 4
          %s507 = int_to_ptr.vmem [resolvable:$true] %s506
          %512 = dma.hbm_to_vmem [thread:$0]  %s7, 6144, %s507, [#allocation11], 128, 128, 8
        $region40: #{tpu_custom_call.1} parent=11 // pred_fallthru
          _
        // Predicated region
        $region41: #{tpu_custom_call.1} parent=11 // pred_check
          %p513 = pneg %p225
        $region42: #{tpu_custom_call.1} parent=11 // pred_check_branch
          %515 = sbr.rel (%p513) target = $region44
        $region43: #{tpu_custom_call.1} parent=11 // pred_region
          %s517 = ssub.s32 16, 16
          %518 = vsyncadd [#allocation14], %s517
          %s520 = sshll.u32 [#allocation13], 4
          %s521 = int_to_ptr.vmem [resolvable:$true] %s520
          %523 = dma.hbm_to_vmem [thread:$0]  %s8, 16, %s521, [#allocation14]
        $region44: #{tpu_custom_call.1} parent=11 // pred_fallthru
          _
        // Predicated region
        $region45: #{tpu_custom_call.1} parent=11 // pred_check
          %p524 = pneg %p246
        $region46: #{tpu_custom_call.1} parent=11 // pred_check_branch
          %526 = sbr.rel (%p524) target = $region48
        $region47: #{tpu_custom_call.1} parent=11 // pred_region
          _
        $region48: #{tpu_custom_call.1} parent=11 // pred_fallthru
          _
        // Predicated region
        $region49: #{tpu_custom_call.1} parent=11 // pred_check
          %p527 = pneg %p267
        $region50: #{tpu_custom_call.1} parent=11 // pred_check_branch
          %529 = sbr.rel (%p527) target = $region52
        $region51: #{tpu_custom_call.1} parent=11 // pred_region
          _
        $region52: #{tpu_custom_call.1} parent=11 // pred_fallthru
          _
        // Predicated region
        $region53: #{tpu_custom_call.1} parent=11 // pred_check
          %p530 = pneg %p288
        $region54: #{tpu_custom_call.1} parent=11 // pred_check_branch
          %532 = sbr.rel (%p530) target = $region56
        $region55: #{tpu_custom_call.1} parent=11 // pred_region
          %s534 = ssub.s32 6144, 6144
          %535 = vsyncadd [#allocation14], %s534
          %s536 = sshll.u32 [#allocation15], 4
          %s537 = int_to_ptr.vmem [resolvable:$true] %s536
          %542 = dma.hbm_to_vmem [thread:$0]  %s11, 6144, %s537, [#allocation14], 128, 128, 8
        $region56: #{tpu_custom_call.1} parent=11 // pred_fallthru
          _
        // Predicated region
        $region57: #{tpu_custom_call.1} parent=11 // pred_check
          %p543 = pneg %p309
        $region58: #{tpu_custom_call.1} parent=11 // pred_check_branch
          %545 = sbr.rel (%p543) target = $region60
        $region59: #{tpu_custom_call.1} parent=11 // pred_region
          _
        $region60: #{tpu_custom_call.1} parent=11 // pred_fallthru
          _
        // Predicated region
        $region61: #{tpu_custom_call.1} parent=11 // pred_check
          %p546 = pneg %p330
        $region62: #{tpu_custom_call.1} parent=11 // pred_check_branch
          %548 = sbr.rel (%p546) target = $region64
        $region63: #{tpu_custom_call.1} parent=11 // pred_region
          %s550 = ssub.s32 6144, 6144
          %551 = vsyncadd [#allocation17], %s550
          %s552 = sshll.u32 [#allocation16], 4
          %s553 = int_to_ptr.vmem [resolvable:$true] %s552
          %558 = dma.hbm_to_vmem [thread:$0]  %s13, 6144, %s553, [#allocation17], 128, 128, 8
        $region64: #{tpu_custom_call.1} parent=11 // pred_fallthru
          _
        // Predicated region
        $region65: #{tpu_custom_call.1} parent=11 // pred_check
          %p559 = pneg %p351
        $region66: #{tpu_custom_call.1} parent=11 // pred_check_branch
          %561 = sbr.rel (%p559) target = $region68
        $region67: #{tpu_custom_call.1} parent=11 // pred_region
          _
        $region68: #{tpu_custom_call.1} parent=11 // pred_fallthru
          _
        // Predicated region
        $region69: #{tpu_custom_call.1} parent=11 // pred_check
          %p562 = pneg %p372
        $region70: #{tpu_custom_call.1} parent=11 // pred_check_branch
          %564 = sbr.rel (%p562) target = $region72
        $region71: #{tpu_custom_call.1} parent=11 // pred_region
          %s566 = ssub.s32 6144, 6144
          %567 = vsyncadd [#allocation17], %s566
          %s568 = sshll.u32 [#allocation18], 4
          %s569 = int_to_ptr.vmem [resolvable:$true] %s568
          %574 = dma.hbm_to_vmem [thread:$0]  %s15, 6144, %s569, [#allocation17], 128, 128, 8
        $region72: #{tpu_custom_call.1} parent=11 // pred_fallthru
          _
        // Predicated region
        $region73: #{tpu_custom_call.1} parent=11 // pred_check
          %p575 = pneg %p393
        $region74: #{tpu_custom_call.1} parent=11 // pred_check_branch
          %577 = sbr.rel (%p575) target = $region76
        $region75: #{tpu_custom_call.1} parent=11 // pred_region
          _
        $region76: #{tpu_custom_call.1} parent=11 // pred_fallthru
          _
      $region12: #{tpu_custom_call.1} parent=5 // pred_fallthru
        _
      %p578 = scmp.lt.s32.totalorder %s31, 2
      // Predicated region
      $region77: #{tpu_custom_call.1} parent=5 // pred_check
        %p579 = pneg %p578
      $region78: #{tpu_custom_call.1} parent=5 // pred_check_branch
        %581 = sbr.rel (%p579) target = $region80
      $region79: #{tpu_custom_call.1} parent=5 // pred_region
        // Predicated region
        $region81: #{tpu_custom_call.1} parent=79 // pred_check
          %p582 = pneg %p51
        $region82: #{tpu_custom_call.1} parent=79 // pred_check_branch
          %584 = sbr.rel (%p582) target = $region84
        $region83: #{tpu_custom_call.1} parent=79 // pred_region
          %s585 = sand.u32 %s41, 1
          %s586 = scalar_lea.sflag [#allocation3], %s585
          %s587 = sand.u32 %s41, 1
          %s588 = smul.addr %s587, 16
          %s589 = scalar_lea.vmem [#allocation2], %s588
          %s591 = ssub.s32 256, 256
          %592 = vsyncadd %s586, %s591
          %s593 = smul.addr %s31, 2
          %s594 = smul.addr %s593, 128
          %s595 = scalar_lea.hbm %s0, %s594
          %s596 = sshll.u32 %s589, 4
          %s597 = int_to_ptr.vmem [resolvable:$true] %s596
          %602 = dma.hbm_to_vmem [thread:$0]  %s595, 256, %s597, %s586, 128, 128, 8
        $region84: #{tpu_custom_call.1} parent=79 // pred_fallthru
          _
      $region80: #{tpu_custom_call.1} parent=5 // pred_fallthru
        _
      %p603 = scmp.le.s32.totalorder 1, %s31
      %p604 = scmp.lt.s32.totalorder %s31, 3
      %p605 = pnand %p603, %p604
      %p606 = pneg %p605
      // Predicated region
      $region85: #{tpu_custom_call.1} parent=5 // pred_check
        _
      $region86: #{tpu_custom_call.1} parent=5 // pred_check_branch
        %608 = sbr.rel (%p605) target = $region88
      $region87: #{tpu_custom_call.1} parent=5 // pred_region
        %s609 = ssub.s32 %s31, 1
        %s610 = sand.u32 %s44, 1
        %s611 = scalar_lea.sflag [#allocation3], %s610
        %s612 = sand.u32 %s44, 1
        %s613 = smul.addr %s612, 16
        %s614 = scalar_lea.vmem [#allocation2], %s613
        // Predicated region
        $region89: #{tpu_custom_call.1} parent=87 // pred_check
          %p615 = pneg %p57
        $region90: #{tpu_custom_call.1} parent=87 // pred_check_branch
          %617 = sbr.rel (%p615) target = $region92
        $region91: #{tpu_custom_call.1} parent=87 // pred_region
          %618 = dma.done %s611, 256
        $region92: #{tpu_custom_call.1} parent=87 // pred_fallthru
          _
        // Predicated region
        $region93: #{tpu_custom_call.1} parent=87 // pred_check
          %p619 = pneg %p78
        $region94: #{tpu_custom_call.1} parent=87 // pred_check_branch
          %621 = sbr.rel (%p619) target = $region96
        $region95: #{tpu_custom_call.1} parent=87 // pred_region
          %622 = dma.done [#allocation5], 384
        $region96: #{tpu_custom_call.1} parent=87 // pred_fallthru
          _
        // Predicated region
        $region97: #{tpu_custom_call.1} parent=87 // pred_check
          %p623 = pneg %p99
        $region98: #{tpu_custom_call.1} parent=87 // pred_check_branch
          %625 = sbr.rel (%p623) target = $region100
        $region99: #{tpu_custom_call.1} parent=87 // pred_region
          %626 = dma.done [#allocation5], 768
        $region100: #{tpu_custom_call.1} parent=87 // pred_fallthru
          _
        // Predicated region
        $region101: #{tpu_custom_call.1} parent=87 // pred_check
          %p627 = pneg %p120
        $region102: #{tpu_custom_call.1} parent=87 // pred_check_branch
          %629 = sbr.rel (%p627) target = $region104
        $region103: #{tpu_custom_call.1} parent=87 // pred_region
          %630 = dma.done [#allocation8], 6144
        $region104: #{tpu_custom_call.1} parent=87 // pred_fallthru
          _
        // Predicated region
        $region105: #{tpu_custom_call.1} parent=87 // pred_check
          %p631 = pneg %p162
        $region106: #{tpu_custom_call.1} parent=87 // pred_check_branch
          %633 = sbr.rel (%p631) target = $region108
        $region107: #{tpu_custom_call.1} parent=87 // pred_region
          %634 = dma.done [#allocation8], 6144
        $region108: #{tpu_custom_call.1} parent=87 // pred_fallthru
          _
        // Predicated region
        $region109: #{tpu_custom_call.1} parent=87 // pred_check
          %p635 = pneg %p183
        $region110: #{tpu_custom_call.1} parent=87 // pred_check_branch
          %637 = sbr.rel (%p635) target = $region112
        $region111: #{tpu_custom_call.1} parent=87 // pred_region
          %638 = dma.done [#allocation11], 16
        $region112: #{tpu_custom_call.1} parent=87 // pred_fallthru
          _
        // Predicated region
        $region113: #{tpu_custom_call.1} parent=87 // pred_check
          %p639 = pneg %p204
        $region114: #{tpu_custom_call.1} parent=87 // pred_check_branch
          %641 = sbr.rel (%p639) target = $region116
        $region115: #{tpu_custom_call.1} parent=87 // pred_region
          %642 = dma.done [#allocation11], 6144
        $region116: #{tpu_custom_call.1} parent=87 // pred_fallthru
          _
        // Predicated region
        $region117: #{tpu_custom_call.1} parent=87 // pred_check
          %p643 = pneg %p225
        $region118: #{tpu_custom_call.1} parent=87 // pred_check_branch
          %645 = sbr.rel (%p643) target = $region120
        $region119: #{tpu_custom_call.1} parent=87 // pred_region
          %646 = dma.done [#allocation14], 16
        $region120: #{tpu_custom_call.1} parent=87 // pred_fallthru
          _
        // Predicated region
        $region121: #{tpu_custom_call.1} parent=87 // pred_check
          %p647 = pneg %p288
        $region122: #{tpu_custom_call.1} parent=87 // pred_check_branch
          %649 = sbr.rel (%p647) target = $region124
        $region123: #{tpu_custom_call.1} parent=87 // pred_region
          %650 = dma.done [#allocation14], 6144
        $region124: #{tpu_custom_call.1} parent=87 // pred_fallthru
          _
        // Predicated region
        $region125: #{tpu_custom_call.1} parent=87 // pred_check
          %p651 = pneg %p330
        $region126: #{tpu_custom_call.1} parent=87 // pred_check_branch
          %653 = sbr.rel (%p651) target = $region128
        $region127: #{tpu_custom_call.1} parent=87 // pred_region
          %654 = dma.done [#allocation17], 6144
        $region128: #{tpu_custom_call.1} parent=87 // pred_fallthru
          _
        // Predicated region
        $region129: #{tpu_custom_call.1} parent=87 // pred_check
          %p655 = pneg %p372
        $region130: #{tpu_custom_call.1} parent=87 // pred_check_branch
          %657 = sbr.rel (%p655) target = $region132
        $region131: #{tpu_custom_call.1} parent=87 // pred_region
          %658 = dma.done [#allocation17], 6144
        $region132: #{tpu_custom_call.1} parent=87 // pred_fallthru
          _
        %s659 = sand.u32 %s44, 1
        %s660 = scalar_lea.sflag [#allocation3], %s659
        %s661 = sand.u32 %s44, 1
        %s662 = smul.addr %s661, 16
        %s663 = scalar_lea.vmem [#allocation2], %s662
        %p664 = pneg %p57
        %p665 = pneg %p54
        %p666 = pneg %p78
        %p667 = pneg %p75
        %p668 = pneg %p99
        %p669 = pneg %p96
        %p670 = pneg %p120
        %p671 = pneg %p117
        %p672 = pneg %p141
        %p673 = pneg %p138
        %p674 = pneg %p162
        %p675 = pneg %p159
        %p676 = pneg %p183
        %p677 = pneg %p180
        %p678 = pneg %p204
        %p679 = pneg %p201
        %p680 = pneg %p225
        %p681 = pneg %p222
        %p682 = pneg %p246
        %p683 = pneg %p243
        %p684 = pneg %p267
        %p685 = pneg %p264
        %p686 = pneg %p288
        %p687 = pneg %p285
        %p688 = pneg %p309
        %p689 = pneg %p306
        %p690 = pneg %p330
        %p691 = pneg %p327
        %p692 = pneg %p351
        %p693 = pneg %p348
        %p694 = pneg %p372
        %p695 = pneg %p369
        %p696 = pneg %p393
        %p697 = pneg %p390
        %p698 = pneg %p419
        %p699 = pneg %p416
        %p700 = scmp.lt.s32.totalorder %s36, 1
        %s701 = scalar_select %p700, %s36, 1
        %s702 = smul.addr %s701, 4
        %s703 = scalar_lea.vmem %s17, %s702
        %p704 = scmp.lt.s32.totalorder %s36, 1
        %s705 = scalar_select %p704, %s36, 1
        %s706 = smul.addr %s705, 4
        %s707 = scalar_lea.vmem %s17, %s706
        %v708 = vld [vmem:[%s614] sm:$0xff]
        %v709 = vld [vmem:[%s614 + $0x8] sm:$0xff]
        %v710 = vmax.f32 %v708, 0.0
        %v711 = vmax.f32 %v709, 0.0
        %v712 = vld [vmem:[#allocation4] sm:$0x7f]
        %vm713 = vcmask 130048
        %v715 = vsel %vm713, %v712, 0
        %717 = vmatprep.subr.mxu0 0.0
        %718 = vmatpush1.msra.mxu0 %v708
        %719 = vmatprep.subr.mxu0 0.0
        %720 = vmatpush1.msra.mxu0 %v709
        %721 = vmatprep.subr.mxu0 0.0
        %722 = vmatpush1.msra.mxu0 0.0
        %723 = vmatprep.subr.mxu0 0.0
        %724 = vmatpush1.msra.mxu0 0.0
        %725 = vmatprep.subr.mxu0 0.0
        %726 = vmatpush1.msra.mxu0 0.0
        %727 = vmatprep.subr.mxu0 0.0
        %728 = vmatpush1.msra.mxu0 0.0
        %729 = vmatprep.subr.mxu0 0.0
        %730 = vmatpush1.msra.mxu0 0.0
        %731 = vmatprep.subr.mxu0 0.0
        %732 = vmatpush1.msra.mxu0 0.0
        %733 = vmatprep.subr.mxu0 0.0
        %734 = vmatpush1.msra.mxu0 0.0
        %735 = vmatprep.subr.mxu0 0.0
        %736 = vmatpush1.msra.mxu0 0.0
        %737 = vmatprep.subr.mxu0 0.0
        %738 = vmatpush1.msra.mxu0 0.0
        %739 = vmatprep.subr.mxu0 0.0
        %740 = vmatpush1.msra.mxu0 0.0
        %741 = vmatprep.subr.mxu0 0.0
        %742 = vmatpush1.msra.mxu0 0.0
        %743 = vmatprep.subr.mxu0 0.0
        %744 = vmatpush1.msra.mxu0 0.0
        %745 = vmatprep.subr.mxu0 0.0
        %746 = vmatpush1.msra.mxu0 0.0
        %747 = vmatprep.subr.mxu0 0.0
        %748 = vmatpush1.msra.mxu0 0.0
        %749 = vmatprep.subr.mxu0 0.0
        %750 = vmatpush1.msra.mxu0 0.0
        %751 = vmatprep.subr.mxu0 0.0
        %752 = vmatpush1.msra.mxu0 0.0
        %753 = vmatprep.subr.mxu0 0.0
        %754 = vmatpush1.msra.mxu0 0.0
        %755 = vmatprep.subr.mxu0 0.0
        %756 = vmatpush1.msra.mxu0 0.0
        %757 = vmatprep.subr.mxu0 0.0
        %758 = vmatpush1.msra.mxu0 0.0
        %759 = vmatprep.subr.mxu0 0.0
        %760 = vmatpush1.msra.mxu0 0.0
        %761 = vmatprep.subr.mxu0 0.0
        %762 = vmatpush1.msra.mxu0 0.0
        %763 = vmatprep.subr.mxu0 0.0
        %764 = vmatpush1.msra.mxu0 0.0
        %765 = vmatprep.subr.mxu0 0.0
        %766 = vmatpush1.msra.mxu0 0.0
        %767 = vmatprep.subr.mxu0 0.0
        %768 = vmatpush1.msra.mxu0 0.0
        %769 = vmatprep.subr.mxu0 0.0
        %770 = vmatpush1.msra.mxu0 0.0
        %771 = vmatprep.subr.mxu0 0.0
        %772 = vmatpush1.msra.mxu0 0.0
        %773 = vmatprep.subr.mxu0 0.0
        %774 = vmatpush1.msra.mxu0 0.0
        %775 = vmatprep.subr.mxu0 0.0
        %776 = vmatpush1.msra.mxu0 0.0
        %777 = vmatprep.subr.mxu0 0.0
        %778 = vmatpush1.msra.mxu0 0.0
        %779 = vmatprep.subr.mxu0 0.0
        %780 = vmatpush1.msra.mxu0 0.0
        %781 = vmatprep.mubr.f32.mxu0 0.0
        %782 = vmatmul.mubr.f32.gmra.mrb[0].mxu0 %v715
        %v783 = vpop.f32.mrb[0].mxu0
        %v784 = vadd.f32 0.0, %v783
        %v785 = vpop.f32.mrb[0].mxu0
        %786 = vdwg.mxu0
        %v787 = vld [vmem:[#allocation7] sm:$0xff]
        %v788 = vld [vmem:[#allocation7 + $0x8] sm:$0xff]
        %v789 = vld [vmem:[#allocation7 + $0x10] sm:$0xff]
        %v790 = vld [vmem:[#allocation7 + $0x18] sm:$0xff]
        %v791 = vld [vmem:[#allocation7 + $0x20] sm:$0xff]
        %v792 = vld [vmem:[#allocation7 + $0x28] sm:$0xff]
        %v793 = vld [vmem:[#allocation7 + $0x30] sm:$0xff]
        %v794 = vld [vmem:[#allocation7 + $0x38] sm:$0xff]
        %v795 = vld [vmem:[#allocation7 + $0x40] sm:$0xff]
        %v796 = vld [vmem:[#allocation7 + $0x48] sm:$0xff]
        %v797 = vld [vmem:[#allocation7 + $0x50] sm:$0xff]
        %v798 = vld [vmem:[#allocation7 + $0x58] sm:$0xff]
        %v799 = vld [vmem:[#allocation7 + $0x60] sm:$0xff]
        %v800 = vld [vmem:[#allocation7 + $0x68] sm:$0xff]
        %v801 = vld [vmem:[#allocation7 + $0x70] sm:$0xff]
        %v802 = vld [vmem:[#allocation7 + $0x78] sm:$0xff]
        %v803 = vld [vmem:[#allocation6] sm:$0xff]
        %v804 = vld [vmem:[#allocation6 + $0x8] sm:$0xff]
        %v806 = vsel %vm713, %v803, 0
        %v809 = vsel %vm713, %v804, 0
        %811 = vmatprep.subr.mxu0 0.0
        %812 = vmatpush1.msra.mxu0 %v710
        %813 = vmatprep.subr.mxu0 0.0
        %814 = vmatpush1.msra.mxu0 %v711
        %815 = vmatprep.subr.mxu0 0.0
        %816 = vmatpush1.msra.mxu0 0.0
        %817 = vmatprep.subr.mxu0 0.0
        %818 = vmatpush1.msra.mxu0 0.0
        %819 = vmatprep.subr.mxu0 0.0
        %820 = vmatpush1.msra.mxu0 0.0
        %821 = vmatprep.subr.mxu0 0.0
        %822 = vmatpush1.msra.mxu0 0.0
        %823 = vmatprep.subr.mxu0 0.0
        %824 = vmatpush1.msra.mxu0 0.0
        %825 = vmatprep.subr.mxu0 0.0
        %826 = vmatpush1.msra.mxu0 0.0
        %827 = vmatprep.subr.mxu0 0.0
        %828 = vmatpush1.msra.mxu0 0.0
        %829 = vmatprep.subr.mxu0 0.0
        %830 = vmatpush1.msra.mxu0 0.0
        %831 = vmatprep.subr.mxu0 0.0
        %832 = vmatpush1.msra.mxu0 0.0
        %833 = vmatprep.subr.mxu0 0.0
        %834 = vmatpush1.msra.mxu0 0.0
        %835 = vmatprep.subr.mxu0 0.0
        %836 = vmatpush1.msra.mxu0 0.0
        %837 = vmatprep.subr.mxu0 0.0
        %838 = vmatpush1.msra.mxu0 0.0
        %839 = vmatprep.subr.mxu0 0.0
        %840 = vmatpush1.msra.mxu0 0.0
        %841 = vmatprep.subr.mxu0 0.0
        %842 = vmatpush1.msra.mxu0 0.0
        %843 = vmatprep.subr.mxu0 0.0
        %844 = vmatpush1.msra.mxu0 0.0
        %845 = vmatprep.subr.mxu0 0.0
        %846 = vmatpush1.msra.mxu0 0.0
        %847 = vmatprep.subr.mxu0 0.0
        %848 = vmatpush1.msra.mxu0 0.0
        %849 = vmatprep.subr.mxu0 0.0
        %850 = vmatpush1.msra.mxu0 0.0
        %851 = vmatprep.subr.mxu0 0.0
        %852 = vmatpush1.msra.mxu0 0.0
        %853 = vmatprep.subr.mxu0 0.0
        %854 = vmatpush1.msra.mxu0 0.0
        %855 = vmatprep.subr.mxu0 0.0
        %856 = vmatpush1.msra.mxu0 0.0
        %857 = vmatprep.subr.mxu0 0.0
        %858 = vmatpush1.msra.mxu0 0.0
        %859 = vmatprep.subr.mxu0 0.0
        %860 = vmatpush1.msra.mxu0 0.0
        %861 = vmatprep.subr.mxu0 0.0
        %862 = vmatpush1.msra.mxu0 0.0
        %863 = vmatprep.subr.mxu0 0.0
        %864 = vmatpush1.msra.mxu0 0.0
        %865 = vmatprep.subr.mxu0 0.0
        %866 = vmatpush1.msra.mxu0 0.0
        %867 = vmatprep.subr.mxu0 0.0
        %868 = vmatpush1.msra.mxu0 0.0
        %869 = vmatprep.subr.mxu0 0.0
        %870 = vmatpush1.msra.mxu0 0.0
        %871 = vmatprep.subr.mxu0 0.0
        %872 = vmatpush1.msra.mxu0 0.0
        %873 = vmatprep.subr.mxu0 0.0
        %874 = vmatpush1.msra.mxu0 0.0
        %875 = vmatprep.mubr.f32.mxu0 0.0
        %876 = vmatmul.mubr.f32.gmra.mrb[0].mxu0 %v806
        %v877 = vpop.f32.mrb[0].mxu0
        %v878 = vadd.f32 0.0, %v877
        %v879 = vpop.f32.mrb[0].mxu0
        %880 = vmatprep.mubr.f32.mxu0 0.0
        %881 = vmatmul.mubr.f32.gmra.mrb[0].mxu0 %v809
        %v882 = vpop.f32.mrb[0].mxu0
        %v883 = vadd.f32 0.0, %v882
        %v884 = vpop.f32.mrb[0].mxu0
        %885 = vdwg.mxu0
        %v886 = vld [vmem:[#allocation9] sm:$0xff]
        %v887 = vld [vmem:[#allocation9 + $0x8] sm:$0xff]
        %v888 = vld [vmem:[#allocation9 + $0x10] sm:$0xff]
        %v889 = vld [vmem:[#allocation9 + $0x18] sm:$0xff]
        %v890 = vld [vmem:[#allocation9 + $0x20] sm:$0xff]
        %v891 = vld [vmem:[#allocation9 + $0x28] sm:$0xff]
        %v892 = vld [vmem:[#allocation9 + $0x30] sm:$0xff]
        %v893 = vld [vmem:[#allocation9 + $0x38] sm:$0xff]
        %v894 = vld [vmem:[#allocation9 + $0x40] sm:$0xff]
        %v895 = vld [vmem:[#allocation9 + $0x48] sm:$0xff]
        %v896 = vld [vmem:[#allocation9 + $0x50] sm:$0xff]
        %v897 = vld [vmem:[#allocation9 + $0x58] sm:$0xff]
        %v898 = vld [vmem:[#allocation9 + $0x60] sm:$0xff]
        %v899 = vld [vmem:[#allocation9 + $0x68] sm:$0xff]
        %v900 = vld [vmem:[#allocation9 + $0x70] sm:$0xff]
        %v901 = vld [vmem:[#allocation9 + $0x78] sm:$0xff]
        %s902 = scalar_lea.vmem [#allocation4], 8
        %v903 = vld [vmem:[%s902] sm:$0x7f]
        %v905 = vsel %vm713, %v903, 0
        %907 = vmatprep.subr.mxu0 0.0
        %908 = vmatpush1.msra.mxu0 %v708
        %909 = vmatprep.subr.mxu0 0.0
        %910 = vmatpush1.msra.mxu0 %v709
        %911 = vmatprep.subr.mxu0 0.0
        %912 = vmatpush1.msra.mxu0 0.0
        %913 = vmatprep.subr.mxu0 0.0
        %914 = vmatpush1.msra.mxu0 0.0
        %915 = vmatprep.subr.mxu0 0.0
        %916 = vmatpush1.msra.mxu0 0.0
        %917 = vmatprep.subr.mxu0 0.0
        %918 = vmatpush1.msra.mxu0 0.0
        %919 = vmatprep.subr.mxu0 0.0
        %920 = vmatpush1.msra.mxu0 0.0
        %921 = vmatprep.subr.mxu0 0.0
        %922 = vmatpush1.msra.mxu0 0.0
        %923 = vmatprep.subr.mxu0 0.0
        %924 = vmatpush1.msra.mxu0 0.0
        %925 = vmatprep.subr.mxu0 0.0
        %926 = vmatpush1.msra.mxu0 0.0
        %927 = vmatprep.subr.mxu0 0.0
        %928 = vmatpush1.msra.mxu0 0.0
        %929 = vmatprep.subr.mxu0 0.0
        %930 = vmatpush1.msra.mxu0 0.0
        %931 = vmatprep.subr.mxu0 0.0
        %932 = vmatpush1.msra.mxu0 0.0
        %933 = vmatprep.subr.mxu0 0.0
        %934 = vmatpush1.msra.mxu0 0.0
        %935 = vmatprep.subr.mxu0 0.0
        %936 = vmatpush1.msra.mxu0 0.0
        %937 = vmatprep.subr.mxu0 0.0
        %938 = vmatpush1.msra.mxu0 0.0
        %939 = vmatprep.subr.mxu0 0.0
        %940 = vmatpush1.msra.mxu0 0.0
        %941 = vmatprep.subr.mxu0 0.0
        %942 = vmatpush1.msra.mxu0 0.0
        %943 = vmatprep.subr.mxu0 0.0
        %944 = vmatpush1.msra.mxu0 0.0
        %945 = vmatprep.subr.mxu0 0.0
        %946 = vmatpush1.msra.mxu0 0.0
        %947 = vmatprep.subr.mxu0 0.0
        %948 = vmatpush1.msra.mxu0 0.0
        %949 = vmatprep.subr.mxu0 0.0
        %950 = vmatpush1.msra.mxu0 0.0
        %951 = vmatprep.subr.mxu0 0.0
        %952 = vmatpush1.msra.mxu0 0.0
        %953 = vmatprep.subr.mxu0 0.0
        %954 = vmatpush1.msra.mxu0 0.0
        %955 = vmatprep.subr.mxu0 0.0
        %956 = vmatpush1.msra.mxu0 0.0
        %957 = vmatprep.subr.mxu0 0.0
        %958 = vmatpush1.msra.mxu0 0.0
        %959 = vmatprep.subr.mxu0 0.0
        %960 = vmatpush1.msra.mxu0 0.0
        %961 = vmatprep.subr.mxu0 0.0
        %962 = vmatpush1.msra.mxu0 0.0
        %963 = vmatprep.subr.mxu0 0.0
        %964 = vmatpush1.msra.mxu0 0.0
        %965 = vmatprep.subr.mxu0 0.0
        %966 = vmatpush1.msra.mxu0 0.0
        %967 = vmatprep.subr.mxu0 0.0
        %968 = vmatpush1.msra.mxu0 0.0
        %969 = vmatprep.subr.mxu0 0.0
        %970 = vmatpush1.msra.mxu0 0.0
        %971 = vmatprep.mubr.f32.mxu0 0.0
        %972 = vmatmul.mubr.f32.gmra.mrb[0].mxu0 %v905
        %v973 = vpop.f32.mrb[0].mxu0
        %v974 = vadd.f32 0.0, %v973
        %v975 = vpop.f32.mrb[0].mxu0
        %976 = vdwg.mxu0
        %s977 = scalar_lea.vmem [#allocation7], 128
        %v978 = vld [vmem:[%s977] sm:$0xff]
        %v979 = vld [vmem:[%s977 + $0x8] sm:$0xff]
        %v980 = vld [vmem:[%s977 + $0x10] sm:$0xff]
        %v981 = vld [vmem:[%s977 + $0x18] sm:$0xff]
        %v982 = vld [vmem:[%s977 + $0x20] sm:$0xff]
        %v983 = vld [vmem:[%s977 + $0x28] sm:$0xff]
        %v984 = vld [vmem:[%s977 + $0x30] sm:$0xff]
        %v985 = vld [vmem:[%s977 + $0x38] sm:$0xff]
        %v986 = vld [vmem:[%s977 + $0x40] sm:$0xff]
        %v987 = vld [vmem:[%s977 + $0x48] sm:$0xff]
        %v988 = vld [vmem:[%s977 + $0x50] sm:$0xff]
        %v989 = vld [vmem:[%s977 + $0x58] sm:$0xff]
        %v990 = vld [vmem:[%s977 + $0x60] sm:$0xff]
        %v991 = vld [vmem:[%s977 + $0x68] sm:$0xff]
        %v992 = vld [vmem:[%s977 + $0x70] sm:$0xff]
        %v993 = vld [vmem:[%s977 + $0x78] sm:$0xff]
        %994 = vmatprep.subr.mxu0 0.0
        %995 = vmatpush1.msra.mxu0 %v978
        %996 = vmatprep.subr.mxu0 0.0
        %997 = vmatpush1.msra.mxu0 %v979
        %998 = vmatprep.subr.mxu0 0.0
        %999 = vmatpush1.msra.mxu0 %v980
        %1000 = vmatprep.subr.mxu0 0.0
        %1001 = vmatpush1.msra.mxu0 %v981
        %1002 = vmatprep.subr.mxu0 0.0
        %1003 = vmatpush1.msra.mxu0 %v982
        %1004 = vmatprep.subr.mxu0 0.0
        %1005 = vmatpush1.msra.mxu0 %v983
        %1006 = vmatprep.subr.mxu0 0.0
        %1007 = vmatpush1.msra.mxu0 %v984
        %1008 = vmatprep.subr.mxu0 0.0
        %1009 = vmatpush1.msra.mxu0 %v985
        %1010 = vmatprep.subr.mxu0 0.0
        %1011 = vmatpush1.msra.mxu0 %v986
        %1012 = vmatprep.subr.mxu0 0.0
        %1013 = vmatpush1.msra.mxu0 %v987
        %1014 = vmatprep.subr.mxu0 0.0
        %1015 = vmatpush1.msra.mxu0 %v988
        %1016 = vmatprep.subr.mxu0 0.0
        %1017 = vmatpush1.msra.mxu0 %v989
        %1018 = vmatprep.subr.mxu0 0.0
        %1019 = vmatpush1.msra.mxu0 %v990
        %1020 = vmatprep.subr.mxu0 0.0
        %1021 = vmatpush1.msra.mxu0 %v991
        %1022 = vmatprep.subr.mxu0 0.0
        %1023 = vmatpush1.msra.mxu0 %v992
        %1024 = vmatprep.subr.mxu0 0.0
        %1025 = vmatpush1.msra.mxu0 %v993
        %1026 = vmatprep.subr.mxu0 0.0
        %1027 = vmatpush1.msra.mxu0 0.0
        %1028 = vmatprep.subr.mxu0 0.0
        %1029 = vmatpush1.msra.mxu0 0.0
        %1030 = vmatprep.subr.mxu0 0.0
        %1031 = vmatpush1.msra.mxu0 0.0
        %1032 = vmatprep.subr.mxu0 0.0
        %1033 = vmatpush1.msra.mxu0 0.0
        %1034 = vmatprep.subr.mxu0 0.0
        %1035 = vmatpush1.msra.mxu0 0.0
        %1036 = vmatprep.subr.mxu0 0.0
        %1037 = vmatpush1.msra.mxu0 0.0
        %1038 = vmatprep.subr.mxu0 0.0
        %1039 = vmatpush1.msra.mxu0 0.0
        %1040 = vmatprep.subr.mxu0 0.0
        %1041 = vmatpush1.msra.mxu0 0.0
        %1042 = vmatprep.subr.mxu0 0.0
        %1043 = vmatpush1.msra.mxu0 0.0
        %1044 = vmatprep.subr.mxu0 0.0
        %1045 = vmatpush1.msra.mxu0 0.0
        %1046 = vmatprep.subr.mxu0 0.0
        %1047 = vmatpush1.msra.mxu0 0.0
        %1048 = vmatprep.subr.mxu0 0.0
        %1049 = vmatpush1.msra.mxu0 0.0
        %1050 = vmatprep.subr.mxu0 0.0
        %1051 = vmatpush1.msra.mxu0 0.0
        %1052 = vmatprep.subr.mxu0 0.0
        %1053 = vmatpush1.msra.mxu0 0.0
        %1054 = vmatprep.subr.mxu0 0.0
        %1055 = vmatpush1.msra.mxu0 0.0
        %1056 = vmatprep.subr.mxu0 0.0
        %1057 = vmatpush1.msra.mxu0 0.0
        %1058 = vmatprep.mubr.f32.mxu0 0.0
        %1059 = vmatmul.mubr.f32.gmra.mrb[0].mxu0 %v974
        %v1060 = vpop.f32.mrb[0].mxu0
        %v1061 = vadd.f32 0.0, %v1060
        %v1062 = vpop.f32.mrb[0].mxu0
        %1063 = vdwg.mxu0
        %1064 = vmatprep.subr.mxu0 0.0
        %1065 = vmatpush1.msra.mxu0 %v787
        %1066 = vmatprep.subr.mxu0 0.0
        %1067 = vmatpush1.msra.mxu0 %v788
        %1068 = vmatprep.subr.mxu0 0.0
        %1069 = vmatpush1.msra.mxu0 %v789
        %1070 = vmatprep.subr.mxu0 0.0
        %1071 = vmatpush1.msra.mxu0 %v790
        %1072 = vmatprep.subr.mxu0 0.0
        %1073 = vmatpush1.msra.mxu0 %v791
        %1074 = vmatprep.subr.mxu0 0.0
        %1075 = vmatpush1.msra.mxu0 %v792
        %1076 = vmatprep.subr.mxu0 0.0
        %1077 = vmatpush1.msra.mxu0 %v793
        %1078 = vmatprep.subr.mxu0 0.0
        %1079 = vmatpush1.msra.mxu0 %v794
        %1080 = vmatprep.subr.mxu0 0.0
        %1081 = vmatpush1.msra.mxu0 %v795
        %1082 = vmatprep.subr.mxu0 0.0
        %1083 = vmatpush1.msra.mxu0 %v796
        %1084 = vmatprep.subr.mxu0 0.0
        %1085 = vmatpush1.msra.mxu0 %v797
        %1086 = vmatprep.subr.mxu0 0.0
        %1087 = vmatpush1.msra.mxu0 %v798
        %1088 = vmatprep.subr.mxu0 0.0
        %1089 = vmatpush1.msra.mxu0 %v799
        %1090 = vmatprep.subr.mxu0 0.0
        %1091 = vmatpush1.msra.mxu0 %v800
        %1092 = vmatprep.subr.mxu0 0.0
        %1093 = vmatpush1.msra.mxu0 %v801
        %1094 = vmatprep.subr.mxu0 0.0
        %1095 = vmatpush1.msra.mxu0 %v802
        %1096 = vmatprep.subr.mxu0 0.0
        %1097 = vmatpush1.msra.mxu0 0.0
        %1098 = vmatprep.subr.mxu0 0.0
        %1099 = vmatpush1.msra.mxu0 0.0
        %1100 = vmatprep.subr.mxu0 0.0
        %1101 = vmatpush1.msra.mxu0 0.0
        %1102 = vmatprep.subr.mxu0 0.0
        %1103 = vmatpush1.msra.mxu0 0.0
        %1104 = vmatprep.subr.mxu0 0.0
        %1105 = vmatpush1.msra.mxu0 0.0
        %1106 = vmatprep.subr.mxu0 0.0
        %1107 = vmatpush1.msra.mxu0 0.0
        %1108 = vmatprep.subr.mxu0 0.0
        %1109 = vmatpush1.msra.mxu0 0.0
        %1110 = vmatprep.subr.mxu0 0.0
        %1111 = vmatpush1.msra.mxu0 0.0
        %1112 = vmatprep.subr.mxu0 0.0
        %1113 = vmatpush1.msra.mxu0 0.0
        %1114 = vmatprep.subr.mxu0 0.0
        %1115 = vmatpush1.msra.mxu0 0.0
        %1116 = vmatprep.subr.mxu0 0.0
        %1117 = vmatpush1.msra.mxu0 0.0
        %1118 = vmatprep.subr.mxu0 0.0
        %1119 = vmatpush1.msra.mxu0 0.0
        %1120 = vmatprep.subr.mxu0 0.0
        %1121 = vmatpush1.msra.mxu0 0.0
        %1122 = vmatprep.subr.mxu0 0.0
        %1123 = vmatpush1.msra.mxu0 0.0
        %1124 = vmatprep.subr.mxu0 0.0
        %1125 = vmatpush1.msra.mxu0 0.0
        %1126 = vmatprep.subr.mxu0 0.0
        %1127 = vmatpush1.msra.mxu0 0.0
        %1128 = vmatprep.mubr.f32.mxu0 0.0
        %1129 = vmatmul.mubr.f32.gmra.mrb[0].mxu0 %v784
        %v1130 = vpop.f32.mrb[0].mxu0
        %v1131 = vadd.f32 %v1061, %v1130
        %v1132 = vpop.f32.mrb[0].mxu0
        %1133 = vdwg.mxu0
        %s1134 = scalar_lea.vmem [#allocation6], 16
        %v1135 = vld [vmem:[%s1134] sm:$0xff]
        %v1136 = vld [vmem:[%s1134 + $0x8] sm:$0xff]
        %v1138 = vsel %vm713, %v1135, 0
        %v1141 = vsel %vm713, %v1136, 0
        %1143 = vmatprep.subr.mxu0 0.0
        %1144 = vmatpush1.msra.mxu0 %v710
        %1145 = vmatprep.subr.mxu0 0.0
        %1146 = vmatpush1.msra.mxu0 %v711
        %1147 = vmatprep.subr.mxu0 0.0
        %1148 = vmatpush1.msra.mxu0 0.0
        %1149 = vmatprep.subr.mxu0 0.0
        %1150 = vmatpush1.msra.mxu0 0.0
        %1151 = vmatprep.subr.mxu0 0.0
        %1152 = vmatpush1.msra.mxu0 0.0
        %1153 = vmatprep.subr.mxu0 0.0
        %1154 = vmatpush1.msra.mxu0 0.0
        %1155 = vmatprep.subr.mxu0 0.0
        %1156 = vmatpush1.msra.mxu0 0.0
        %1157 = vmatprep.subr.mxu0 0.0
        %1158 = vmatpush1.msra.mxu0 0.0
        %1159 = vmatprep.subr.mxu0 0.0
        %1160 = vmatpush1.msra.mxu0 0.0
        %1161 = vmatprep.subr.mxu0 0.0
        %1162 = vmatpush1.msra.mxu0 0.0
        %1163 = vmatprep.subr.mxu0 0.0
        %1164 = vmatpush1.msra.mxu0 0.0
        %1165 = vmatprep.subr.mxu0 0.0
        %1166 = vmatpush1.msra.mxu0 0.0
        %1167 = vmatprep.subr.mxu0 0.0
        %1168 = vmatpush1.msra.mxu0 0.0
        %1169 = vmatprep.subr.mxu0 0.0
        %1170 = vmatpush1.msra.mxu0 0.0
        %1171 = vmatprep.subr.mxu0 0.0
        %1172 = vmatpush1.msra.mxu0 0.0
        %1173 = vmatprep.subr.mxu0 0.0
        %1174 = vmatpush1.msra.mxu0 0.0
        %1175 = vmatprep.subr.mxu0 0.0
        %1176 = vmatpush1.msra.mxu0 0.0
        %1177 = vmatprep.subr.mxu0 0.0
        %1178 = vmatpush1.msra.mxu0 0.0
        %1179 = vmatprep.subr.mxu0 0.0
        %1180 = vmatpush1.msra.mxu0 0.0
        %1181 = vmatprep.subr.mxu0 0.0
        %1182 = vmatpush1.msra.mxu0 0.0
        %1183 = vmatprep.subr.mxu0 0.0
        %1184 = vmatpush1.msra.mxu0 0.0
        %1185 = vmatprep.subr.mxu0 0.0
        %1186 = vmatpush1.msra.mxu0 0.0
        %1187 = vmatprep.subr.mxu0 0.0
        %1188 = vmatpush1.msra.mxu0 0.0
        %1189 = vmatprep.subr.mxu0 0.0
        %1190 = vmatpush1.msra.mxu0 0.0
        %1191 = vmatprep.subr.mxu0 0.0
        %1192 = vmatpush1.msra.mxu0 0.0
        %1193 = vmatprep.subr.mxu0 0.0
        %1194 = vmatpush1.msra.mxu0 0.0
        %1195 = vmatprep.subr.mxu0 0.0
        %1196 = vmatpush1.msra.mxu0 0.0
        %1197 = vmatprep.subr.mxu0 0.0
        %1198 = vmatpush1.msra.mxu0 0.0
        %1199 = vmatprep.subr.mxu0 0.0
        %1200 = vmatpush1.msra.mxu0 0.0
        %1201 = vmatprep.subr.mxu0 0.0
        %1202 = vmatpush1.msra.mxu0 0.0
        %1203 = vmatprep.subr.mxu0 0.0
        %1204 = vmatpush1.msra.mxu0 0.0
        %1205 = vmatprep.subr.mxu0 0.0
        %1206 = vmatpush1.msra.mxu0 0.0
        %1207 = vmatprep.mubr.f32.mxu0 0.0
        %1208 = vmatmul.mubr.f32.gmra.mrb[0].mxu0 %v1138
        %v1209 = vpop.f32.mrb[0].mxu0
        %v1210 = vadd.f32 0.0, %v1209
        %v1211 = vpop.f32.mrb[0].mxu0
        %1212 = vmatprep.mubr.f32.mxu0 0.0
        %1213 = vmatmul.mubr.f32.gmra.mrb[0].mxu0 %v1141
        %v1214 = vpop.f32.mrb[0].mxu0
        %v1215 = vadd.f32 0.0, %v1214
        %v1216 = vpop.f32.mrb[0].mxu0
        %1217 = vdwg.mxu0
        %s1218 = scalar_lea.vmem [#allocation9], 128
        %v1219 = vld [vmem:[%s1218] sm:$0xff]
        %v1220 = vld [vmem:[%s1218 + $0x8] sm:$0xff]
        %v1221 = vld [vmem:[%s1218 + $0x10] sm:$0xff]
        %v1222 = vld [vmem:[%s1218 + $0x18] sm:$0xff]
        %v1223 = vld [vmem:[%s1218 + $0x20] sm:$0xff]
        %v1224 = vld [vmem:[%s1218 + $0x28] sm:$0xff]
        %v1225 = vld [vmem:[%s1218 + $0x30] sm:$0xff]
        %v1226 = vld [vmem:[%s1218 + $0x38] sm:$0xff]
        %v1227 = vld [vmem:[%s1218 + $0x40] sm:$0xff]
        %v1228 = vld [vmem:[%s1218 + $0x48] sm:$0xff]
        %v1229 = vld [vmem:[%s1218 + $0x50] sm:$0xff]
        %v1230 = vld [vmem:[%s1218 + $0x58] sm:$0xff]
        %v1231 = vld [vmem:[%s1218 + $0x60] sm:$0xff]
        %v1232 = vld [vmem:[%s1218 + $0x68] sm:$0xff]
        %v1233 = vld [vmem:[%s1218 + $0x70] sm:$0xff]
        %v1234 = vld [vmem:[%s1218 + $0x78] sm:$0xff]
        %1235 = vmatprep.subr.mxu0 0.0
        %1236 = vmatpush1.msra.mxu0 %v1219
        %1237 = vmatprep.subr.mxu0 0.0
        %1238 = vmatpush1.msra.mxu0 %v1220
        %1239 = vmatprep.subr.mxu0 0.0
        %1240 = vmatpush1.msra.mxu0 %v1221
        %1241 = vmatprep.subr.mxu0 0.0
        %1242 = vmatpush1.msra.mxu0 %v1222
        %1243 = vmatprep.subr.mxu0 0.0
        %1244 = vmatpush1.msra.mxu0 %v1223
        %1245 = vmatprep.subr.mxu0 0.0
        %1246 = vmatpush1.msra.mxu0 %v1224
        %1247 = vmatprep.subr.mxu0 0.0
        %1248 = vmatpush1.msra.mxu0 %v1225
        %1249 = vmatprep.subr.mxu0 0.0
        %1250 = vmatpush1.msra.mxu0 %v1226
        %1251 = vmatprep.subr.mxu0 0.0
        %1252 = vmatpush1.msra.mxu0 %v1227
        %1253 = vmatprep.subr.mxu0 0.0
        %1254 = vmatpush1.msra.mxu0 %v1228
        %1255 = vmatprep.subr.mxu0 0.0
        %1256 = vmatpush1.msra.mxu0 %v1229
        %1257 = vmatprep.subr.mxu0 0.0
        %1258 = vmatpush1.msra.mxu0 %v1230
        %1259 = vmatprep.subr.mxu0 0.0
        %1260 = vmatpush1.msra.mxu0 %v1231
        %1261 = vmatprep.subr.mxu0 0.0
        %1262 = vmatpush1.msra.mxu0 %v1232
        %1263 = vmatprep.subr.mxu0 0.0
        %1264 = vmatpush1.msra.mxu0 %v1233
        %1265 = vmatprep.subr.mxu0 0.0
        %1266 = vmatpush1.msra.mxu0 %v1234
        %1267 = vmatprep.subr.mxu0 0.0
        %1268 = vmatpush1.msra.mxu0 0.0
        %1269 = vmatprep.subr.mxu0 0.0
        %1270 = vmatpush1.msra.mxu0 0.0
        %1271 = vmatprep.subr.mxu0 0.0
        %1272 = vmatpush1.msra.mxu0 0.0
        %1273 = vmatprep.subr.mxu0 0.0
        %1274 = vmatpush1.msra.mxu0 0.0
        %1275 = vmatprep.subr.mxu0 0.0
        %1276 = vmatpush1.msra.mxu0 0.0
        %1277 = vmatprep.subr.mxu0 0.0
        %1278 = vmatpush1.msra.mxu0 0.0
        %1279 = vmatprep.subr.mxu0 0.0
        %1280 = vmatpush1.msra.mxu0 0.0
        %1281 = vmatprep.subr.mxu0 0.0
        %1282 = vmatpush1.msra.mxu0 0.0
        %1283 = vmatprep.subr.mxu0 0.0
        %1284 = vmatpush1.msra.mxu0 0.0
        %1285 = vmatprep.subr.mxu0 0.0
        %1286 = vmatpush1.msra.mxu0 0.0
        %1287 = vmatprep.subr.mxu0 0.0
        %1288 = vmatpush1.msra.mxu0 0.0
        %1289 = vmatprep.subr.mxu0 0.0
        %1290 = vmatpush1.msra.mxu0 0.0
        %1291 = vmatprep.subr.mxu0 0.0
        %1292 = vmatpush1.msra.mxu0 0.0
        %1293 = vmatprep.subr.mxu0 0.0
        %1294 = vmatpush1.msra.mxu0 0.0
        %1295 = vmatprep.subr.mxu0 0.0
        %1296 = vmatpush1.msra.mxu0 0.0
        %1297 = vmatprep.subr.mxu0 0.0
        %1298 = vmatpush1.msra.mxu0 0.0
        %1299 = vmatprep.mubr.f32.mxu0 0.0
        %1300 = vmatmul.mubr.f32.gmra.mrb[0].mxu0 %v1210
        %v1301 = vpop.f32.mrb[0].mxu0
        %v1302 = vadd.f32 0.0, %v1301
        %v1303 = vpop.f32.mrb[0].mxu0
        %1304 = vmatprep.mubr.f32.mxu0 0.0
        %1305 = vmatmul.mubr.f32.gmra.mrb[0].mxu0 %v1215
        %v1306 = vpop.f32.mrb[0].mxu0
        %v1307 = vadd.f32 0.0, %v1306
        %v1308 = vpop.f32.mrb[0].mxu0
        %1309 = vdwg.mxu0
        %1310 = vmatprep.subr.mxu0 0.0
        %1311 = vmatpush1.msra.mxu0 %v886
        %1312 = vmatprep.subr.mxu0 0.0
        %1313 = vmatpush1.msra.mxu0 %v887
        %1314 = vmatprep.subr.mxu0 0.0
        %1315 = vmatpush1.msra.mxu0 %v888
        %1316 = vmatprep.subr.mxu0 0.0
        %1317 = vmatpush1.msra.mxu0 %v889
        %1318 = vmatprep.subr.mxu0 0.0
        %1319 = vmatpush1.msra.mxu0 %v890
        %1320 = vmatprep.subr.mxu0 0.0
        %1321 = vmatpush1.msra.mxu0 %v891
        %1322 = vmatprep.subr.mxu0 0.0
        %1323 = vmatpush1.msra.mxu0 %v892
        %1324 = vmatprep.subr.mxu0 0.0
        %1325 = vmatpush1.msra.mxu0 %v893
        %1326 = vmatprep.subr.mxu0 0.0
        %1327 = vmatpush1.msra.mxu0 %v894
        %1328 = vmatprep.subr.mxu0 0.0
        %1329 = vmatpush1.msra.mxu0 %v895
        %1330 = vmatprep.subr.mxu0 0.0
        %1331 = vmatpush1.msra.mxu0 %v896
        %1332 = vmatprep.subr.mxu0 0.0
        %1333 = vmatpush1.msra.mxu0 %v897
        %1334 = vmatprep.subr.mxu0 0.0
        %1335 = vmatpush1.msra.mxu0 %v898
        %1336 = vmatprep.subr.mxu0 0.0
        %1337 = vmatpush1.msra.mxu0 %v899
        %1338 = vmatprep.subr.mxu0 0.0
        %1339 = vmatpush1.msra.mxu0 %v900
        %1340 = vmatprep.subr.mxu0 0.0
        %1341 = vmatpush1.msra.mxu0 %v901
        %1342 = vmatprep.subr.mxu0 0.0
        %1343 = vmatpush1.msra.mxu0 0.0
        %1344 = vmatprep.subr.mxu0 0.0
        %1345 = vmatpush1.msra.mxu0 0.0
        %1346 = vmatprep.subr.mxu0 0.0
        %1347 = vmatpush1.msra.mxu0 0.0
        %1348 = vmatprep.subr.mxu0 0.0
        %1349 = vmatpush1.msra.mxu0 0.0
        %1350 = vmatprep.subr.mxu0 0.0
        %1351 = vmatpush1.msra.mxu0 0.0
        %1352 = vmatprep.subr.mxu0 0.0
        %1353 = vmatpush1.msra.mxu0 0.0
        %1354 = vmatprep.subr.mxu0 0.0
        %1355 = vmatpush1.msra.mxu0 0.0
        %1356 = vmatprep.subr.mxu0 0.0
        %1357 = vmatpush1.msra.mxu0 0.0
        %1358 = vmatprep.subr.mxu0 0.0
        %1359 = vmatpush1.msra.mxu0 0.0
        %1360 = vmatprep.subr.mxu0 0.0
        %1361 = vmatpush1.msra.mxu0 0.0
        %1362 = vmatprep.subr.mxu0 0.0
        %1363 = vmatpush1.msra.mxu0 0.0
        %1364 = vmatprep.subr.mxu0 0.0
        %1365 = vmatpush1.msra.mxu0 0.0
        %1366 = vmatprep.subr.mxu0 0.0
        %1367 = vmatpush1.msra.mxu0 0.0
        %1368 = vmatprep.subr.mxu0 0.0
        %1369 = vmatpush1.msra.mxu0 0.0
        %1370 = vmatprep.subr.mxu0 0.0
        %1371 = vmatpush1.msra.mxu0 0.0
        %1372 = vmatprep.subr.mxu0 0.0
        %1373 = vmatpush1.msra.mxu0 0.0
        %1374 = vmatprep.mubr.f32.mxu0 0.0
        %1375 = vmatmul.mubr.f32.gmra.mrb[0].mxu0 %v878
        %v1376 = vpop.f32.mrb[0].mxu0
        %v1377 = vadd.f32 %v1302, %v1376
        %v1378 = vpop.f32.mrb[0].mxu0
        %1379 = vmatprep.mubr.f32.mxu0 0.0
        %1380 = vmatmul.mubr.f32.gmra.mrb[0].mxu0 %v883
        %v1381 = vpop.f32.mrb[0].mxu0
        %v1382 = vadd.f32 %v1307, %v1381
        %v1383 = vpop.f32.mrb[0].mxu0
        %1384 = vdwg.mxu0
        %s1385 = scalar_lea.vmem [#allocation4], 16
        %v1386 = vld [vmem:[%s1385] sm:$0x7f]
        %v1388 = vsel %vm713, %v1386, 0
        %1390 = vmatprep.subr.mxu0 0.0
        %1391 = vmatpush1.msra.mxu0 %v708
        %1392 = vmatprep.subr.mxu0 0.0
        %1393 = vmatpush1.msra.mxu0 %v709
        %1394 = vmatprep.subr.mxu0 0.0
        %1395 = vmatpush1.msra.mxu0 0.0
        %1396 = vmatprep.subr.mxu0 0.0
        %1397 = vmatpush1.msra.mxu0 0.0
        %1398 = vmatprep.subr.mxu0 0.0
        %1399 = vmatpush1.msra.mxu0 0.0
        %1400 = vmatprep.subr.mxu0 0.0
        %1401 = vmatpush1.msra.mxu0 0.0
        %1402 = vmatprep.subr.mxu0 0.0
        %1403 = vmatpush1.msra.mxu0 0.0
        %1404 = vmatprep.subr.mxu0 0.0
        %1405 = vmatpush1.msra.mxu0 0.0
        %1406 = vmatprep.subr.mxu0 0.0
        %1407 = vmatpush1.msra.mxu0 0.0
        %1408 = vmatprep.subr.mxu0 0.0
        %1409 = vmatpush1.msra.mxu0 0.0
        %1410 = vmatprep.subr.mxu0 0.0
        %1411 = vmatpush1.msra.mxu0 0.0
        %1412 = vmatprep.subr.mxu0 0.0
        %1413 = vmatpush1.msra.mxu0 0.0
        %1414 = vmatprep.subr.mxu0 0.0
        %1415 = vmatpush1.msra.mxu0 0.0
        %1416 = vmatprep.subr.mxu0 0.0
        %1417 = vmatpush1.msra.mxu0 0.0
        %1418 = vmatprep.subr.mxu0 0.0
        %1419 = vmatpush1.msra.mxu0 0.0
        %1420 = vmatprep.subr.mxu0 0.0
        %1421 = vmatpush1.msra.mxu0 0.0
        %1422 = vmatprep.subr.mxu0 0.0
        %1423 = vmatpush1.msra.mxu0 0.0
        %1424 = vmatprep.subr.mxu0 0.0
        %1425 = vmatpush1.msra.mxu0 0.0
        %1426 = vmatprep.subr.mxu0 0.0
        %1427 = vmatpush1.msra.mxu0 0.0
        %1428 = vmatprep.subr.mxu0 0.0
        %1429 = vmatpush1.msra.mxu0 0.0
        %1430 = vmatprep.subr.mxu0 0.0
        %1431 = vmatpush1.msra.mxu0 0.0
        %1432 = vmatprep.subr.mxu0 0.0
        %1433 = vmatpush1.msra.mxu0 0.0
        %1434 = vmatprep.subr.mxu0 0.0
        %1435 = vmatpush1.msra.mxu0 0.0
        %1436 = vmatprep.subr.mxu0 0.0
        %1437 = vmatpush1.msra.mxu0 0.0
        %1438 = vmatprep.subr.mxu0 0.0
        %1439 = vmatpush1.msra.mxu0 0.0
        %1440 = vmatprep.subr.mxu0 0.0
        %1441 = vmatpush1.msra.mxu0 0.0
        %1442 = vmatprep.subr.mxu0 0.0
        %1443 = vmatpush1.msra.mxu0 0.0
        %1444 = vmatprep.subr.mxu0 0.0
        %1445 = vmatpush1.msra.mxu0 0.0
        %1446 = vmatprep.subr.mxu0 0.0
        %1447 = vmatpush1.msra.mxu0 0.0
        %1448 = vmatprep.subr.mxu0 0.0
        %1449 = vmatpush1.msra.mxu0 0.0
        %1450 = vmatprep.subr.mxu0 0.0
        %1451 = vmatpush1.msra.mxu0 0.0
        %1452 = vmatprep.subr.mxu0 0.0
        %1453 = vmatpush1.msra.mxu0 0.0
        %1454 = vmatprep.mubr.f32.mxu0 0.0
        %1455 = vmatmul.mubr.f32.gmra.mrb[0].mxu0 %v1388
        %v1456 = vpop.f32.mrb[0].mxu0
        %v1457 = vadd.f32 0.0, %v1456
        %v1458 = vpop.f32.mrb[0].mxu0
        %1459 = vdwg.mxu0
        %s1460 = scalar_lea.vmem [#allocation7], 256
        %v1461 = vld [vmem:[%s1460] sm:$0xff]
        %v1462 = vld [vmem:[%s1460 + $0x8] sm:$0xff]
        %v1463 = vld [vmem:[%s1460 + $0x10] sm:$0xff]
        %v1464 = vld [vmem:[%s1460 + $0x18] sm:$0xff]
        %v1465 = vld [vmem:[%s1460 + $0x20] sm:$0xff]
        %v1466 = vld [vmem:[%s1460 + $0x28] sm:$0xff]
        %v1467 = vld [vmem:[%s1460 + $0x30] sm:$0xff]
        %v1468 = vld [vmem:[%s1460 + $0x38] sm:$0xff]
        %v1469 = vld [vmem:[%s1460 + $0x40] sm:$0xff]
        %v1470 = vld [vmem:[%s1460 + $0x48] sm:$0xff]
        %v1471 = vld [vmem:[%s1460 + $0x50] sm:$0xff]
        %v1472 = vld [vmem:[%s1460 + $0x58] sm:$0xff]
        %v1473 = vld [vmem:[%s1460 + $0x60] sm:$0xff]
        %v1474 = vld [vmem:[%s1460 + $0x68] sm:$0xff]
        %v1475 = vld [vmem:[%s1460 + $0x70] sm:$0xff]
        %v1476 = vld [vmem:[%s1460 + $0x78] sm:$0xff]
        %1477 = vmatprep.subr.mxu0 0.0
        %1478 = vmatpush1.msra.mxu0 %v1461
        %1479 = vmatprep.subr.mxu0 0.0
        %1480 = vmatpush1.msra.mxu0 %v1462
        %1481 = vmatprep.subr.mxu0 0.0
        %1482 = vmatpush1.msra.mxu0 %v1463
        %1483 = vmatprep.subr.mxu0 0.0
        %1484 = vmatpush1.msra.mxu0 %v1464
        %1485 = vmatprep.subr.mxu0 0.0
        %1486 = vmatpush1.msra.mxu0 %v1465
        %1487 = vmatprep.subr.mxu0 0.0
        %1488 = vmatpush1.msra.mxu0 %v1466
        %1489 = vmatprep.subr.mxu0 0.0
        %1490 = vmatpush1.msra.mxu0 %v1467
        %1491 = vmatprep.subr.mxu0 0.0
        %1492 = vmatpush1.msra.mxu0 %v1468
        %1493 = vmatprep.subr.mxu0 0.0
        %1494 = vmatpush1.msra.mxu0 %v1469
        %1495 = vmatprep.subr.mxu0 0.0
        %1496 = vmatpush1.msra.mxu0 %v1470
        %1497 = vmatprep.subr.mxu0 0.0
        %1498 = vmatpush1.msra.mxu0 %v1471
        %1499 = vmatprep.subr.mxu0 0.0
        %1500 = vmatpush1.msra.mxu0 %v1472
        %1501 = vmatprep.subr.mxu0 0.0
        %1502 = vmatpush1.msra.mxu0 %v1473
        %1503 = vmatprep.subr.mxu0 0.0
        %1504 = vmatpush1.msra.mxu0 %v1474
        %1505 = vmatprep.subr.mxu0 0.0
        %1506 = vmatpush1.msra.mxu0 %v1475
        %1507 = vmatprep.subr.mxu0 0.0
        %1508 = vmatpush1.msra.mxu0 %v1476
        %1509 = vmatprep.subr.mxu0 0.0
        %1510 = vmatpush1.msra.mxu0 0.0
        %1511 = vmatprep.subr.mxu0 0.0
        %1512 = vmatpush1.msra.mxu0 0.0
        %1513 = vmatprep.subr.mxu0 0.0
        %1514 = vmatpush1.msra.mxu0 0.0
        %1515 = vmatprep.subr.mxu0 0.0
        %1516 = vmatpush1.msra.mxu0 0.0
        %1517 = vmatprep.subr.mxu0 0.0
        %1518 = vmatpush1.msra.mxu0 0.0
        %1519 = vmatprep.subr.mxu0 0.0
        %1520 = vmatpush1.msra.mxu0 0.0
        %1521 = vmatprep.subr.mxu0 0.0
        %1522 = vmatpush1.msra.mxu0 0.0
        %1523 = vmatprep.subr.mxu0 0.0
        %1524 = vmatpush1.msra.mxu0 0.0
        %1525 = vmatprep.subr.mxu0 0.0
        %1526 = vmatpush1.msra.mxu0 0.0
        %1527 = vmatprep.subr.mxu0 0.0
        %1528 = vmatpush1.msra.mxu0 0.0
        %1529 = vmatprep.subr.mxu0 0.0
        %1530 = vmatpush1.msra.mxu0 0.0
        %1531 = vmatprep.subr.mxu0 0.0
        %1532 = vmatpush1.msra.mxu0 0.0
        %1533 = vmatprep.subr.mxu0 0.0
        %1534 = vmatpush1.msra.mxu0 0.0
        %1535 = vmatprep.subr.mxu0 0.0
        %1536 = vmatpush1.msra.mxu0 0.0
        %1537 = vmatprep.subr.mxu0 0.0
        %1538 = vmatpush1.msra.mxu0 0.0
        %1539 = vmatprep.subr.mxu0 0.0
        %1540 = vmatpush1.msra.mxu0 0.0
        %1541 = vmatprep.mubr.f32.mxu0 0.0
        %1542 = vmatmul.mubr.f32.gmra.mrb[0].mxu0 %v1457
        %v1543 = vpop.f32.mrb[0].mxu0
        %v1544 = vadd.f32 0.0, %v1543
        %v1545 = vpop.f32.mrb[0].mxu0
        %1546 = vdwg.mxu0
        %v1547 = vadd.f32 %v1131, %v1544
        %s1548 = scalar_lea.vmem [#allocation6], 32
        %v1549 = vld [vmem:[%s1548] sm:$0xff]
        %v1550 = vld [vmem:[%s1548 + $0x8] sm:$0xff]
        %v1552 = vsel %vm713, %v1549, 0
        %v1555 = vsel %vm713, %v1550, 0
        %1557 = vmatprep.subr.mxu0 0.0
        %1558 = vmatpush1.msra.mxu0 %v710
        %1559 = vmatprep.subr.mxu0 0.0
        %1560 = vmatpush1.msra.mxu0 %v711
        %1561 = vmatprep.subr.mxu0 0.0
        %1562 = vmatpush1.msra.mxu0 0.0
        %1563 = vmatprep.subr.mxu0 0.0
        %1564 = vmatpush1.msra.mxu0 0.0
        %1565 = vmatprep.subr.mxu0 0.0
        %1566 = vmatpush1.msra.mxu0 0.0
        %1567 = vmatprep.subr.mxu0 0.0
        %1568 = vmatpush1.msra.mxu0 0.0
        %1569 = vmatprep.subr.mxu0 0.0
        %1570 = vmatpush1.msra.mxu0 0.0
        %1571 = vmatprep.subr.mxu0 0.0
        %1572 = vmatpush1.msra.mxu0 0.0
        %1573 = vmatprep.subr.mxu0 0.0
        %1574 = vmatpush1.msra.mxu0 0.0
        %1575 = vmatprep.subr.mxu0 0.0
        %1576 = vmatpush1.msra.mxu0 0.0
        %1577 = vmatprep.subr.mxu0 0.0
        %1578 = vmatpush1.msra.mxu0 0.0
        %1579 = vmatprep.subr.mxu0 0.0
        %1580 = vmatpush1.msra.mxu0 0.0
        %1581 = vmatprep.subr.mxu0 0.0
        %1582 = vmatpush1.msra.mxu0 0.0
        %1583 = vmatprep.subr.mxu0 0.0
        %1584 = vmatpush1.msra.mxu0 0.0
        %1585 = vmatprep.subr.mxu0 0.0
        %1586 = vmatpush1.msra.mxu0 0.0
        %1587 = vmatprep.subr.mxu0 0.0
        %1588 = vmatpush1.msra.mxu0 0.0
        %1589 = vmatprep.subr.mxu0 0.0
        %1590 = vmatpush1.msra.mxu0 0.0
        %1591 = vmatprep.subr.mxu0 0.0
        %1592 = vmatpush1.msra.mxu0 0.0
        %1593 = vmatprep.subr.mxu0 0.0
        %1594 = vmatpush1.msra.mxu0 0.0
        %1595 = vmatprep.subr.mxu0 0.0
        %1596 = vmatpush1.msra.mxu0 0.0
        %1597 = vmatprep.subr.mxu0 0.0
        %1598 = vmatpush1.msra.mxu0 0.0
        %1599 = vmatprep.subr.mxu0 0.0
        %1600 = vmatpush1.msra.mxu0 0.0
        %1601 = vmatprep.subr.mxu0 0.0
        %1602 = vmatpush1.msra.mxu0 0.0
        %1603 = vmatprep.subr.mxu0 0.0
        %1604 = vmatpush1.msra.mxu0 0.0
        %1605 = vmatprep.subr.mxu0 0.0
        %1606 = vmatpush1.msra.mxu0 0.0
        %1607 = vmatprep.subr.mxu0 0.0
        %1608 = vmatpush1.msra.mxu0 0.0
        %1609 = vmatprep.subr.mxu0 0.0
        %1610 = vmatpush1.msra.mxu0 0.0
        %1611 = vmatprep.subr.mxu0 0.0
        %1612 = vmatpush1.msra.mxu0 0.0
        %1613 = vmatprep.subr.mxu0 0.0
        %1614 = vmatpush1.msra.mxu0 0.0
        %1615 = vmatprep.subr.mxu0 0.0
        %1616 = vmatpush1.msra.mxu0 0.0
        %1617 = vmatprep.subr.mxu0 0.0
        %1618 = vmatpush1.msra.mxu0 0.0
        %1619 = vmatprep.subr.mxu0 0.0
        %1620 = vmatpush1.msra.mxu0 0.0
        %1621 = vmatprep.mubr.f32.mxu0 0.0
        %1622 = vmatmul.mubr.f32.gmra.mrb[0].mxu0 %v1552
        %v1623 = vpop.f32.mrb[0].mxu0
        %v1624 = vadd.f32 0.0, %v1623
        %v1625 = vpop.f32.mrb[0].mxu0
        %1626 = vmatprep.mubr.f32.mxu0 0.0
        %1627 = vmatmul.mubr.f32.gmra.mrb[0].mxu0 %v1555
        %v1628 = vpop.f32.mrb[0].mxu0
        %v1629 = vadd.f32 0.0, %v1628
        %v1630 = vpop.f32.mrb[0].mxu0
        %1631 = vdwg.mxu0
        %s1632 = scalar_lea.vmem [#allocation9], 256
        %v1633 = vld [vmem:[%s1632] sm:$0xff]
        %v1634 = vld [vmem:[%s1632 + $0x8] sm:$0xff]
        %v1635 = vld [vmem:[%s1632 + $0x10] sm:$0xff]
        %v1636 = vld [vmem:[%s1632 + $0x18] sm:$0xff]
        %v1637 = vld [vmem:[%s1632 + $0x20] sm:$0xff]
        %v1638 = vld [vmem:[%s1632 + $0x28] sm:$0xff]
        %v1639 = vld [vmem:[%s1632 + $0x30] sm:$0xff]
        %v1640 = vld [vmem:[%s1632 + $0x38] sm:$0xff]
        %v1641 = vld [vmem:[%s1632 + $0x40] sm:$0xff]
        %v1642 = vld [vmem:[%s1632 + $0x48] sm:$0xff]
        %v1643 = vld [vmem:[%s1632 + $0x50] sm:$0xff]
        %v1644 = vld [vmem:[%s1632 + $0x58] sm:$0xff]
        %v1645 = vld [vmem:[%s1632 + $0x60] sm:$0xff]
        %v1646 = vld [vmem:[%s1632 + $0x68] sm:$0xff]
        %v1647 = vld [vmem:[%s1632 + $0x70] sm:$0xff]
        %v1648 = vld [vmem:[%s1632 + $0x78] sm:$0xff]
        %1649 = vmatprep.subr.mxu0 0.0
        %1650 = vmatpush1.msra.mxu0 %v1633
        %1651 = vmatprep.subr.mxu0 0.0
        %1652 = vmatpush1.msra.mxu0 %v1634
        %1653 = vmatprep.subr.mxu0 0.0
        %1654 = vmatpush1.msra.mxu0 %v1635
        %1655 = vmatprep.subr.mxu0 0.0
        %1656 = vmatpush1.msra.mxu0 %v1636
        %1657 = vmatprep.subr.mxu0 0.0
        %1658 = vmatpush1.msra.mxu0 %v1637
        %1659 = vmatprep.subr.mxu0 0.0
        %1660 = vmatpush1.msra.mxu0 %v1638
        %1661 = vmatprep.subr.mxu0 0.0
        %1662 = vmatpush1.msra.mxu0 %v1639
        %1663 = vmatprep.subr.mxu0 0.0
        %1664 = vmatpush1.msra.mxu0 %v1640
        %1665 = vmatprep.subr.mxu0 0.0
        %1666 = vmatpush1.msra.mxu0 %v1641
        %1667 = vmatprep.subr.mxu0 0.0
        %1668 = vmatpush1.msra.mxu0 %v1642
        %1669 = vmatprep.subr.mxu0 0.0
        %1670 = vmatpush1.msra.mxu0 %v1643
        %1671 = vmatprep.subr.mxu0 0.0
        %1672 = vmatpush1.msra.mxu0 %v1644
        %1673 = vmatprep.subr.mxu0 0.0
        %1674 = vmatpush1.msra.mxu0 %v1645
        %1675 = vmatprep.subr.mxu0 0.0
        %1676 = vmatpush1.msra.mxu0 %v1646
        %1677 = vmatprep.subr.mxu0 0.0
        %1678 = vmatpush1.msra.mxu0 %v1647
        %1679 = vmatprep.subr.mxu0 0.0
        %1680 = vmatpush1.msra.mxu0 %v1648
        %1681 = vmatprep.subr.mxu0 0.0
        %1682 = vmatpush1.msra.mxu0 0.0
        %1683 = vmatprep.subr.mxu0 0.0
        %1684 = vmatpush1.msra.mxu0 0.0
        %1685 = vmatprep.subr.mxu0 0.0
        %1686 = vmatpush1.msra.mxu0 0.0
        %1687 = vmatprep.subr.mxu0 0.0
        %1688 = vmatpush1.msra.mxu0 0.0
        %1689 = vmatprep.subr.mxu0 0.0
        %1690 = vmatpush1.msra.mxu0 0.0
        %1691 = vmatprep.subr.mxu0 0.0
        %1692 = vmatpush1.msra.mxu0 0.0
        %1693 = vmatprep.subr.mxu0 0.0
        %1694 = vmatpush1.msra.mxu0 0.0
        %1695 = vmatprep.subr.mxu0 0.0
        %1696 = vmatpush1.msra.mxu0 0.0
        %1697 = vmatprep.subr.mxu0 0.0
        %1698 = vmatpush1.msra.mxu0 0.0
        %1699 = vmatprep.subr.mxu0 0.0
        %1700 = vmatpush1.msra.mxu0 0.0
        %1701 = vmatprep.subr.mxu0 0.0
        %1702 = vmatpush1.msra.mxu0 0.0
        %1703 = vmatprep.subr.mxu0 0.0
        %1704 = vmatpush1.msra.mxu0 0.0
        %1705 = vmatprep.subr.mxu0 0.0
        %1706 = vmatpush1.msra.mxu0 0.0
        %1707 = vmatprep.subr.mxu0 0.0
        %1708 = vmatpush1.msra.mxu0 0.0
        %1709 = vmatprep.subr.mxu0 0.0
        %1710 = vmatpush1.msra.mxu0 0.0
        %1711 = vmatprep.subr.mxu0 0.0
        %1712 = vmatpush1.msra.mxu0 0.0
        %1713 = vmatprep.mubr.f32.mxu0 0.0
        %1714 = vmatmul.mubr.f32.gmra.mrb[0].mxu0 %v1624
        %v1715 = vpop.f32.mrb[0].mxu0
        %v1716 = vadd.f32 0.0, %v1715
        %v1717 = vpop.f32.mrb[0].mxu0
        %1718 = vmatprep.mubr.f32.mxu0 0.0
        %1719 = vmatmul.mubr.f32.gmra.mrb[0].mxu0 %v1629
        %v1720 = vpop.f32.mrb[0].mxu0
        %v1721 = vadd.f32 0.0, %v1720
        %v1722 = vpop.f32.mrb[0].mxu0
        %1723 = vdwg.mxu0
        %v1724 = vadd.f32 %v1377, %v1716
        %v1725 = vadd.f32 %v1382, %v1721
        %v1726 = vld [vmem:[%s4] sm:$0x1]
        %v1728 = vlaneseq
        %v1729 = vshrl.u32 %v1728, 7
        %v1730 = vsub.s32 0, %v1729
        %v1731 = vrot.slane %v1726, %v1730
        %v1733 = vadd.f32 %v1547, %v1731
        %v1734 = vld [vmem:[#allocation10] sm:$0x1]
        %v1736 = vlaneseq
        %v1737 = vshrl.u32 %v1736, 7
        %v1738 = vsub.s32 0, %v1737
        %v1739 = vrot.slane %v1734, %v1738
        %v1741 = vadd.f32 %v1724, %v1739
        %v1742 = vadd.f32 %v1725, %v1739
        %v1743 = vmax.f32 %v1741, 0.0
        %v1744 = vmax.f32 %v1742, 0.0
        %1745 = vmatprep.subr.mxu0 0.0
        %1746 = vmatpush1.msra.mxu0 %v1743
        %1747 = vmatprep.subr.mxu0 0.0
        %1748 = vmatpush1.msra.mxu0 %v1744
        %1749 = vmatprep.subr.mxu0 0.0
        %1750 = vmatpush1.msra.mxu0 0.0
        %1751 = vmatprep.subr.mxu0 0.0
        %1752 = vmatpush1.msra.mxu0 0.0
        %1753 = vmatprep.subr.mxu0 0.0
        %1754 = vmatpush1.msra.mxu0 0.0
        %1755 = vmatprep.subr.mxu0 0.0
        %1756 = vmatpush1.msra.mxu0 0.0
        %1757 = vmatprep.subr.mxu0 0.0
        %1758 = vmatpush1.msra.mxu0 0.0
        %1759 = vmatprep.subr.mxu0 0.0
        %1760 = vmatpush1.msra.mxu0 0.0
        %1761 = vmatprep.subr.mxu0 0.0
        %1762 = vmatpush1.msra.mxu0 0.0
        %1763 = vmatprep.subr.mxu0 0.0
        %1764 = vmatpush1.msra.mxu0 0.0
        %1765 = vmatprep.subr.mxu0 0.0
        %1766 = vmatpush1.msra.mxu0 0.0
        %1767 = vmatprep.subr.mxu0 0.0
        %1768 = vmatpush1.msra.mxu0 0.0
        %1769 = vmatprep.subr.mxu0 0.0
        %1770 = vmatpush1.msra.mxu0 0.0
        %1771 = vmatprep.subr.mxu0 0.0
        %1772 = vmatpush1.msra.mxu0 0.0
        %1773 = vmatprep.subr.mxu0 0.0
        %1774 = vmatpush1.msra.mxu0 0.0
        %1775 = vmatprep.subr.mxu0 0.0
        %1776 = vmatpush1.msra.mxu0 0.0
        %1777 = vmatprep.subr.mxu0 0.0
        %1778 = vmatpush1.msra.mxu0 0.0
        %1779 = vmatprep.subr.mxu0 0.0
        %1780 = vmatpush1.msra.mxu0 0.0
        %1781 = vmatprep.subr.mxu0 0.0
        %1782 = vmatpush1.msra.mxu0 0.0
        %1783 = vmatprep.subr.mxu0 0.0
        %1784 = vmatpush1.msra.mxu0 0.0
        %1785 = vmatprep.subr.mxu0 0.0
        %1786 = vmatpush1.msra.mxu0 0.0
        %1787 = vmatprep.subr.mxu0 0.0
        %1788 = vmatpush1.msra.mxu0 0.0
        %1789 = vmatprep.subr.mxu0 0.0
        %1790 = vmatpush1.msra.mxu0 0.0
        %1791 = vmatprep.subr.mxu0 0.0
        %1792 = vmatpush1.msra.mxu0 0.0
        %1793 = vmatprep.subr.mxu0 0.0
        %1794 = vmatpush1.msra.mxu0 0.0
        %1795 = vmatprep.subr.mxu0 0.0
        %1796 = vmatpush1.msra.mxu0 0.0
        %1797 = vmatprep.subr.mxu0 0.0
        %1798 = vmatpush1.msra.mxu0 0.0
        %1799 = vmatprep.subr.mxu0 0.0
        %1800 = vmatpush1.msra.mxu0 0.0
        %1801 = vmatprep.subr.mxu0 0.0
        %1802 = vmatpush1.msra.mxu0 0.0
        %1803 = vmatprep.subr.mxu0 0.0
        %1804 = vmatpush1.msra.mxu0 0.0
        %1805 = vmatprep.subr.mxu0 0.0
        %1806 = vmatpush1.msra.mxu0 0.0
        %1807 = vmatprep.subr.mxu0 0.0
        %1808 = vmatpush1.msra.mxu0 0.0
        %1809 = vmatprep.mubr.f32.mxu0 0.0
        %1810 = vmatmul.mubr.f32.gmra.mrb[0].mxu0 %v715
        %v1811 = vpop.f32.mrb[0].mxu0
        %v1812 = vadd.f32 0.0, %v1811
        %v1813 = vpop.f32.mrb[0].mxu0
        %1814 = vdwg.mxu0
        %v1815 = vld [vmem:[#allocation12] sm:$0xff]
        %v1816 = vld [vmem:[#allocation12 + $0x8] sm:$0xff]
        %v1817 = vld [vmem:[#allocation12 + $0x10] sm:$0xff]
        %v1818 = vld [vmem:[#allocation12 + $0x18] sm:$0xff]
        %v1819 = vld [vmem:[#allocation12 + $0x20] sm:$0xff]
        %v1820 = vld [vmem:[#allocation12 + $0x28] sm:$0xff]
        %v1821 = vld [vmem:[#allocation12 + $0x30] sm:$0xff]
        %v1822 = vld [vmem:[#allocation12 + $0x38] sm:$0xff]
        %v1823 = vld [vmem:[#allocation12 + $0x40] sm:$0xff]
        %v1824 = vld [vmem:[#allocation12 + $0x48] sm:$0xff]
        %v1825 = vld [vmem:[#allocation12 + $0x50] sm:$0xff]
        %v1826 = vld [vmem:[#allocation12 + $0x58] sm:$0xff]
        %v1827 = vld [vmem:[#allocation12 + $0x60] sm:$0xff]
        %v1828 = vld [vmem:[#allocation12 + $0x68] sm:$0xff]
        %v1829 = vld [vmem:[#allocation12 + $0x70] sm:$0xff]
        %v1830 = vld [vmem:[#allocation12 + $0x78] sm:$0xff]
        %1831 = vmatprep.subr.mxu0 0.0
        %1832 = vmatpush1.msra.mxu0 %v1743
        %1833 = vmatprep.subr.mxu0 0.0
        %1834 = vmatpush1.msra.mxu0 %v1744
        %1835 = vmatprep.subr.mxu0 0.0
        %1836 = vmatpush1.msra.mxu0 0.0
        %1837 = vmatprep.subr.mxu0 0.0
        %1838 = vmatpush1.msra.mxu0 0.0
        %1839 = vmatprep.subr.mxu0 0.0
        %1840 = vmatpush1.msra.mxu0 0.0
        %1841 = vmatprep.subr.mxu0 0.0
        %1842 = vmatpush1.msra.mxu0 0.0
        %1843 = vmatprep.subr.mxu0 0.0
        %1844 = vmatpush1.msra.mxu0 0.0
        %1845 = vmatprep.subr.mxu0 0.0
        %1846 = vmatpush1.msra.mxu0 0.0
        %1847 = vmatprep.subr.mxu0 0.0
        %1848 = vmatpush1.msra.mxu0 0.0
        %1849 = vmatprep.subr.mxu0 0.0
        %1850 = vmatpush1.msra.mxu0 0.0
        %1851 = vmatprep.subr.mxu0 0.0
        %1852 = vmatpush1.msra.mxu0 0.0
        %1853 = vmatprep.subr.mxu0 0.0
        %1854 = vmatpush1.msra.mxu0 0.0
        %1855 = vmatprep.subr.mxu0 0.0
        %1856 = vmatpush1.msra.mxu0 0.0
        %1857 = vmatprep.subr.mxu0 0.0
        %1858 = vmatpush1.msra.mxu0 0.0
        %1859 = vmatprep.subr.mxu0 0.0
        %1860 = vmatpush1.msra.mxu0 0.0
        %1861 = vmatprep.subr.mxu0 0.0
        %1862 = vmatpush1.msra.mxu0 0.0
        %1863 = vmatprep.subr.mxu0 0.0
        %1864 = vmatpush1.msra.mxu0 0.0
        %1865 = vmatprep.subr.mxu0 0.0
        %1866 = vmatpush1.msra.mxu0 0.0
        %1867 = vmatprep.subr.mxu0 0.0
        %1868 = vmatpush1.msra.mxu0 0.0
        %1869 = vmatprep.subr.mxu0 0.0
        %1870 = vmatpush1.msra.mxu0 0.0
        %1871 = vmatprep.subr.mxu0 0.0
        %1872 = vmatpush1.msra.mxu0 0.0
        %1873 = vmatprep.subr.mxu0 0.0
        %1874 = vmatpush1.msra.mxu0 0.0
        %1875 = vmatprep.subr.mxu0 0.0
        %1876 = vmatpush1.msra.mxu0 0.0
        %1877 = vmatprep.subr.mxu0 0.0
        %1878 = vmatpush1.msra.mxu0 0.0
        %1879 = vmatprep.subr.mxu0 0.0
        %1880 = vmatpush1.msra.mxu0 0.0
        %1881 = vmatprep.subr.mxu0 0.0
        %1882 = vmatpush1.msra.mxu0 0.0
        %1883 = vmatprep.subr.mxu0 0.0
        %1884 = vmatpush1.msra.mxu0 0.0
        %1885 = vmatprep.subr.mxu0 0.0
        %1886 = vmatpush1.msra.mxu0 0.0
        %1887 = vmatprep.subr.mxu0 0.0
        %1888 = vmatpush1.msra.mxu0 0.0
        %1889 = vmatprep.subr.mxu0 0.0
        %1890 = vmatpush1.msra.mxu0 0.0
        %1891 = vmatprep.subr.mxu0 0.0
        %1892 = vmatpush1.msra.mxu0 0.0
        %1893 = vmatprep.subr.mxu0 0.0
        %1894 = vmatpush1.msra.mxu0 0.0
        %1895 = vmatprep.mubr.f32.mxu0 0.0
        %1896 = vmatmul.mubr.f32.gmra.mrb[0].mxu0 %v905
        %v1897 = vpop.f32.mrb[0].mxu0
        %v1898 = vadd.f32 0.0, %v1897
        %v1899 = vpop.f32.mrb[0].mxu0
        %1900 = vdwg.mxu0
        %s1901 = scalar_lea.vmem [#allocation12], 128
        %v1902 = vld [vmem:[%s1901] sm:$0xff]
        %v1903 = vld [vmem:[%s1901 + $0x8] sm:$0xff]
        %v1904 = vld [vmem:[%s1901 + $0x10] sm:$0xff]
        %v1905 = vld [vmem:[%s1901 + $0x18] sm:$0xff]
        %v1906 = vld [vmem:[%s1901 + $0x20] sm:$0xff]
        %v1907 = vld [vmem:[%s1901 + $0x28] sm:$0xff]
        %v1908 = vld [vmem:[%s1901 + $0x30] sm:$0xff]
        %v1909 = vld [vmem:[%s1901 + $0x38] sm:$0xff]
        %v1910 = vld [vmem:[%s1901 + $0x40] sm:$0xff]
        %v1911 = vld [vmem:[%s1901 + $0x48] sm:$0xff]
        %v1912 = vld [vmem:[%s1901 + $0x50] sm:$0xff]
        %v1913 = vld [vmem:[%s1901 + $0x58] sm:$0xff]
        %v1914 = vld [vmem:[%s1901 + $0x60] sm:$0xff]
        %v1915 = vld [vmem:[%s1901 + $0x68] sm:$0xff]
        %v1916 = vld [vmem:[%s1901 + $0x70] sm:$0xff]
        %v1917 = vld [vmem:[%s1901 + $0x78] sm:$0xff]
        %1918 = vmatprep.subr.mxu0 0.0
        %1919 = vmatpush1.msra.mxu0 %v1902
        %1920 = vmatprep.subr.mxu0 0.0
        %1921 = vmatpush1.msra.mxu0 %v1903
        %1922 = vmatprep.subr.mxu0 0.0
        %1923 = vmatpush1.msra.mxu0 %v1904
        %1924 = vmatprep.subr.mxu0 0.0
        %1925 = vmatpush1.msra.mxu0 %v1905
        %1926 = vmatprep.subr.mxu0 0.0
        %1927 = vmatpush1.msra.mxu0 %v1906
        %1928 = vmatprep.subr.mxu0 0.0
        %1929 = vmatpush1.msra.mxu0 %v1907
        %1930 = vmatprep.subr.mxu0 0.0
        %1931 = vmatpush1.msra.mxu0 %v1908
        %1932 = vmatprep.subr.mxu0 0.0
        %1933 = vmatpush1.msra.mxu0 %v1909
        %1934 = vmatprep.subr.mxu0 0.0
        %1935 = vmatpush1.msra.mxu0 %v1910
        %1936 = vmatprep.subr.mxu0 0.0
        %1937 = vmatpush1.msra.mxu0 %v1911
        %1938 = vmatprep.subr.mxu0 0.0
        %1939 = vmatpush1.msra.mxu0 %v1912
        %1940 = vmatprep.subr.mxu0 0.0
        %1941 = vmatpush1.msra.mxu0 %v1913
        %1942 = vmatprep.subr.mxu0 0.0
        %1943 = vmatpush1.msra.mxu0 %v1914
        %1944 = vmatprep.subr.mxu0 0.0
        %1945 = vmatpush1.msra.mxu0 %v1915
        %1946 = vmatprep.subr.mxu0 0.0
        %1947 = vmatpush1.msra.mxu0 %v1916
        %1948 = vmatprep.subr.mxu0 0.0
        %1949 = vmatpush1.msra.mxu0 %v1917
        %1950 = vmatprep.subr.mxu0 0.0
        %1951 = vmatpush1.msra.mxu0 0.0
        %1952 = vmatprep.subr.mxu0 0.0
        %1953 = vmatpush1.msra.mxu0 0.0
        %1954 = vmatprep.subr.mxu0 0.0
        %1955 = vmatpush1.msra.mxu0 0.0
        %1956 = vmatprep.subr.mxu0 0.0
        %1957 = vmatpush1.msra.mxu0 0.0
        %1958 = vmatprep.subr.mxu0 0.0
        %1959 = vmatpush1.msra.mxu0 0.0
        %1960 = vmatprep.subr.mxu0 0.0
        %1961 = vmatpush1.msra.mxu0 0.0
        %1962 = vmatprep.subr.mxu0 0.0
        %1963 = vmatpush1.msra.mxu0 0.0
        %1964 = vmatprep.subr.mxu0 0.0
        %1965 = vmatpush1.msra.mxu0 0.0
        %1966 = vmatprep.subr.mxu0 0.0
        %1967 = vmatpush1.msra.mxu0 0.0
        %1968 = vmatprep.subr.mxu0 0.0
        %1969 = vmatpush1.msra.mxu0 0.0
        %1970 = vmatprep.subr.mxu0 0.0
        %1971 = vmatpush1.msra.mxu0 0.0
        %1972 = vmatprep.subr.mxu0 0.0
        %1973 = vmatpush1.msra.mxu0 0.0
        %1974 = vmatprep.subr.mxu0 0.0
        %1975 = vmatpush1.msra.mxu0 0.0
        %1976 = vmatprep.subr.mxu0 0.0
        %1977 = vmatpush1.msra.mxu0 0.0
        %1978 = vmatprep.subr.mxu0 0.0
        %1979 = vmatpush1.msra.mxu0 0.0
        %1980 = vmatprep.subr.mxu0 0.0
        %1981 = vmatpush1.msra.mxu0 0.0
        %1982 = vmatprep.mubr.f32.mxu0 0.0
        %1983 = vmatmul.mubr.f32.gmra.mrb[0].mxu0 %v1898
        %v1984 = vpop.f32.mrb[0].mxu0
        %v1985 = vadd.f32 0.0, %v1984
        %v1986 = vpop.f32.mrb[0].mxu0
        %1987 = vdwg.mxu0
        %1988 = vmatprep.subr.mxu0 0.0
        %1989 = vmatpush1.msra.mxu0 %v1815
        %1990 = vmatprep.subr.mxu0 0.0
        %1991 = vmatpush1.msra.mxu0 %v1816
        %1992 = vmatprep.subr.mxu0 0.0
        %1993 = vmatpush1.msra.mxu0 %v1817
        %1994 = vmatprep.subr.mxu0 0.0
        %1995 = vmatpush1.msra.mxu0 %v1818
        %1996 = vmatprep.subr.mxu0 0.0
        %1997 = vmatpush1.msra.mxu0 %v1819
        %1998 = vmatprep.subr.mxu0 0.0
        %1999 = vmatpush1.msra.mxu0 %v1820
        %2000 = vmatprep.subr.mxu0 0.0
        %2001 = vmatpush1.msra.mxu0 %v1821
        %2002 = vmatprep.subr.mxu0 0.0
        %2003 = vmatpush1.msra.mxu0 %v1822
        %2004 = vmatprep.subr.mxu0 0.0
        %2005 = vmatpush1.msra.mxu0 %v1823
        %2006 = vmatprep.subr.mxu0 0.0
        %2007 = vmatpush1.msra.mxu0 %v1824
        %2008 = vmatprep.subr.mxu0 0.0
        %2009 = vmatpush1.msra.mxu0 %v1825
        %2010 = vmatprep.subr.mxu0 0.0
        %2011 = vmatpush1.msra.mxu0 %v1826
        %2012 = vmatprep.subr.mxu0 0.0
        %2013 = vmatpush1.msra.mxu0 %v1827
        %2014 = vmatprep.subr.mxu0 0.0
        %2015 = vmatpush1.msra.mxu0 %v1828
        %2016 = vmatprep.subr.mxu0 0.0
        %2017 = vmatpush1.msra.mxu0 %v1829
        %2018 = vmatprep.subr.mxu0 0.0
        %2019 = vmatpush1.msra.mxu0 %v1830
        %2020 = vmatprep.subr.mxu0 0.0
        %2021 = vmatpush1.msra.mxu0 0.0
        %2022 = vmatprep.subr.mxu0 0.0
        %2023 = vmatpush1.msra.mxu0 0.0
        %2024 = vmatprep.subr.mxu0 0.0
        %2025 = vmatpush1.msra.mxu0 0.0
        %2026 = vmatprep.subr.mxu0 0.0
        %2027 = vmatpush1.msra.mxu0 0.0
        %2028 = vmatprep.subr.mxu0 0.0
        %2029 = vmatpush1.msra.mxu0 0.0
        %2030 = vmatprep.subr.mxu0 0.0
        %2031 = vmatpush1.msra.mxu0 0.0
        %2032 = vmatprep.subr.mxu0 0.0
        %2033 = vmatpush1.msra.mxu0 0.0
        %2034 = vmatprep.subr.mxu0 0.0
        %2035 = vmatpush1.msra.mxu0 0.0
        %2036 = vmatprep.subr.mxu0 0.0
        %2037 = vmatpush1.msra.mxu0 0.0
        %2038 = vmatprep.subr.mxu0 0.0
        %2039 = vmatpush1.msra.mxu0 0.0
        %2040 = vmatprep.subr.mxu0 0.0
        %2041 = vmatpush1.msra.mxu0 0.0
        %2042 = vmatprep.subr.mxu0 0.0
        %2043 = vmatpush1.msra.mxu0 0.0
        %2044 = vmatprep.subr.mxu0 0.0
        %2045 = vmatpush1.msra.mxu0 0.0
        %2046 = vmatprep.subr.mxu0 0.0
        %2047 = vmatpush1.msra.mxu0 0.0
        %2048 = vmatprep.subr.mxu0 0.0
        %2049 = vmatpush1.msra.mxu0 0.0
        %2050 = vmatprep.subr.mxu0 0.0
        %2051 = vmatpush1.msra.mxu0 0.0
        %2052 = vmatprep.mubr.f32.mxu0 0.0
        %2053 = vmatmul.mubr.f32.gmra.mrb[0].mxu0 %v1812
        %v2054 = vpop.f32.mrb[0].mxu0
        %v2055 = vadd.f32 %v1985, %v2054
        %v2056 = vpop.f32.mrb[0].mxu0
        %2057 = vdwg.mxu0
        %2058 = vmatprep.subr.mxu0 0.0
        %2059 = vmatpush1.msra.mxu0 %v1743
        %2060 = vmatprep.subr.mxu0 0.0
        %2061 = vmatpush1.msra.mxu0 %v1744
        %2062 = vmatprep.subr.mxu0 0.0
        %2063 = vmatpush1.msra.mxu0 0.0
        %2064 = vmatprep.subr.mxu0 0.0
        %2065 = vmatpush1.msra.mxu0 0.0
        %2066 = vmatprep.subr.mxu0 0.0
        %2067 = vmatpush1.msra.mxu0 0.0
        %2068 = vmatprep.subr.mxu0 0.0
        %2069 = vmatpush1.msra.mxu0 0.0
        %2070 = vmatprep.subr.mxu0 0.0
        %2071 = vmatpush1.msra.mxu0 0.0
        %2072 = vmatprep.subr.mxu0 0.0
        %2073 = vmatpush1.msra.mxu0 0.0
        %2074 = vmatprep.subr.mxu0 0.0
        %2075 = vmatpush1.msra.mxu0 0.0
        %2076 = vmatprep.subr.mxu0 0.0
        %2077 = vmatpush1.msra.mxu0 0.0
        %2078 = vmatprep.subr.mxu0 0.0
        %2079 = vmatpush1.msra.mxu0 0.0
        %2080 = vmatprep.subr.mxu0 0.0
        %2081 = vmatpush1.msra.mxu0 0.0
        %2082 = vmatprep.subr.mxu0 0.0
        %2083 = vmatpush1.msra.mxu0 0.0
        %2084 = vmatprep.subr.mxu0 0.0
        %2085 = vmatpush1.msra.mxu0 0.0
        %2086 = vmatprep.subr.mxu0 0.0
        %2087 = vmatpush1.msra.mxu0 0.0
        %2088 = vmatprep.subr.mxu0 0.0
        %2089 = vmatpush1.msra.mxu0 0.0
        %2090 = vmatprep.subr.mxu0 0.0
        %2091 = vmatpush1.msra.mxu0 0.0
        %2092 = vmatprep.subr.mxu0 0.0
        %2093 = vmatpush1.msra.mxu0 0.0
        %2094 = vmatprep.subr.mxu0 0.0
        %2095 = vmatpush1.msra.mxu0 0.0
        %2096 = vmatprep.subr.mxu0 0.0
        %2097 = vmatpush1.msra.mxu0 0.0
        %2098 = vmatprep.subr.mxu0 0.0
        %2099 = vmatpush1.msra.mxu0 0.0
        %2100 = vmatprep.subr.mxu0 0.0
        %2101 = vmatpush1.msra.mxu0 0.0
        %2102 = vmatprep.subr.mxu0 0.0
        %2103 = vmatpush1.msra.mxu0 0.0
        %2104 = vmatprep.subr.mxu0 0.0
        %2105 = vmatpush1.msra.mxu0 0.0
        %2106 = vmatprep.subr.mxu0 0.0
        %2107 = vmatpush1.msra.mxu0 0.0
        %2108 = vmatprep.subr.mxu0 0.0
        %2109 = vmatpush1.msra.mxu0 0.0
        %2110 = vmatprep.subr.mxu0 0.0
        %2111 = vmatpush1.msra.mxu0 0.0
        %2112 = vmatprep.subr.mxu0 0.0
        %2113 = vmatpush1.msra.mxu0 0.0
        %2114 = vmatprep.subr.mxu0 0.0
        %2115 = vmatpush1.msra.mxu0 0.0
        %2116 = vmatprep.subr.mxu0 0.0
        %2117 = vmatpush1.msra.mxu0 0.0
        %2118 = vmatprep.subr.mxu0 0.0
        %2119 = vmatpush1.msra.mxu0 0.0
        %2120 = vmatprep.subr.mxu0 0.0
        %2121 = vmatpush1.msra.mxu0 0.0
        %2122 = vmatprep.mubr.f32.mxu0 0.0
        %2123 = vmatmul.mubr.f32.gmra.mrb[0].mxu0 %v1388
        %v2124 = vpop.f32.mrb[0].mxu0
        %v2125 = vadd.f32 0.0, %v2124
        %v2126 = vpop.f32.mrb[0].mxu0
        %2127 = vdwg.mxu0
        %s2128 = scalar_lea.vmem [#allocation12], 256
        %v2129 = vld [vmem:[%s2128] sm:$0xff]
        %v2130 = vld [vmem:[%s2128 + $0x8] sm:$0xff]
        %v2131 = vld [vmem:[%s2128 + $0x10] sm:$0xff]
        %v2132 = vld [vmem:[%s2128 + $0x18] sm:$0xff]
        %v2133 = vld [vmem:[%s2128 + $0x20] sm:$0xff]
        %v2134 = vld [vmem:[%s2128 + $0x28] sm:$0xff]
        %v2135 = vld [vmem:[%s2128 + $0x30] sm:$0xff]
        %v2136 = vld [vmem:[%s2128 + $0x38] sm:$0xff]
        %v2137 = vld [vmem:[%s2128 + $0x40] sm:$0xff]
        %v2138 = vld [vmem:[%s2128 + $0x48] sm:$0xff]
        %v2139 = vld [vmem:[%s2128 + $0x50] sm:$0xff]
        %v2140 = vld [vmem:[%s2128 + $0x58] sm:$0xff]
        %v2141 = vld [vmem:[%s2128 + $0x60] sm:$0xff]
        %v2142 = vld [vmem:[%s2128 + $0x68] sm:$0xff]
        %v2143 = vld [vmem:[%s2128 + $0x70] sm:$0xff]
        %v2144 = vld [vmem:[%s2128 + $0x78] sm:$0xff]
        %2145 = vmatprep.subr.mxu0 0.0
        %2146 = vmatpush1.msra.mxu0 %v2129
        %2147 = vmatprep.subr.mxu0 0.0
        %2148 = vmatpush1.msra.mxu0 %v2130
        %2149 = vmatprep.subr.mxu0 0.0
        %2150 = vmatpush1.msra.mxu0 %v2131
        %2151 = vmatprep.subr.mxu0 0.0
        %2152 = vmatpush1.msra.mxu0 %v2132
        %2153 = vmatprep.subr.mxu0 0.0
        %2154 = vmatpush1.msra.mxu0 %v2133
        %2155 = vmatprep.subr.mxu0 0.0
        %2156 = vmatpush1.msra.mxu0 %v2134
        %2157 = vmatprep.subr.mxu0 0.0
        %2158 = vmatpush1.msra.mxu0 %v2135
        %2159 = vmatprep.subr.mxu0 0.0
        %2160 = vmatpush1.msra.mxu0 %v2136
        %2161 = vmatprep.subr.mxu0 0.0
        %2162 = vmatpush1.msra.mxu0 %v2137
        %2163 = vmatprep.subr.mxu0 0.0
        %2164 = vmatpush1.msra.mxu0 %v2138
        %2165 = vmatprep.subr.mxu0 0.0
        %2166 = vmatpush1.msra.mxu0 %v2139
        %2167 = vmatprep.subr.mxu0 0.0
        %2168 = vmatpush1.msra.mxu0 %v2140
        %2169 = vmatprep.subr.mxu0 0.0
        %2170 = vmatpush1.msra.mxu0 %v2141
        %2171 = vmatprep.subr.mxu0 0.0
        %2172 = vmatpush1.msra.mxu0 %v2142
        %2173 = vmatprep.subr.mxu0 0.0
        %2174 = vmatpush1.msra.mxu0 %v2143
        %2175 = vmatprep.subr.mxu0 0.0
        %2176 = vmatpush1.msra.mxu0 %v2144
        %2177 = vmatprep.subr.mxu0 0.0
        %2178 = vmatpush1.msra.mxu0 0.0
        %2179 = vmatprep.subr.mxu0 0.0
        %2180 = vmatpush1.msra.mxu0 0.0
        %2181 = vmatprep.subr.mxu0 0.0
        %2182 = vmatpush1.msra.mxu0 0.0
        %2183 = vmatprep.subr.mxu0 0.0
        %2184 = vmatpush1.msra.mxu0 0.0
        %2185 = vmatprep.subr.mxu0 0.0
        %2186 = vmatpush1.msra.mxu0 0.0
        %2187 = vmatprep.subr.mxu0 0.0
        %2188 = vmatpush1.msra.mxu0 0.0
        %2189 = vmatprep.subr.mxu0 0.0
        %2190 = vmatpush1.msra.mxu0 0.0
        %2191 = vmatprep.subr.mxu0 0.0
        %2192 = vmatpush1.msra.mxu0 0.0
        %2193 = vmatprep.subr.mxu0 0.0
        %2194 = vmatpush1.msra.mxu0 0.0
        %2195 = vmatprep.subr.mxu0 0.0
        %2196 = vmatpush1.msra.mxu0 0.0
        %2197 = vmatprep.subr.mxu0 0.0
        %2198 = vmatpush1.msra.mxu0 0.0
        %2199 = vmatprep.subr.mxu0 0.0
        %2200 = vmatpush1.msra.mxu0 0.0
        %2201 = vmatprep.subr.mxu0 0.0
        %2202 = vmatpush1.msra.mxu0 0.0
        %2203 = vmatprep.subr.mxu0 0.0
        %2204 = vmatpush1.msra.mxu0 0.0
        %2205 = vmatprep.subr.mxu0 0.0
        %2206 = vmatpush1.msra.mxu0 0.0
        %2207 = vmatprep.subr.mxu0 0.0
        %2208 = vmatpush1.msra.mxu0 0.0
        %2209 = vmatprep.mubr.f32.mxu0 0.0
        %2210 = vmatmul.mubr.f32.gmra.mrb[0].mxu0 %v2125
        %v2211 = vpop.f32.mrb[0].mxu0
        %v2212 = vadd.f32 0.0, %v2211
        %v2213 = vpop.f32.mrb[0].mxu0
        %2214 = vdwg.mxu0
        %v2215 = vadd.f32 %v2055, %v2212
        %v2216 = vld [vmem:[#allocation13] sm:$0x1]
        %v2218 = vlaneseq
        %v2219 = vshrl.u32 %v2218, 7
        %v2220 = vsub.s32 0, %v2219
        %v2221 = vrot.slane %v2216, %v2220
        %v2223 = vadd.f32 %v2215, %v2221
        %v2224 = vadd.f32 %v2223, %v1733
        %v2225 = vmax.f32 %v2224, 0.0
        %v2226 = vld [vmem:[%s9] sm:$0x7]
        %vm2227 = vcmask 56320
        %v2229 = vsel %vm2227, %v2226, 0
        %vm2231 = vcmask 1046528
        %v2233 = vsel %vm2231, %v2224, 0
        %2235 = vmatprep.subr.mxu0 0.0
        %2236 = vmatpush1.msra.mxu0 %v2233
        %2237 = vmatprep.subr.mxu0 0.0
        %2238 = vmatpush1.msra.mxu0 0.0
        %2239 = vmatprep.subr.mxu0 0.0
        %2240 = vmatpush1.msra.mxu0 0.0
        %2241 = vmatprep.subr.mxu0 0.0
        %2242 = vmatpush1.msra.mxu0 0.0
        %2243 = vmatprep.subr.mxu0 0.0
        %2244 = vmatpush1.msra.mxu0 0.0
        %2245 = vmatprep.subr.mxu0 0.0
        %2246 = vmatpush1.msra.mxu0 0.0
        %2247 = vmatprep.subr.mxu0 0.0
        %2248 = vmatpush1.msra.mxu0 0.0
        %2249 = vmatprep.subr.mxu0 0.0
        %2250 = vmatpush1.msra.mxu0 0.0
        %2251 = vmatprep.subr.mxu0 0.0
        %2252 = vmatpush1.msra.mxu0 0.0
        %2253 = vmatprep.subr.mxu0 0.0
        %2254 = vmatpush1.msra.mxu0 0.0
        %2255 = vmatprep.subr.mxu0 0.0
        %2256 = vmatpush1.msra.mxu0 0.0
        %2257 = vmatprep.subr.mxu0 0.0
        %2258 = vmatpush1.msra.mxu0 0.0
        %2259 = vmatprep.subr.mxu0 0.0
        %2260 = vmatpush1.msra.mxu0 0.0
        %2261 = vmatprep.subr.mxu0 0.0
        %2262 = vmatpush1.msra.mxu0 0.0
        %2263 = vmatprep.subr.mxu0 0.0
        %2264 = vmatpush1.msra.mxu0 0.0
        %2265 = vmatprep.subr.mxu0 0.0
        %2266 = vmatpush1.msra.mxu0 0.0
        %2267 = vmatprep.subr.mxu0 0.0
        %2268 = vmatpush1.msra.mxu0 0.0
        %2269 = vmatprep.subr.mxu0 0.0
        %2270 = vmatpush1.msra.mxu0 0.0
        %2271 = vmatprep.subr.mxu0 0.0
        %2272 = vmatpush1.msra.mxu0 0.0
        %2273 = vmatprep.subr.mxu0 0.0
        %2274 = vmatpush1.msra.mxu0 0.0
        %2275 = vmatprep.subr.mxu0 0.0
        %2276 = vmatpush1.msra.mxu0 0.0
        %2277 = vmatprep.subr.mxu0 0.0
        %2278 = vmatpush1.msra.mxu0 0.0
        %2279 = vmatprep.subr.mxu0 0.0
        %2280 = vmatpush1.msra.mxu0 0.0
        %2281 = vmatprep.subr.mxu0 0.0
        %2282 = vmatpush1.msra.mxu0 0.0
        %2283 = vmatprep.subr.mxu0 0.0
        %2284 = vmatpush1.msra.mxu0 0.0
        %2285 = vmatprep.subr.mxu0 0.0
        %2286 = vmatpush1.msra.mxu0 0.0
        %2287 = vmatprep.subr.mxu0 0.0
        %2288 = vmatpush1.msra.mxu0 0.0
        %2289 = vmatprep.subr.mxu0 0.0
        %2290 = vmatpush1.msra.mxu0 0.0
        %2291 = vmatprep.subr.mxu0 0.0
        %2292 = vmatpush1.msra.mxu0 0.0
        %2293 = vmatprep.subr.mxu0 0.0
        %2294 = vmatpush1.msra.mxu0 0.0
        %2295 = vmatprep.subr.mxu0 0.0
        %2296 = vmatpush1.msra.mxu0 0.0
        %2297 = vmatprep.subr.mxu0 0.0
        %2298 = vmatpush1.msra.mxu0 0.0
        %2299 = vmatprep.mubr.f32.mxu0 0.0
        %2300 = vmatmul.mubr.f32.gmra.mrb[0].mxu0 %v2229
        %v2301 = vpop.f32.mrb[0].mxu0
        %v2302 = vadd.f32 0.0, %v2301
        %v2303 = vpop.f32.mrb[0].mxu0
        %2304 = vdwg.mxu0
        %v2305 = vld [vmem:[#allocation15] sm:$0xff]
        %v2306 = vld [vmem:[#allocation15 + $0x8] sm:$0xff]
        %v2307 = vld [vmem:[#allocation15 + $0x10] sm:$0xff]
        %v2308 = vld [vmem:[#allocation15 + $0x18] sm:$0xff]
        %v2309 = vld [vmem:[#allocation15 + $0x20] sm:$0xff]
        %v2310 = vld [vmem:[#allocation15 + $0x28] sm:$0xff]
        %v2311 = vld [vmem:[#allocation15 + $0x30] sm:$0xff]
        %v2312 = vld [vmem:[#allocation15 + $0x38] sm:$0xff]
        %v2313 = vld [vmem:[#allocation15 + $0x40] sm:$0xff]
        %v2314 = vld [vmem:[#allocation15 + $0x48] sm:$0xff]
        %v2315 = vld [vmem:[#allocation15 + $0x50] sm:$0xff]
        %v2316 = vld [vmem:[#allocation15 + $0x58] sm:$0xff]
        %v2317 = vld [vmem:[#allocation15 + $0x60] sm:$0xff]
        %v2318 = vld [vmem:[#allocation15 + $0x68] sm:$0xff]
        %v2319 = vld [vmem:[#allocation15 + $0x70] sm:$0xff]
        %v2320 = vld [vmem:[#allocation15 + $0x78] sm:$0xff]
        %v2321 = vld [vmem:[%s10] sm:$0x7f]
        %v2323 = vsel %vm2227, %v2321, 0
        %v2326 = vsel %vm2231, %v2225, 0
        %2328 = vmatprep.subr.mxu0 0.0
        %2329 = vmatpush1.msra.mxu0 %v2326
        %2330 = vmatprep.subr.mxu0 0.0
        %2331 = vmatpush1.msra.mxu0 0.0
        %2332 = vmatprep.subr.mxu0 0.0
        %2333 = vmatpush1.msra.mxu0 0.0
        %2334 = vmatprep.subr.mxu0 0.0
        %2335 = vmatpush1.msra.mxu0 0.0
        %2336 = vmatprep.subr.mxu0 0.0
        %2337 = vmatpush1.msra.mxu0 0.0
        %2338 = vmatprep.subr.mxu0 0.0
        %2339 = vmatpush1.msra.mxu0 0.0
        %2340 = vmatprep.subr.mxu0 0.0
        %2341 = vmatpush1.msra.mxu0 0.0
        %2342 = vmatprep.subr.mxu0 0.0
        %2343 = vmatpush1.msra.mxu0 0.0
        %2344 = vmatprep.subr.mxu0 0.0
        %2345 = vmatpush1.msra.mxu0 0.0
        %2346 = vmatprep.subr.mxu0 0.0
        %2347 = vmatpush1.msra.mxu0 0.0
        %2348 = vmatprep.subr.mxu0 0.0
        %2349 = vmatpush1.msra.mxu0 0.0
        %2350 = vmatprep.subr.mxu0 0.0
        %2351 = vmatpush1.msra.mxu0 0.0
        %2352 = vmatprep.subr.mxu0 0.0
        %2353 = vmatpush1.msra.mxu0 0.0
        %2354 = vmatprep.subr.mxu0 0.0
        %2355 = vmatpush1.msra.mxu0 0.0
        %2356 = vmatprep.subr.mxu0 0.0
        %2357 = vmatpush1.msra.mxu0 0.0
        %2358 = vmatprep.subr.mxu0 0.0
        %2359 = vmatpush1.msra.mxu0 0.0
        %2360 = vmatprep.subr.mxu0 0.0
        %2361 = vmatpush1.msra.mxu0 0.0
        %2362 = vmatprep.subr.mxu0 0.0
        %2363 = vmatpush1.msra.mxu0 0.0
        %2364 = vmatprep.subr.mxu0 0.0
        %2365 = vmatpush1.msra.mxu0 0.0
        %2366 = vmatprep.subr.mxu0 0.0
        %2367 = vmatpush1.msra.mxu0 0.0
        %2368 = vmatprep.subr.mxu0 0.0
        %2369 = vmatpush1.msra.mxu0 0.0
        %2370 = vmatprep.subr.mxu0 0.0
        %2371 = vmatpush1.msra.mxu0 0.0
        %2372 = vmatprep.subr.mxu0 0.0
        %2373 = vmatpush1.msra.mxu0 0.0
        %2374 = vmatprep.subr.mxu0 0.0
        %2375 = vmatpush1.msra.mxu0 0.0
        %2376 = vmatprep.subr.mxu0 0.0
        %2377 = vmatpush1.msra.mxu0 0.0
        %2378 = vmatprep.subr.mxu0 0.0
        %2379 = vmatpush1.msra.mxu0 0.0
        %2380 = vmatprep.subr.mxu0 0.0
        %2381 = vmatpush1.msra.mxu0 0.0
        %2382 = vmatprep.subr.mxu0 0.0
        %2383 = vmatpush1.msra.mxu0 0.0
        %2384 = vmatprep.subr.mxu0 0.0
        %2385 = vmatpush1.msra.mxu0 0.0
        %2386 = vmatprep.subr.mxu0 0.0
        %2387 = vmatpush1.msra.mxu0 0.0
        %2388 = vmatprep.subr.mxu0 0.0
        %2389 = vmatpush1.msra.mxu0 0.0
        %2390 = vmatprep.subr.mxu0 0.0
        %2391 = vmatpush1.msra.mxu0 0.0
        %2392 = vmatprep.mubr.f32.mxu0 0.0
        %2393 = vmatmul.mubr.f32.gmra.mrb[0].mxu0 %v2323
        %v2394 = vpop.f32.mrb[0].mxu0
        %v2395 = vadd.f32 0.0, %v2394
        %v2396 = vpop.f32.mrb[0].mxu0
        %2397 = vdwg.mxu0
        %v2398 = vld [vmem:[#allocation16] sm:$0xff]
        %v2399 = vld [vmem:[#allocation16 + $0x8] sm:$0xff]
        %v2400 = vld [vmem:[#allocation16 + $0x10] sm:$0xff]
        %v2401 = vld [vmem:[#allocation16 + $0x18] sm:$0xff]
        %v2402 = vld [vmem:[#allocation16 + $0x20] sm:$0xff]
        %v2403 = vld [vmem:[#allocation16 + $0x28] sm:$0xff]
        %v2404 = vld [vmem:[#allocation16 + $0x30] sm:$0xff]
        %v2405 = vld [vmem:[#allocation16 + $0x38] sm:$0xff]
        %v2406 = vld [vmem:[#allocation16 + $0x40] sm:$0xff]
        %v2407 = vld [vmem:[#allocation16 + $0x48] sm:$0xff]
        %v2408 = vld [vmem:[#allocation16 + $0x50] sm:$0xff]
        %v2409 = vld [vmem:[#allocation16 + $0x58] sm:$0xff]
        %v2410 = vld [vmem:[#allocation16 + $0x60] sm:$0xff]
        %v2411 = vld [vmem:[#allocation16 + $0x68] sm:$0xff]
        %v2412 = vld [vmem:[#allocation16 + $0x70] sm:$0xff]
        %v2413 = vld [vmem:[#allocation16 + $0x78] sm:$0xff]
        %s2414 = scalar_lea.vmem %s9, 4
        %v2415 = vld [vmem:[%s2414] sm:$0x7]
        %v2417 = vsel %vm2227, %v2415, 0
        %2419 = vmatprep.subr.mxu0 0.0
        %2420 = vmatpush1.msra.mxu0 %v2233
        %2421 = vmatprep.subr.mxu0 0.0
        %2422 = vmatpush1.msra.mxu0 0.0
        %2423 = vmatprep.subr.mxu0 0.0
        %2424 = vmatpush1.msra.mxu0 0.0
        %2425 = vmatprep.subr.mxu0 0.0
        %2426 = vmatpush1.msra.mxu0 0.0
        %2427 = vmatprep.subr.mxu0 0.0
        %2428 = vmatpush1.msra.mxu0 0.0
        %2429 = vmatprep.subr.mxu0 0.0
        %2430 = vmatpush1.msra.mxu0 0.0
        %2431 = vmatprep.subr.mxu0 0.0
        %2432 = vmatpush1.msra.mxu0 0.0
        %2433 = vmatprep.subr.mxu0 0.0
        %2434 = vmatpush1.msra.mxu0 0.0
        %2435 = vmatprep.subr.mxu0 0.0
        %2436 = vmatpush1.msra.mxu0 0.0
        %2437 = vmatprep.subr.mxu0 0.0
        %2438 = vmatpush1.msra.mxu0 0.0
        %2439 = vmatprep.subr.mxu0 0.0
        %2440 = vmatpush1.msra.mxu0 0.0
        %2441 = vmatprep.subr.mxu0 0.0
        %2442 = vmatpush1.msra.mxu0 0.0
        %2443 = vmatprep.subr.mxu0 0.0
        %2444 = vmatpush1.msra.mxu0 0.0
        %2445 = vmatprep.subr.mxu0 0.0
        %2446 = vmatpush1.msra.mxu0 0.0
        %2447 = vmatprep.subr.mxu0 0.0
        %2448 = vmatpush1.msra.mxu0 0.0
        %2449 = vmatprep.subr.mxu0 0.0
        %2450 = vmatpush1.msra.mxu0 0.0
        %2451 = vmatprep.subr.mxu0 0.0
        %2452 = vmatpush1.msra.mxu0 0.0
        %2453 = vmatprep.subr.mxu0 0.0
        %2454 = vmatpush1.msra.mxu0 0.0
        %2455 = vmatprep.subr.mxu0 0.0
        %2456 = vmatpush1.msra.mxu0 0.0
        %2457 = vmatprep.subr.mxu0 0.0
        %2458 = vmatpush1.msra.mxu0 0.0
        %2459 = vmatprep.subr.mxu0 0.0
        %2460 = vmatpush1.msra.mxu0 0.0
        %2461 = vmatprep.subr.mxu0 0.0
        %2462 = vmatpush1.msra.mxu0 0.0
        %2463 = vmatprep.subr.mxu0 0.0
        %2464 = vmatpush1.msra.mxu0 0.0
        %2465 = vmatprep.subr.mxu0 0.0
        %2466 = vmatpush1.msra.mxu0 0.0
        %2467 = vmatprep.subr.mxu0 0.0
        %2468 = vmatpush1.msra.mxu0 0.0
        %2469 = vmatprep.subr.mxu0 0.0
        %2470 = vmatpush1.msra.mxu0 0.0
        %2471 = vmatprep.subr.mxu0 0.0
        %2472 = vmatpush1.msra.mxu0 0.0
        %2473 = vmatprep.subr.mxu0 0.0
        %2474 = vmatpush1.msra.mxu0 0.0
        %2475 = vmatprep.subr.mxu0 0.0
        %2476 = vmatpush1.msra.mxu0 0.0
        %2477 = vmatprep.subr.mxu0 0.0
        %2478 = vmatpush1.msra.mxu0 0.0
        %2479 = vmatprep.subr.mxu0 0.0
        %2480 = vmatpush1.msra.mxu0 0.0
        %2481 = vmatprep.subr.mxu0 0.0
        %2482 = vmatpush1.msra.mxu0 0.0
        %2483 = vmatprep.mubr.f32.mxu0 0.0
        %2484 = vmatmul.mubr.f32.gmra.mrb[0].mxu0 %v2417
        %v2485 = vpop.f32.mrb[0].mxu0
        %v2486 = vadd.f32 0.0, %v2485
        %v2487 = vpop.f32.mrb[0].mxu0
        %2488 = vdwg.mxu0
        %s2489 = scalar_lea.vmem [#allocation15], 128
        %v2490 = vld [vmem:[%s2489] sm:$0xff]
        %v2491 = vld [vmem:[%s2489 + $0x8] sm:$0xff]
        %v2492 = vld [vmem:[%s2489 + $0x10] sm:$0xff]
        %v2493 = vld [vmem:[%s2489 + $0x18] sm:$0xff]
        %v2494 = vld [vmem:[%s2489 + $0x20] sm:$0xff]
        %v2495 = vld [vmem:[%s2489 + $0x28] sm:$0xff]
        %v2496 = vld [vmem:[%s2489 + $0x30] sm:$0xff]
        %v2497 = vld [vmem:[%s2489 + $0x38] sm:$0xff]
        %v2498 = vld [vmem:[%s2489 + $0x40] sm:$0xff]
        %v2499 = vld [vmem:[%s2489 + $0x48] sm:$0xff]
        %v2500 = vld [vmem:[%s2489 + $0x50] sm:$0xff]
        %v2501 = vld [vmem:[%s2489 + $0x58] sm:$0xff]
        %v2502 = vld [vmem:[%s2489 + $0x60] sm:$0xff]
        %v2503 = vld [vmem:[%s2489 + $0x68] sm:$0xff]
        %v2504 = vld [vmem:[%s2489 + $0x70] sm:$0xff]
        %v2505 = vld [vmem:[%s2489 + $0x78] sm:$0xff]
        %2506 = vmatprep.subr.mxu0 0.0
        %2507 = vmatpush1.msra.mxu0 %v2490
        %2508 = vmatprep.subr.mxu0 0.0
        %2509 = vmatpush1.msra.mxu0 %v2491
        %2510 = vmatprep.subr.mxu0 0.0
        %2511 = vmatpush1.msra.mxu0 %v2492
        %2512 = vmatprep.subr.mxu0 0.0
        %2513 = vmatpush1.msra.mxu0 %v2493
        %2514 = vmatprep.subr.mxu0 0.0
        %2515 = vmatpush1.msra.mxu0 %v2494
        %2516 = vmatprep.subr.mxu0 0.0
        %2517 = vmatpush1.msra.mxu0 %v2495
        %2518 = vmatprep.subr.mxu0 0.0
        %2519 = vmatpush1.msra.mxu0 %v2496
        %2520 = vmatprep.subr.mxu0 0.0
        %2521 = vmatpush1.msra.mxu0 %v2497
        %2522 = vmatprep.subr.mxu0 0.0
        %2523 = vmatpush1.msra.mxu0 %v2498
        %2524 = vmatprep.subr.mxu0 0.0
        %2525 = vmatpush1.msra.mxu0 %v2499
        %2526 = vmatprep.subr.mxu0 0.0
        %2527 = vmatpush1.msra.mxu0 %v2500
        %2528 = vmatprep.subr.mxu0 0.0
        %2529 = vmatpush1.msra.mxu0 %v2501
        %2530 = vmatprep.subr.mxu0 0.0
        %2531 = vmatpush1.msra.mxu0 %v2502
        %2532 = vmatprep.subr.mxu0 0.0
        %2533 = vmatpush1.msra.mxu0 %v2503
        %2534 = vmatprep.subr.mxu0 0.0
        %2535 = vmatpush1.msra.mxu0 %v2504
        %2536 = vmatprep.subr.mxu0 0.0
        %2537 = vmatpush1.msra.mxu0 %v2505
        %2538 = vmatprep.subr.mxu0 0.0
        %2539 = vmatpush1.msra.mxu0 0.0
        %2540 = vmatprep.subr.mxu0 0.0
        %2541 = vmatpush1.msra.mxu0 0.0
        %2542 = vmatprep.subr.mxu0 0.0
        %2543 = vmatpush1.msra.mxu0 0.0
        %2544 = vmatprep.subr.mxu0 0.0
        %2545 = vmatpush1.msra.mxu0 0.0
        %2546 = vmatprep.subr.mxu0 0.0
        %2547 = vmatpush1.msra.mxu0 0.0
        %2548 = vmatprep.subr.mxu0 0.0
        %2549 = vmatpush1.msra.mxu0 0.0
        %2550 = vmatprep.subr.mxu0 0.0
        %2551 = vmatpush1.msra.mxu0 0.0
        %2552 = vmatprep.subr.mxu0 0.0
        %2553 = vmatpush1.msra.mxu0 0.0
        %2554 = vmatprep.subr.mxu0 0.0
        %2555 = vmatpush1.msra.mxu0 0.0
        %2556 = vmatprep.subr.mxu0 0.0
        %2557 = vmatpush1.msra.mxu0 0.0
        %2558 = vmatprep.subr.mxu0 0.0
        %2559 = vmatpush1.msra.mxu0 0.0
        %2560 = vmatprep.subr.mxu0 0.0
        %2561 = vmatpush1.msra.mxu0 0.0
        %2562 = vmatprep.subr.mxu0 0.0
        %2563 = vmatpush1.msra.mxu0 0.0
        %2564 = vmatprep.subr.mxu0 0.0
        %2565 = vmatpush1.msra.mxu0 0.0
        %2566 = vmatprep.subr.mxu0 0.0
        %2567 = vmatpush1.msra.mxu0 0.0
        %2568 = vmatprep.subr.mxu0 0.0
        %2569 = vmatpush1.msra.mxu0 0.0
        %2570 = vmatprep.mubr.f32.mxu0 0.0
        %2571 = vmatmul.mubr.f32.gmra.mrb[0].mxu0 %v2486
        %v2572 = vpop.f32.mrb[0].mxu0
        %v2573 = vadd.f32 0.0, %v2572
        %v2574 = vpop.f32.mrb[0].mxu0
        %2575 = vdwg.mxu0
        %2576 = vmatprep.subr.mxu0 0.0
        %2577 = vmatpush1.msra.mxu0 %v2305
        %2578 = vmatprep.subr.mxu0 0.0
        %2579 = vmatpush1.msra.mxu0 %v2306
        %2580 = vmatprep.subr.mxu0 0.0
        %2581 = vmatpush1.msra.mxu0 %v2307
        %2582 = vmatprep.subr.mxu0 0.0
        %2583 = vmatpush1.msra.mxu0 %v2308
        %2584 = vmatprep.subr.mxu0 0.0
        %2585 = vmatpush1.msra.mxu0 %v2309
        %2586 = vmatprep.subr.mxu0 0.0
        %2587 = vmatpush1.msra.mxu0 %v2310
        %2588 = vmatprep.subr.mxu0 0.0
        %2589 = vmatpush1.msra.mxu0 %v2311
        %2590 = vmatprep.subr.mxu0 0.0
        %2591 = vmatpush1.msra.mxu0 %v2312
        %2592 = vmatprep.subr.mxu0 0.0
        %2593 = vmatpush1.msra.mxu0 %v2313
        %2594 = vmatprep.subr.mxu0 0.0
        %2595 = vmatpush1.msra.mxu0 %v2314
        %2596 = vmatprep.subr.mxu0 0.0
        %2597 = vmatpush1.msra.mxu0 %v2315
        %2598 = vmatprep.subr.mxu0 0.0
        %2599 = vmatpush1.msra.mxu0 %v2316
        %2600 = vmatprep.subr.mxu0 0.0
        %2601 = vmatpush1.msra.mxu0 %v2317
        %2602 = vmatprep.subr.mxu0 0.0
        %2603 = vmatpush1.msra.mxu0 %v2318
        %2604 = vmatprep.subr.mxu0 0.0
        %2605 = vmatpush1.msra.mxu0 %v2319
        %2606 = vmatprep.subr.mxu0 0.0
        %2607 = vmatpush1.msra.mxu0 %v2320
        %2608 = vmatprep.subr.mxu0 0.0
        %2609 = vmatpush1.msra.mxu0 0.0
        %2610 = vmatprep.subr.mxu0 0.0
        %2611 = vmatpush1.msra.mxu0 0.0
        %2612 = vmatprep.subr.mxu0 0.0
        %2613 = vmatpush1.msra.mxu0 0.0
        %2614 = vmatprep.subr.mxu0 0.0
        %2615 = vmatpush1.msra.mxu0 0.0
        %2616 = vmatprep.subr.mxu0 0.0
        %2617 = vmatpush1.msra.mxu0 0.0
        %2618 = vmatprep.subr.mxu0 0.0
        %2619 = vmatpush1.msra.mxu0 0.0
        %2620 = vmatprep.subr.mxu0 0.0
        %2621 = vmatpush1.msra.mxu0 0.0
        %2622 = vmatprep.subr.mxu0 0.0
        %2623 = vmatpush1.msra.mxu0 0.0
        %2624 = vmatprep.subr.mxu0 0.0
        %2625 = vmatpush1.msra.mxu0 0.0
        %2626 = vmatprep.subr.mxu0 0.0
        %2627 = vmatpush1.msra.mxu0 0.0
        %2628 = vmatprep.subr.mxu0 0.0
        %2629 = vmatpush1.msra.mxu0 0.0
        %2630 = vmatprep.subr.mxu0 0.0
        %2631 = vmatpush1.msra.mxu0 0.0
        %2632 = vmatprep.subr.mxu0 0.0
        %2633 = vmatpush1.msra.mxu0 0.0
        %2634 = vmatprep.subr.mxu0 0.0
        %2635 = vmatpush1.msra.mxu0 0.0
        %2636 = vmatprep.subr.mxu0 0.0
        %2637 = vmatpush1.msra.mxu0 0.0
        %2638 = vmatprep.subr.mxu0 0.0
        %2639 = vmatpush1.msra.mxu0 0.0
        %2640 = vmatprep.mubr.f32.mxu0 0.0
        %2641 = vmatmul.mubr.f32.gmra.mrb[0].mxu0 %v2302
        %v2642 = vpop.f32.mrb[0].mxu0
        %v2643 = vadd.f32 %v2573, %v2642
        %v2644 = vpop.f32.mrb[0].mxu0
        %2645 = vdwg.mxu0
        %s2646 = scalar_lea.vmem %s10, 8
        %v2647 = vld [vmem:[%s2646] sm:$0x7f]
        %v2649 = vsel %vm2227, %v2647, 0
        %2651 = vmatprep.subr.mxu0 0.0
        %2652 = vmatpush1.msra.mxu0 %v2326
        %2653 = vmatprep.subr.mxu0 0.0
        %2654 = vmatpush1.msra.mxu0 0.0
        %2655 = vmatprep.subr.mxu0 0.0
        %2656 = vmatpush1.msra.mxu0 0.0
        %2657 = vmatprep.subr.mxu0 0.0
        %2658 = vmatpush1.msra.mxu0 0.0
        %2659 = vmatprep.subr.mxu0 0.0
        %2660 = vmatpush1.msra.mxu0 0.0
        %2661 = vmatprep.subr.mxu0 0.0
        %2662 = vmatpush1.msra.mxu0 0.0
        %2663 = vmatprep.subr.mxu0 0.0
        %2664 = vmatpush1.msra.mxu0 0.0
        %2665 = vmatprep.subr.mxu0 0.0
        %2666 = vmatpush1.msra.mxu0 0.0
        %2667 = vmatprep.subr.mxu0 0.0
        %2668 = vmatpush1.msra.mxu0 0.0
        %2669 = vmatprep.subr.mxu0 0.0
        %2670 = vmatpush1.msra.mxu0 0.0
        %2671 = vmatprep.subr.mxu0 0.0
        %2672 = vmatpush1.msra.mxu0 0.0
        %2673 = vmatprep.subr.mxu0 0.0
        %2674 = vmatpush1.msra.mxu0 0.0
        %2675 = vmatprep.subr.mxu0 0.0
        %2676 = vmatpush1.msra.mxu0 0.0
        %2677 = vmatprep.subr.mxu0 0.0
        %2678 = vmatpush1.msra.mxu0 0.0
        %2679 = vmatprep.subr.mxu0 0.0
        %2680 = vmatpush1.msra.mxu0 0.0
        %2681 = vmatprep.subr.mxu0 0.0
        %2682 = vmatpush1.msra.mxu0 0.0
        %2683 = vmatprep.subr.mxu0 0.0
        %2684 = vmatpush1.msra.mxu0 0.0
        %2685 = vmatprep.subr.mxu0 0.0
        %2686 = vmatpush1.msra.mxu0 0.0
        %2687 = vmatprep.subr.mxu0 0.0
        %2688 = vmatpush1.msra.mxu0 0.0
        %2689 = vmatprep.subr.mxu0 0.0
        %2690 = vmatpush1.msra.mxu0 0.0
        %2691 = vmatprep.subr.mxu0 0.0
        %2692 = vmatpush1.msra.mxu0 0.0
        %2693 = vmatprep.subr.mxu0 0.0
        %2694 = vmatpush1.msra.mxu0 0.0
        %2695 = vmatprep.subr.mxu0 0.0
        %2696 = vmatpush1.msra.mxu0 0.0
        %2697 = vmatprep.subr.mxu0 0.0
        %2698 = vmatpush1.msra.mxu0 0.0
        %2699 = vmatprep.subr.mxu0 0.0
        %2700 = vmatpush1.msra.mxu0 0.0
        %2701 = vmatprep.subr.mxu0 0.0
        %2702 = vmatpush1.msra.mxu0 0.0
        %2703 = vmatprep.subr.mxu0 0.0
        %2704 = vmatpush1.msra.mxu0 0.0
        %2705 = vmatprep.subr.mxu0 0.0
        %2706 = vmatpush1.msra.mxu0 0.0
        %2707 = vmatprep.subr.mxu0 0.0
        %2708 = vmatpush1.msra.mxu0 0.0
        %2709 = vmatprep.subr.mxu0 0.0
        %2710 = vmatpush1.msra.mxu0 0.0
        %2711 = vmatprep.subr.mxu0 0.0
        %2712 = vmatpush1.msra.mxu0 0.0
        %2713 = vmatprep.subr.mxu0 0.0
        %2714 = vmatpush1.msra.mxu0 0.0
        %2715 = vmatprep.mubr.f32.mxu0 0.0
        %2716 = vmatmul.mubr.f32.gmra.mrb[0].mxu0 %v2649
        %v2717 = vpop.f32.mrb[0].mxu0
        %v2718 = vadd.f32 0.0, %v2717
        %v2719 = vpop.f32.mrb[0].mxu0
        %2720 = vdwg.mxu0
        %s2721 = scalar_lea.vmem [#allocation16], 128
        %v2722 = vld [vmem:[%s2721] sm:$0xff]
        %v2723 = vld [vmem:[%s2721 + $0x8] sm:$0xff]
        %v2724 = vld [vmem:[%s2721 + $0x10] sm:$0xff]
        %v2725 = vld [vmem:[%s2721 + $0x18] sm:$0xff]
        %v2726 = vld [vmem:[%s2721 + $0x20] sm:$0xff]
        %v2727 = vld [vmem:[%s2721 + $0x28] sm:$0xff]
        %v2728 = vld [vmem:[%s2721 + $0x30] sm:$0xff]
        %v2729 = vld [vmem:[%s2721 + $0x38] sm:$0xff]
        %v2730 = vld [vmem:[%s2721 + $0x40] sm:$0xff]
        %v2731 = vld [vmem:[%s2721 + $0x48] sm:$0xff]
        %v2732 = vld [vmem:[%s2721 + $0x50] sm:$0xff]
        %v2733 = vld [vmem:[%s2721 + $0x58] sm:$0xff]
        %v2734 = vld [vmem:[%s2721 + $0x60] sm:$0xff]
        %v2735 = vld [vmem:[%s2721 + $0x68] sm:$0xff]
        %v2736 = vld [vmem:[%s2721 + $0x70] sm:$0xff]
        %v2737 = vld [vmem:[%s2721 + $0x78] sm:$0xff]
        %2738 = vmatprep.subr.mxu0 0.0
        %2739 = vmatpush1.msra.mxu0 %v2722
        %2740 = vmatprep.subr.mxu0 0.0
        %2741 = vmatpush1.msra.mxu0 %v2723
        %2742 = vmatprep.subr.mxu0 0.0
        %2743 = vmatpush1.msra.mxu0 %v2724
        %2744 = vmatprep.subr.mxu0 0.0
        %2745 = vmatpush1.msra.mxu0 %v2725
        %2746 = vmatprep.subr.mxu0 0.0
        %2747 = vmatpush1.msra.mxu0 %v2726
        %2748 = vmatprep.subr.mxu0 0.0
        %2749 = vmatpush1.msra.mxu0 %v2727
        %2750 = vmatprep.subr.mxu0 0.0
        %2751 = vmatpush1.msra.mxu0 %v2728
        %2752 = vmatprep.subr.mxu0 0.0
        %2753 = vmatpush1.msra.mxu0 %v2729
        %2754 = vmatprep.subr.mxu0 0.0
        %2755 = vmatpush1.msra.mxu0 %v2730
        %2756 = vmatprep.subr.mxu0 0.0
        %2757 = vmatpush1.msra.mxu0 %v2731
        %2758 = vmatprep.subr.mxu0 0.0
        %2759 = vmatpush1.msra.mxu0 %v2732
        %2760 = vmatprep.subr.mxu0 0.0
        %2761 = vmatpush1.msra.mxu0 %v2733
        %2762 = vmatprep.subr.mxu0 0.0
        %2763 = vmatpush1.msra.mxu0 %v2734
        %2764 = vmatprep.subr.mxu0 0.0
        %2765 = vmatpush1.msra.mxu0 %v2735
        %2766 = vmatprep.subr.mxu0 0.0
        %2767 = vmatpush1.msra.mxu0 %v2736
        %2768 = vmatprep.subr.mxu0 0.0
        %2769 = vmatpush1.msra.mxu0 %v2737
        %2770 = vmatprep.subr.mxu0 0.0
        %2771 = vmatpush1.msra.mxu0 0.0
        %2772 = vmatprep.subr.mxu0 0.0
        %2773 = vmatpush1.msra.mxu0 0.0
        %2774 = vmatprep.subr.mxu0 0.0
        %2775 = vmatpush1.msra.mxu0 0.0
        %2776 = vmatprep.subr.mxu0 0.0
        %2777 = vmatpush1.msra.mxu0 0.0
        %2778 = vmatprep.subr.mxu0 0.0
        %2779 = vmatpush1.msra.mxu0 0.0
        %2780 = vmatprep.subr.mxu0 0.0
        %2781 = vmatpush1.msra.mxu0 0.0
        %2782 = vmatprep.subr.mxu0 0.0
        %2783 = vmatpush1.msra.mxu0 0.0
        %2784 = vmatprep.subr.mxu0 0.0
        %2785 = vmatpush1.msra.mxu0 0.0
        %2786 = vmatprep.subr.mxu0 0.0
        %2787 = vmatpush1.msra.mxu0 0.0
        %2788 = vmatprep.subr.mxu0 0.0
        %2789 = vmatpush1.msra.mxu0 0.0
        %2790 = vmatprep.subr.mxu0 0.0
        %2791 = vmatpush1.msra.mxu0 0.0
        %2792 = vmatprep.subr.mxu0 0.0
        %2793 = vmatpush1.msra.mxu0 0.0
        %2794 = vmatprep.subr.mxu0 0.0
        %2795 = vmatpush1.msra.mxu0 0.0
        %2796 = vmatprep.subr.mxu0 0.0
        %2797 = vmatpush1.msra.mxu0 0.0
        %2798 = vmatprep.subr.mxu0 0.0
        %2799 = vmatpush1.msra.mxu0 0.0
        %2800 = vmatprep.subr.mxu0 0.0
        %2801 = vmatpush1.msra.mxu0 0.0
        %2802 = vmatprep.mubr.f32.mxu0 0.0
        %2803 = vmatmul.mubr.f32.gmra.mrb[0].mxu0 %v2718
        %v2804 = vpop.f32.mrb[0].mxu0
        %v2805 = vadd.f32 0.0, %v2804
        %v2806 = vpop.f32.mrb[0].mxu0
        %2807 = vdwg.mxu0
        %2808 = vmatprep.subr.mxu0 0.0
        %2809 = vmatpush1.msra.mxu0 %v2398
        %2810 = vmatprep.subr.mxu0 0.0
        %2811 = vmatpush1.msra.mxu0 %v2399
        %2812 = vmatprep.subr.mxu0 0.0
        %2813 = vmatpush1.msra.mxu0 %v2400
        %2814 = vmatprep.subr.mxu0 0.0
        %2815 = vmatpush1.msra.mxu0 %v2401
        %2816 = vmatprep.subr.mxu0 0.0
        %2817 = vmatpush1.msra.mxu0 %v2402
        %2818 = vmatprep.subr.mxu0 0.0
        %2819 = vmatpush1.msra.mxu0 %v2403
        %2820 = vmatprep.subr.mxu0 0.0
        %2821 = vmatpush1.msra.mxu0 %v2404
        %2822 = vmatprep.subr.mxu0 0.0
        %2823 = vmatpush1.msra.mxu0 %v2405
        %2824 = vmatprep.subr.mxu0 0.0
        %2825 = vmatpush1.msra.mxu0 %v2406
        %2826 = vmatprep.subr.mxu0 0.0
        %2827 = vmatpush1.msra.mxu0 %v2407
        %2828 = vmatprep.subr.mxu0 0.0
        %2829 = vmatpush1.msra.mxu0 %v2408
        %2830 = vmatprep.subr.mxu0 0.0
        %2831 = vmatpush1.msra.mxu0 %v2409
        %2832 = vmatprep.subr.mxu0 0.0
        %2833 = vmatpush1.msra.mxu0 %v2410
        %2834 = vmatprep.subr.mxu0 0.0
        %2835 = vmatpush1.msra.mxu0 %v2411
        %2836 = vmatprep.subr.mxu0 0.0
        %2837 = vmatpush1.msra.mxu0 %v2412
        %2838 = vmatprep.subr.mxu0 0.0
        %2839 = vmatpush1.msra.mxu0 %v2413
        %2840 = vmatprep.subr.mxu0 0.0
        %2841 = vmatpush1.msra.mxu0 0.0
        %2842 = vmatprep.subr.mxu0 0.0
        %2843 = vmatpush1.msra.mxu0 0.0
        %2844 = vmatprep.subr.mxu0 0.0
        %2845 = vmatpush1.msra.mxu0 0.0
        %2846 = vmatprep.subr.mxu0 0.0
        %2847 = vmatpush1.msra.mxu0 0.0
        %2848 = vmatprep.subr.mxu0 0.0
        %2849 = vmatpush1.msra.mxu0 0.0
        %2850 = vmatprep.subr.mxu0 0.0
        %2851 = vmatpush1.msra.mxu0 0.0
        %2852 = vmatprep.subr.mxu0 0.0
        %2853 = vmatpush1.msra.mxu0 0.0
        %2854 = vmatprep.subr.mxu0 0.0
        %2855 = vmatpush1.msra.mxu0 0.0
        %2856 = vmatprep.subr.mxu0 0.0
        %2857 = vmatpush1.msra.mxu0 0.0
        %2858 = vmatprep.subr.mxu0 0.0
        %2859 = vmatpush1.msra.mxu0 0.0
        %2860 = vmatprep.subr.mxu0 0.0
        %2861 = vmatpush1.msra.mxu0 0.0
        %2862 = vmatprep.subr.mxu0 0.0
        %2863 = vmatpush1.msra.mxu0 0.0
        %2864 = vmatprep.subr.mxu0 0.0
        %2865 = vmatpush1.msra.mxu0 0.0
        %2866 = vmatprep.subr.mxu0 0.0
        %2867 = vmatpush1.msra.mxu0 0.0
        %2868 = vmatprep.subr.mxu0 0.0
        %2869 = vmatpush1.msra.mxu0 0.0
        %2870 = vmatprep.subr.mxu0 0.0
        %2871 = vmatpush1.msra.mxu0 0.0
        %2872 = vmatprep.mubr.f32.mxu0 0.0
        %2873 = vmatmul.mubr.f32.gmra.mrb[0].mxu0 %v2395
        %v2874 = vpop.f32.mrb[0].mxu0
        %v2875 = vadd.f32 %v2805, %v2874
        %v2876 = vpop.f32.mrb[0].mxu0
        %2877 = vdwg.mxu0
        %s2878 = scalar_lea.vmem %s9, 8
        %v2879 = vld [vmem:[%s2878] sm:$0x7]
        %v2881 = vsel %vm2227, %v2879, 0
        %2883 = vmatprep.subr.mxu0 0.0
        %2884 = vmatpush1.msra.mxu0 %v2233
        %2885 = vmatprep.subr.mxu0 0.0
        %2886 = vmatpush1.msra.mxu0 0.0
        %2887 = vmatprep.subr.mxu0 0.0
        %2888 = vmatpush1.msra.mxu0 0.0
        %2889 = vmatprep.subr.mxu0 0.0
        %2890 = vmatpush1.msra.mxu0 0.0
        %2891 = vmatprep.subr.mxu0 0.0
        %2892 = vmatpush1.msra.mxu0 0.0
        %2893 = vmatprep.subr.mxu0 0.0
        %2894 = vmatpush1.msra.mxu0 0.0
        %2895 = vmatprep.subr.mxu0 0.0
        %2896 = vmatpush1.msra.mxu0 0.0
        %2897 = vmatprep.subr.mxu0 0.0
        %2898 = vmatpush1.msra.mxu0 0.0
        %2899 = vmatprep.subr.mxu0 0.0
        %2900 = vmatpush1.msra.mxu0 0.0
        %2901 = vmatprep.subr.mxu0 0.0
        %2902 = vmatpush1.msra.mxu0 0.0
        %2903 = vmatprep.subr.mxu0 0.0
        %2904 = vmatpush1.msra.mxu0 0.0
        %2905 = vmatprep.subr.mxu0 0.0
        %2906 = vmatpush1.msra.mxu0 0.0
        %2907 = vmatprep.subr.mxu0 0.0
        %2908 = vmatpush1.msra.mxu0 0.0
        %2909 = vmatprep.subr.mxu0 0.0
        %2910 = vmatpush1.msra.mxu0 0.0
        %2911 = vmatprep.subr.mxu0 0.0
        %2912 = vmatpush1.msra.mxu0 0.0
        %2913 = vmatprep.subr.mxu0 0.0
        %2914 = vmatpush1.msra.mxu0 0.0
        %2915 = vmatprep.subr.mxu0 0.0
        %2916 = vmatpush1.msra.mxu0 0.0
        %2917 = vmatprep.subr.mxu0 0.0
        %2918 = vmatpush1.msra.mxu0 0.0
        %2919 = vmatprep.subr.mxu0 0.0
        %2920 = vmatpush1.msra.mxu0 0.0
        %2921 = vmatprep.subr.mxu0 0.0
        %2922 = vmatpush1.msra.mxu0 0.0
        %2923 = vmatprep.subr.mxu0 0.0
        %2924 = vmatpush1.msra.mxu0 0.0
        %2925 = vmatprep.subr.mxu0 0.0
        %2926 = vmatpush1.msra.mxu0 0.0
        %2927 = vmatprep.subr.mxu0 0.0
        %2928 = vmatpush1.msra.mxu0 0.0
        %2929 = vmatprep.subr.mxu0 0.0
        %2930 = vmatpush1.msra.mxu0 0.0
        %2931 = vmatprep.subr.mxu0 0.0
        %2932 = vmatpush1.msra.mxu0 0.0
        %2933 = vmatprep.subr.mxu0 0.0
        %2934 = vmatpush1.msra.mxu0 0.0
        %2935 = vmatprep.subr.mxu0 0.0
        %2936 = vmatpush1.msra.mxu0 0.0
        %2937 = vmatprep.subr.mxu0 0.0
        %2938 = vmatpush1.msra.mxu0 0.0
        %2939 = vmatprep.subr.mxu0 0.0
        %2940 = vmatpush1.msra.mxu0 0.0
        %2941 = vmatprep.subr.mxu0 0.0
        %2942 = vmatpush1.msra.mxu0 0.0
        %2943 = vmatprep.subr.mxu0 0.0
        %2944 = vmatpush1.msra.mxu0 0.0
        %2945 = vmatprep.subr.mxu0 0.0
        %2946 = vmatpush1.msra.mxu0 0.0
        %2947 = vmatprep.mubr.f32.mxu0 0.0
        %2948 = vmatmul.mubr.f32.gmra.mrb[0].mxu0 %v2881
        %v2949 = vpop.f32.mrb[0].mxu0
        %v2950 = vadd.f32 0.0, %v2949
        %v2951 = vpop.f32.mrb[0].mxu0
        %2952 = vdwg.mxu0
        %s2953 = scalar_lea.vmem [#allocation15], 256
        %v2954 = vld [vmem:[%s2953] sm:$0xff]
        %v2955 = vld [vmem:[%s2953 + $0x8] sm:$0xff]
        %v2956 = vld [vmem:[%s2953 + $0x10] sm:$0xff]
        %v2957 = vld [vmem:[%s2953 + $0x18] sm:$0xff]
        %v2958 = vld [vmem:[%s2953 + $0x20] sm:$0xff]
        %v2959 = vld [vmem:[%s2953 + $0x28] sm:$0xff]
        %v2960 = vld [vmem:[%s2953 + $0x30] sm:$0xff]
        %v2961 = vld [vmem:[%s2953 + $0x38] sm:$0xff]
        %v2962 = vld [vmem:[%s2953 + $0x40] sm:$0xff]
        %v2963 = vld [vmem:[%s2953 + $0x48] sm:$0xff]
        %v2964 = vld [vmem:[%s2953 + $0x50] sm:$0xff]
        %v2965 = vld [vmem:[%s2953 + $0x58] sm:$0xff]
        %v2966 = vld [vmem:[%s2953 + $0x60] sm:$0xff]
        %v2967 = vld [vmem:[%s2953 + $0x68] sm:$0xff]
        %v2968 = vld [vmem:[%s2953 + $0x70] sm:$0xff]
        %v2969 = vld [vmem:[%s2953 + $0x78] sm:$0xff]
        %2970 = vmatprep.subr.mxu0 0.0
        %2971 = vmatpush1.msra.mxu0 %v2954
        %2972 = vmatprep.subr.mxu0 0.0
        %2973 = vmatpush1.msra.mxu0 %v2955
        %2974 = vmatprep.subr.mxu0 0.0
        %2975 = vmatpush1.msra.mxu0 %v2956
        %2976 = vmatprep.subr.mxu0 0.0
        %2977 = vmatpush1.msra.mxu0 %v2957
        %2978 = vmatprep.subr.mxu0 0.0
        %2979 = vmatpush1.msra.mxu0 %v2958
        %2980 = vmatprep.subr.mxu0 0.0
        %2981 = vmatpush1.msra.mxu0 %v2959
        %2982 = vmatprep.subr.mxu0 0.0
        %2983 = vmatpush1.msra.mxu0 %v2960
        %2984 = vmatprep.subr.mxu0 0.0
        %2985 = vmatpush1.msra.mxu0 %v2961
        %2986 = vmatprep.subr.mxu0 0.0
        %2987 = vmatpush1.msra.mxu0 %v2962
        %2988 = vmatprep.subr.mxu0 0.0
        %2989 = vmatpush1.msra.mxu0 %v2963
        %2990 = vmatprep.subr.mxu0 0.0
        %2991 = vmatpush1.msra.mxu0 %v2964
        %2992 = vmatprep.subr.mxu0 0.0
        %2993 = vmatpush1.msra.mxu0 %v2965
        %2994 = vmatprep.subr.mxu0 0.0
        %2995 = vmatpush1.msra.mxu0 %v2966
        %2996 = vmatprep.subr.mxu0 0.0
        %2997 = vmatpush1.msra.mxu0 %v2967
        %2998 = vmatprep.subr.mxu0 0.0
        %2999 = vmatpush1.msra.mxu0 %v2968
        %3000 = vmatprep.subr.mxu0 0.0
        %3001 = vmatpush1.msra.mxu0 %v2969
        %3002 = vmatprep.subr.mxu0 0.0
        %3003 = vmatpush1.msra.mxu0 0.0
        %3004 = vmatprep.subr.mxu0 0.0
        %3005 = vmatpush1.msra.mxu0 0.0
        %3006 = vmatprep.subr.mxu0 0.0
        %3007 = vmatpush1.msra.mxu0 0.0
        %3008 = vmatprep.subr.mxu0 0.0
        %3009 = vmatpush1.msra.mxu0 0.0
        %3010 = vmatprep.subr.mxu0 0.0
        %3011 = vmatpush1.msra.mxu0 0.0
        %3012 = vmatprep.subr.mxu0 0.0
        %3013 = vmatpush1.msra.mxu0 0.0
        %3014 = vmatprep.subr.mxu0 0.0
        %3015 = vmatpush1.msra.mxu0 0.0
        %3016 = vmatprep.subr.mxu0 0.0
        %3017 = vmatpush1.msra.mxu0 0.0
        %3018 = vmatprep.subr.mxu0 0.0
        %3019 = vmatpush1.msra.mxu0 0.0
        %3020 = vmatprep.subr.mxu0 0.0
        %3021 = vmatpush1.msra.mxu0 0.0
        %3022 = vmatprep.subr.mxu0 0.0
        %3023 = vmatpush1.msra.mxu0 0.0
        %3024 = vmatprep.subr.mxu0 0.0
        %3025 = vmatpush1.msra.mxu0 0.0
        %3026 = vmatprep.subr.mxu0 0.0
        %3027 = vmatpush1.msra.mxu0 0.0
        %3028 = vmatprep.subr.mxu0 0.0
        %3029 = vmatpush1.msra.mxu0 0.0
        %3030 = vmatprep.subr.mxu0 0.0
        %3031 = vmatpush1.msra.mxu0 0.0
        %3032 = vmatprep.subr.mxu0 0.0
        %3033 = vmatpush1.msra.mxu0 0.0
        %3034 = vmatprep.mubr.f32.mxu0 0.0
        %3035 = vmatmul.mubr.f32.gmra.mrb[0].mxu0 %v2950
        %v3036 = vpop.f32.mrb[0].mxu0
        %v3037 = vadd.f32 0.0, %v3036
        %v3038 = vpop.f32.mrb[0].mxu0
        %3039 = vdwg.mxu0
        %v3040 = vadd.f32 %v2643, %v3037
        %s3041 = scalar_lea.vmem %s10, 16
        %v3042 = vld [vmem:[%s3041] sm:$0x7f]
        %v3044 = vsel %vm2227, %v3042, 0
        %3046 = vmatprep.subr.mxu0 0.0
        %3047 = vmatpush1.msra.mxu0 %v2326
        %3048 = vmatprep.subr.mxu0 0.0
        %3049 = vmatpush1.msra.mxu0 0.0
        %3050 = vmatprep.subr.mxu0 0.0
        %3051 = vmatpush1.msra.mxu0 0.0
        %3052 = vmatprep.subr.mxu0 0.0
        %3053 = vmatpush1.msra.mxu0 0.0
        %3054 = vmatprep.subr.mxu0 0.0
        %3055 = vmatpush1.msra.mxu0 0.0
        %3056 = vmatprep.subr.mxu0 0.0
        %3057 = vmatpush1.msra.mxu0 0.0
        %3058 = vmatprep.subr.mxu0 0.0
        %3059 = vmatpush1.msra.mxu0 0.0
        %3060 = vmatprep.subr.mxu0 0.0
        %3061 = vmatpush1.msra.mxu0 0.0
        %3062 = vmatprep.subr.mxu0 0.0
        %3063 = vmatpush1.msra.mxu0 0.0
        %3064 = vmatprep.subr.mxu0 0.0
        %3065 = vmatpush1.msra.mxu0 0.0
        %3066 = vmatprep.subr.mxu0 0.0
        %3067 = vmatpush1.msra.mxu0 0.0
        %3068 = vmatprep.subr.mxu0 0.0
        %3069 = vmatpush1.msra.mxu0 0.0
        %3070 = vmatprep.subr.mxu0 0.0
        %3071 = vmatpush1.msra.mxu0 0.0
        %3072 = vmatprep.subr.mxu0 0.0
        %3073 = vmatpush1.msra.mxu0 0.0
        %3074 = vmatprep.subr.mxu0 0.0
        %3075 = vmatpush1.msra.mxu0 0.0
        %3076 = vmatprep.subr.mxu0 0.0
        %3077 = vmatpush1.msra.mxu0 0.0
        %3078 = vmatprep.subr.mxu0 0.0
        %3079 = vmatpush1.msra.mxu0 0.0
        %3080 = vmatprep.subr.mxu0 0.0
        %3081 = vmatpush1.msra.mxu0 0.0
        %3082 = vmatprep.subr.mxu0 0.0
        %3083 = vmatpush1.msra.mxu0 0.0
        %3084 = vmatprep.subr.mxu0 0.0
        %3085 = vmatpush1.msra.mxu0 0.0
        %3086 = vmatprep.subr.mxu0 0.0
        %3087 = vmatpush1.msra.mxu0 0.0
        %3088 = vmatprep.subr.mxu0 0.0
        %3089 = vmatpush1.msra.mxu0 0.0
        %3090 = vmatprep.subr.mxu0 0.0
        %3091 = vmatpush1.msra.mxu0 0.0
        %3092 = vmatprep.subr.mxu0 0.0
        %3093 = vmatpush1.msra.mxu0 0.0
        %3094 = vmatprep.subr.mxu0 0.0
        %3095 = vmatpush1.msra.mxu0 0.0
        %3096 = vmatprep.subr.mxu0 0.0
        %3097 = vmatpush1.msra.mxu0 0.0
        %3098 = vmatprep.subr.mxu0 0.0
        %3099 = vmatpush1.msra.mxu0 0.0
        %3100 = vmatprep.subr.mxu0 0.0
        %3101 = vmatpush1.msra.mxu0 0.0
        %3102 = vmatprep.subr.mxu0 0.0
        %3103 = vmatpush1.msra.mxu0 0.0
        %3104 = vmatprep.subr.mxu0 0.0
        %3105 = vmatpush1.msra.mxu0 0.0
        %3106 = vmatprep.subr.mxu0 0.0
        %3107 = vmatpush1.msra.mxu0 0.0
        %3108 = vmatprep.subr.mxu0 0.0
        %3109 = vmatpush1.msra.mxu0 0.0
        %3110 = vmatprep.mubr.f32.mxu0 0.0
        %3111 = vmatmul.mubr.f32.gmra.mrb[0].mxu0 %v3044
        %v3112 = vpop.f32.mrb[0].mxu0
        %v3113 = vadd.f32 0.0, %v3112
        %v3114 = vpop.f32.mrb[0].mxu0
        %3115 = vdwg.mxu0
        %s3116 = scalar_lea.vmem [#allocation16], 256
        %v3117 = vld [vmem:[%s3116] sm:$0xff]
        %v3118 = vld [vmem:[%s3116 + $0x8] sm:$0xff]
        %v3119 = vld [vmem:[%s3116 + $0x10] sm:$0xff]
        %v3120 = vld [vmem:[%s3116 + $0x18] sm:$0xff]
        %v3121 = vld [vmem:[%s3116 + $0x20] sm:$0xff]
        %v3122 = vld [vmem:[%s3116 + $0x28] sm:$0xff]
        %v3123 = vld [vmem:[%s3116 + $0x30] sm:$0xff]
        %v3124 = vld [vmem:[%s3116 + $0x38] sm:$0xff]
        %v3125 = vld [vmem:[%s3116 + $0x40] sm:$0xff]
        %v3126 = vld [vmem:[%s3116 + $0x48] sm:$0xff]
        %v3127 = vld [vmem:[%s3116 + $0x50] sm:$0xff]
        %v3128 = vld [vmem:[%s3116 + $0x58] sm:$0xff]
        %v3129 = vld [vmem:[%s3116 + $0x60] sm:$0xff]
        %v3130 = vld [vmem:[%s3116 + $0x68] sm:$0xff]
        %v3131 = vld [vmem:[%s3116 + $0x70] sm:$0xff]
        %v3132 = vld [vmem:[%s3116 + $0x78] sm:$0xff]
        %3133 = vmatprep.subr.mxu0 0.0
        %3134 = vmatpush1.msra.mxu0 %v3117
        %3135 = vmatprep.subr.mxu0 0.0
        %3136 = vmatpush1.msra.mxu0 %v3118
        %3137 = vmatprep.subr.mxu0 0.0
        %3138 = vmatpush1.msra.mxu0 %v3119
        %3139 = vmatprep.subr.mxu0 0.0
        %3140 = vmatpush1.msra.mxu0 %v3120
        %3141 = vmatprep.subr.mxu0 0.0
        %3142 = vmatpush1.msra.mxu0 %v3121
        %3143 = vmatprep.subr.mxu0 0.0
        %3144 = vmatpush1.msra.mxu0 %v3122
        %3145 = vmatprep.subr.mxu0 0.0
        %3146 = vmatpush1.msra.mxu0 %v3123
        %3147 = vmatprep.subr.mxu0 0.0
        %3148 = vmatpush1.msra.mxu0 %v3124
        %3149 = vmatprep.subr.mxu0 0.0
        %3150 = vmatpush1.msra.mxu0 %v3125
        %3151 = vmatprep.subr.mxu0 0.0
        %3152 = vmatpush1.msra.mxu0 %v3126
        %3153 = vmatprep.subr.mxu0 0.0
        %3154 = vmatpush1.msra.mxu0 %v3127
        %3155 = vmatprep.subr.mxu0 0.0
        %3156 = vmatpush1.msra.mxu0 %v3128
        %3157 = vmatprep.subr.mxu0 0.0
        %3158 = vmatpush1.msra.mxu0 %v3129
        %3159 = vmatprep.subr.mxu0 0.0
        %3160 = vmatpush1.msra.mxu0 %v3130
        %3161 = vmatprep.subr.mxu0 0.0
        %3162 = vmatpush1.msra.mxu0 %v3131
        %3163 = vmatprep.subr.mxu0 0.0
        %3164 = vmatpush1.msra.mxu0 %v3132
        %3165 = vmatprep.subr.mxu0 0.0
        %3166 = vmatpush1.msra.mxu0 0.0
        %3167 = vmatprep.subr.mxu0 0.0
        %3168 = vmatpush1.msra.mxu0 0.0
        %3169 = vmatprep.subr.mxu0 0.0
        %3170 = vmatpush1.msra.mxu0 0.0
        %3171 = vmatprep.subr.mxu0 0.0
        %3172 = vmatpush1.msra.mxu0 0.0
        %3173 = vmatprep.subr.mxu0 0.0
        %3174 = vmatpush1.msra.mxu0 0.0
        %3175 = vmatprep.subr.mxu0 0.0
        %3176 = vmatpush1.msra.mxu0 0.0
        %3177 = vmatprep.subr.mxu0 0.0
        %3178 = vmatpush1.msra.mxu0 0.0
        %3179 = vmatprep.subr.mxu0 0.0
        %3180 = vmatpush1.msra.mxu0 0.0
        %3181 = vmatprep.subr.mxu0 0.0
        %3182 = vmatpush1.msra.mxu0 0.0
        %3183 = vmatprep.subr.mxu0 0.0
        %3184 = vmatpush1.msra.mxu0 0.0
        %3185 = vmatprep.subr.mxu0 0.0
        %3186 = vmatpush1.msra.mxu0 0.0
        %3187 = vmatprep.subr.mxu0 0.0
        %3188 = vmatpush1.msra.mxu0 0.0
        %3189 = vmatprep.subr.mxu0 0.0
        %3190 = vmatpush1.msra.mxu0 0.0
        %3191 = vmatprep.subr.mxu0 0.0
        %3192 = vmatpush1.msra.mxu0 0.0
        %3193 = vmatprep.subr.mxu0 0.0
        %3194 = vmatpush1.msra.mxu0 0.0
        %3195 = vmatprep.subr.mxu0 0.0
        %3196 = vmatpush1.msra.mxu0 0.0
        %3197 = vmatprep.mubr.f32.mxu0 0.0
        %3198 = vmatmul.mubr.f32.gmra.mrb[0].mxu0 %v3113
        %v3199 = vpop.f32.mrb[0].mxu0
        %v3200 = vadd.f32 0.0, %v3199
        %v3201 = vpop.f32.mrb[0].mxu0
        %3202 = vdwg.mxu0
        %v3203 = vadd.f32 %v2875, %v3200
        %v3204 = vld [vmem:[%s12] sm:$0x1]
        %v3206 = vlaneseq
        %v3207 = vshrl.u32 %v3206, 7
        %v3208 = vsub.s32 0, %v3207
        %v3209 = vrot.slane %v3204, %v3208
        %v3211 = vadd.f32 %v3040, %v3209
        %v3212 = vld [vmem:[%s14] sm:$0x1]
        %v3214 = vlaneseq
        %v3215 = vshrl.u32 %v3214, 7
        %v3216 = vsub.s32 0, %v3215
        %v3217 = vrot.slane %v3212, %v3216
        %v3219 = vadd.f32 %v3203, %v3217
        %v3220 = vmax.f32 %v3219, 0.0
        %v3222 = vsel %vm2231, %v3220, 0
        %3224 = vmatprep.subr.mxu0 0.0
        %3225 = vmatpush1.msra.mxu0 %v3222
        %3226 = vmatprep.subr.mxu0 0.0
        %3227 = vmatpush1.msra.mxu0 0.0
        %3228 = vmatprep.subr.mxu0 0.0
        %3229 = vmatpush1.msra.mxu0 0.0
        %3230 = vmatprep.subr.mxu0 0.0
        %3231 = vmatpush1.msra.mxu0 0.0
        %3232 = vmatprep.subr.mxu0 0.0
        %3233 = vmatpush1.msra.mxu0 0.0
        %3234 = vmatprep.subr.mxu0 0.0
        %3235 = vmatpush1.msra.mxu0 0.0
        %3236 = vmatprep.subr.mxu0 0.0
        %3237 = vmatpush1.msra.mxu0 0.0
        %3238 = vmatprep.subr.mxu0 0.0
        %3239 = vmatpush1.msra.mxu0 0.0
        %3240 = vmatprep.subr.mxu0 0.0
        %3241 = vmatpush1.msra.mxu0 0.0
        %3242 = vmatprep.subr.mxu0 0.0
        %3243 = vmatpush1.msra.mxu0 0.0
        %3244 = vmatprep.subr.mxu0 0.0
        %3245 = vmatpush1.msra.mxu0 0.0
        %3246 = vmatprep.subr.mxu0 0.0
        %3247 = vmatpush1.msra.mxu0 0.0
        %3248 = vmatprep.subr.mxu0 0.0
        %3249 = vmatpush1.msra.mxu0 0.0
        %3250 = vmatprep.subr.mxu0 0.0
        %3251 = vmatpush1.msra.mxu0 0.0
        %3252 = vmatprep.subr.mxu0 0.0
        %3253 = vmatpush1.msra.mxu0 0.0
        %3254 = vmatprep.subr.mxu0 0.0
        %3255 = vmatpush1.msra.mxu0 0.0
        %3256 = vmatprep.subr.mxu0 0.0
        %3257 = vmatpush1.msra.mxu0 0.0
        %3258 = vmatprep.subr.mxu0 0.0
        %3259 = vmatpush1.msra.mxu0 0.0
        %3260 = vmatprep.subr.mxu0 0.0
        %3261 = vmatpush1.msra.mxu0 0.0
        %3262 = vmatprep.subr.mxu0 0.0
        %3263 = vmatpush1.msra.mxu0 0.0
        %3264 = vmatprep.subr.mxu0 0.0
        %3265 = vmatpush1.msra.mxu0 0.0
        %3266 = vmatprep.subr.mxu0 0.0
        %3267 = vmatpush1.msra.mxu0 0.0
        %3268 = vmatprep.subr.mxu0 0.0
        %3269 = vmatpush1.msra.mxu0 0.0
        %3270 = vmatprep.subr.mxu0 0.0
        %3271 = vmatpush1.msra.mxu0 0.0
        %3272 = vmatprep.subr.mxu0 0.0
        %3273 = vmatpush1.msra.mxu0 0.0
        %3274 = vmatprep.subr.mxu0 0.0
        %3275 = vmatpush1.msra.mxu0 0.0
        %3276 = vmatprep.subr.mxu0 0.0
        %3277 = vmatpush1.msra.mxu0 0.0
        %3278 = vmatprep.subr.mxu0 0.0
        %3279 = vmatpush1.msra.mxu0 0.0
        %3280 = vmatprep.subr.mxu0 0.0
        %3281 = vmatpush1.msra.mxu0 0.0
        %3282 = vmatprep.subr.mxu0 0.0
        %3283 = vmatpush1.msra.mxu0 0.0
        %3284 = vmatprep.subr.mxu0 0.0
        %3285 = vmatpush1.msra.mxu0 0.0
        %3286 = vmatprep.subr.mxu0 0.0
        %3287 = vmatpush1.msra.mxu0 0.0
        %3288 = vmatprep.mubr.f32.mxu0 0.0
        %3289 = vmatmul.mubr.f32.gmra.mrb[0].mxu0 %v2229
        %v3290 = vpop.f32.mrb[0].mxu0
        %v3291 = vadd.f32 0.0, %v3290
        %v3292 = vpop.f32.mrb[0].mxu0
        %3293 = vdwg.mxu0
        %v3294 = vld [vmem:[#allocation18] sm:$0xff]
        %v3295 = vld [vmem:[#allocation18 + $0x8] sm:$0xff]
        %v3296 = vld [vmem:[#allocation18 + $0x10] sm:$0xff]
        %v3297 = vld [vmem:[#allocation18 + $0x18] sm:$0xff]
        %v3298 = vld [vmem:[#allocation18 + $0x20] sm:$0xff]
        %v3299 = vld [vmem:[#allocation18 + $0x28] sm:$0xff]
        %v3300 = vld [vmem:[#allocation18 + $0x30] sm:$0xff]
        %v3301 = vld [vmem:[#allocation18 + $0x38] sm:$0xff]
        %v3302 = vld [vmem:[#allocation18 + $0x40] sm:$0xff]
        %v3303 = vld [vmem:[#allocation18 + $0x48] sm:$0xff]
        %v3304 = vld [vmem:[#allocation18 + $0x50] sm:$0xff]
        %v3305 = vld [vmem:[#allocation18 + $0x58] sm:$0xff]
        %v3306 = vld [vmem:[#allocation18 + $0x60] sm:$0xff]
        %v3307 = vld [vmem:[#allocation18 + $0x68] sm:$0xff]
        %v3308 = vld [vmem:[#allocation18 + $0x70] sm:$0xff]
        %v3309 = vld [vmem:[#allocation18 + $0x78] sm:$0xff]
        %3310 = vmatprep.subr.mxu0 0.0
        %3311 = vmatpush1.msra.mxu0 %v3222
        %3312 = vmatprep.subr.mxu0 0.0
        %3313 = vmatpush1.msra.mxu0 0.0
        %3314 = vmatprep.subr.mxu0 0.0
        %3315 = vmatpush1.msra.mxu0 0.0
        %3316 = vmatprep.subr.mxu0 0.0
        %3317 = vmatpush1.msra.mxu0 0.0
        %3318 = vmatprep.subr.mxu0 0.0
        %3319 = vmatpush1.msra.mxu0 0.0
        %3320 = vmatprep.subr.mxu0 0.0
        %3321 = vmatpush1.msra.mxu0 0.0
        %3322 = vmatprep.subr.mxu0 0.0
        %3323 = vmatpush1.msra.mxu0 0.0
        %3324 = vmatprep.subr.mxu0 0.0
        %3325 = vmatpush1.msra.mxu0 0.0
        %3326 = vmatprep.subr.mxu0 0.0
        %3327 = vmatpush1.msra.mxu0 0.0
        %3328 = vmatprep.subr.mxu0 0.0
        %3329 = vmatpush1.msra.mxu0 0.0
        %3330 = vmatprep.subr.mxu0 0.0
        %3331 = vmatpush1.msra.mxu0 0.0
        %3332 = vmatprep.subr.mxu0 0.0
        %3333 = vmatpush1.msra.mxu0 0.0
        %3334 = vmatprep.subr.mxu0 0.0
        %3335 = vmatpush1.msra.mxu0 0.0
        %3336 = vmatprep.subr.mxu0 0.0
        %3337 = vmatpush1.msra.mxu0 0.0
        %3338 = vmatprep.subr.mxu0 0.0
        %3339 = vmatpush1.msra.mxu0 0.0
        %3340 = vmatprep.subr.mxu0 0.0
        %3341 = vmatpush1.msra.mxu0 0.0
        %3342 = vmatprep.subr.mxu0 0.0
        %3343 = vmatpush1.msra.mxu0 0.0
        %3344 = vmatprep.subr.mxu0 0.0
        %3345 = vmatpush1.msra.mxu0 0.0
        %3346 = vmatprep.subr.mxu0 0.0
        %3347 = vmatpush1.msra.mxu0 0.0
        %3348 = vmatprep.subr.mxu0 0.0
        %3349 = vmatpush1.msra.mxu0 0.0
        %3350 = vmatprep.subr.mxu0 0.0
        %3351 = vmatpush1.msra.mxu0 0.0
        %3352 = vmatprep.subr.mxu0 0.0
        %3353 = vmatpush1.msra.mxu0 0.0
        %3354 = vmatprep.subr.mxu0 0.0
        %3355 = vmatpush1.msra.mxu0 0.0
        %3356 = vmatprep.subr.mxu0 0.0
        %3357 = vmatpush1.msra.mxu0 0.0
        %3358 = vmatprep.subr.mxu0 0.0
        %3359 = vmatpush1.msra.mxu0 0.0
        %3360 = vmatprep.subr.mxu0 0.0
        %3361 = vmatpush1.msra.mxu0 0.0
        %3362 = vmatprep.subr.mxu0 0.0
        %3363 = vmatpush1.msra.mxu0 0.0
        %3364 = vmatprep.subr.mxu0 0.0
        %3365 = vmatpush1.msra.mxu0 0.0
        %3366 = vmatprep.subr.mxu0 0.0
        %3367 = vmatpush1.msra.mxu0 0.0
        %3368 = vmatprep.subr.mxu0 0.0
        %3369 = vmatpush1.msra.mxu0 0.0
        %3370 = vmatprep.subr.mxu0 0.0
        %3371 = vmatpush1.msra.mxu0 0.0
        %3372 = vmatprep.subr.mxu0 0.0
        %3373 = vmatpush1.msra.mxu0 0.0
        %3374 = vmatprep.mubr.f32.mxu0 0.0
        %3375 = vmatmul.mubr.f32.gmra.mrb[0].mxu0 %v2417
        %v3376 = vpop.f32.mrb[0].mxu0
        %v3377 = vadd.f32 0.0, %v3376
        %v3378 = vpop.f32.mrb[0].mxu0
        %3379 = vdwg.mxu0
        %s3380 = scalar_lea.vmem [#allocation18], 128
        %v3381 = vld [vmem:[%s3380] sm:$0xff]
        %v3382 = vld [vmem:[%s3380 + $0x8] sm:$0xff]
        %v3383 = vld [vmem:[%s3380 + $0x10] sm:$0xff]
        %v3384 = vld [vmem:[%s3380 + $0x18] sm:$0xff]
        %v3385 = vld [vmem:[%s3380 + $0x20] sm:$0xff]
        %v3386 = vld [vmem:[%s3380 + $0x28] sm:$0xff]
        %v3387 = vld [vmem:[%s3380 + $0x30] sm:$0xff]
        %v3388 = vld [vmem:[%s3380 + $0x38] sm:$0xff]
        %v3389 = vld [vmem:[%s3380 + $0x40] sm:$0xff]
        %v3390 = vld [vmem:[%s3380 + $0x48] sm:$0xff]
        %v3391 = vld [vmem:[%s3380 + $0x50] sm:$0xff]
        %v3392 = vld [vmem:[%s3380 + $0x58] sm:$0xff]
        %v3393 = vld [vmem:[%s3380 + $0x60] sm:$0xff]
        %v3394 = vld [vmem:[%s3380 + $0x68] sm:$0xff]
        %v3395 = vld [vmem:[%s3380 + $0x70] sm:$0xff]
        %v3396 = vld [vmem:[%s3380 + $0x78] sm:$0xff]
        %3397 = vmatprep.subr.mxu0 0.0
        %3398 = vmatpush1.msra.mxu0 %v3381
        %3399 = vmatprep.subr.mxu0 0.0
        %3400 = vmatpush1.msra.mxu0 %v3382
        %3401 = vmatprep.subr.mxu0 0.0
        %3402 = vmatpush1.msra.mxu0 %v3383
        %3403 = vmatprep.subr.mxu0 0.0
        %3404 = vmatpush1.msra.mxu0 %v3384
        %3405 = vmatprep.subr.mxu0 0.0
        %3406 = vmatpush1.msra.mxu0 %v3385
        %3407 = vmatprep.subr.mxu0 0.0
        %3408 = vmatpush1.msra.mxu0 %v3386
        %3409 = vmatprep.subr.mxu0 0.0
        %3410 = vmatpush1.msra.mxu0 %v3387
        %3411 = vmatprep.subr.mxu0 0.0
        %3412 = vmatpush1.msra.mxu0 %v3388
        %3413 = vmatprep.subr.mxu0 0.0
        %3414 = vmatpush1.msra.mxu0 %v3389
        %3415 = vmatprep.subr.mxu0 0.0
        %3416 = vmatpush1.msra.mxu0 %v3390
        %3417 = vmatprep.subr.mxu0 0.0
        %3418 = vmatpush1.msra.mxu0 %v3391
        %3419 = vmatprep.subr.mxu0 0.0
        %3420 = vmatpush1.msra.mxu0 %v3392
        %3421 = vmatprep.subr.mxu0 0.0
        %3422 = vmatpush1.msra.mxu0 %v3393
        %3423 = vmatprep.subr.mxu0 0.0
        %3424 = vmatpush1.msra.mxu0 %v3394
        %3425 = vmatprep.subr.mxu0 0.0
        %3426 = vmatpush1.msra.mxu0 %v3395
        %3427 = vmatprep.subr.mxu0 0.0
        %3428 = vmatpush1.msra.mxu0 %v3396
        %3429 = vmatprep.subr.mxu0 0.0
        %3430 = vmatpush1.msra.mxu0 0.0
        %3431 = vmatprep.subr.mxu0 0.0
        %3432 = vmatpush1.msra.mxu0 0.0
        %3433 = vmatprep.subr.mxu0 0.0
        %3434 = vmatpush1.msra.mxu0 0.0
        %3435 = vmatprep.subr.mxu0 0.0
        %3436 = vmatpush1.msra.mxu0 0.0
        %3437 = vmatprep.subr.mxu0 0.0
        %3438 = vmatpush1.msra.mxu0 0.0
        %3439 = vmatprep.subr.mxu0 0.0
        %3440 = vmatpush1.msra.mxu0 0.0
        %3441 = vmatprep.subr.mxu0 0.0
        %3442 = vmatpush1.msra.mxu0 0.0
        %3443 = vmatprep.subr.mxu0 0.0
        %3444 = vmatpush1.msra.mxu0 0.0
        %3445 = vmatprep.subr.mxu0 0.0
        %3446 = vmatpush1.msra.mxu0 0.0
        %3447 = vmatprep.subr.mxu0 0.0
        %3448 = vmatpush1.msra.mxu0 0.0
        %3449 = vmatprep.subr.mxu0 0.0
        %3450 = vmatpush1.msra.mxu0 0.0
        %3451 = vmatprep.subr.mxu0 0.0
        %3452 = vmatpush1.msra.mxu0 0.0
        %3453 = vmatprep.subr.mxu0 0.0
        %3454 = vmatpush1.msra.mxu0 0.0
        %3455 = vmatprep.subr.mxu0 0.0
        %3456 = vmatpush1.msra.mxu0 0.0
        %3457 = vmatprep.subr.mxu0 0.0
        %3458 = vmatpush1.msra.mxu0 0.0
        %3459 = vmatprep.subr.mxu0 0.0
        %3460 = vmatpush1.msra.mxu0 0.0
        %3461 = vmatprep.mubr.f32.mxu0 0.0
        %3462 = vmatmul.mubr.f32.gmra.mrb[0].mxu0 %v3377
        %v3463 = vpop.f32.mrb[0].mxu0
        %v3464 = vadd.f32 0.0, %v3463
        %v3465 = vpop.f32.mrb[0].mxu0
        %3466 = vdwg.mxu0
        %3467 = vmatprep.subr.mxu0 0.0
        %3468 = vmatpush1.msra.mxu0 %v3294
        %3469 = vmatprep.subr.mxu0 0.0
        %3470 = vmatpush1.msra.mxu0 %v3295
        %3471 = vmatprep.subr.mxu0 0.0
        %3472 = vmatpush1.msra.mxu0 %v3296
        %3473 = vmatprep.subr.mxu0 0.0
        %3474 = vmatpush1.msra.mxu0 %v3297
        %3475 = vmatprep.subr.mxu0 0.0
        %3476 = vmatpush1.msra.mxu0 %v3298
        %3477 = vmatprep.subr.mxu0 0.0
        %3478 = vmatpush1.msra.mxu0 %v3299
        %3479 = vmatprep.subr.mxu0 0.0
        %3480 = vmatpush1.msra.mxu0 %v3300
        %3481 = vmatprep.subr.mxu0 0.0
        %3482 = vmatpush1.msra.mxu0 %v3301
        %3483 = vmatprep.subr.mxu0 0.0
        %3484 = vmatpush1.msra.mxu0 %v3302
        %3485 = vmatprep.subr.mxu0 0.0
        %3486 = vmatpush1.msra.mxu0 %v3303
        %3487 = vmatprep.subr.mxu0 0.0
        %3488 = vmatpush1.msra.mxu0 %v3304
        %3489 = vmatprep.subr.mxu0 0.0
        %3490 = vmatpush1.msra.mxu0 %v3305
        %3491 = vmatprep.subr.mxu0 0.0
        %3492 = vmatpush1.msra.mxu0 %v3306
        %3493 = vmatprep.subr.mxu0 0.0
        %3494 = vmatpush1.msra.mxu0 %v3307
        %3495 = vmatprep.subr.mxu0 0.0
        %3496 = vmatpush1.msra.mxu0 %v3308
        %3497 = vmatprep.subr.mxu0 0.0
        %3498 = vmatpush1.msra.mxu0 %v3309
        %3499 = vmatprep.subr.mxu0 0.0
        %3500 = vmatpush1.msra.mxu0 0.0
        %3501 = vmatprep.subr.mxu0 0.0
        %3502 = vmatpush1.msra.mxu0 0.0
        %3503 = vmatprep.subr.mxu0 0.0
        %3504 = vmatpush1.msra.mxu0 0.0
        %3505 = vmatprep.subr.mxu0 0.0
        %3506 = vmatpush1.msra.mxu0 0.0
        %3507 = vmatprep.subr.mxu0 0.0
        %3508 = vmatpush1.msra.mxu0 0.0
        %3509 = vmatprep.subr.mxu0 0.0
        %3510 = vmatpush1.msra.mxu0 0.0
        %3511 = vmatprep.subr.mxu0 0.0
        %3512 = vmatpush1.msra.mxu0 0.0
        %3513 = vmatprep.subr.mxu0 0.0
        %3514 = vmatpush1.msra.mxu0 0.0
        %3515 = vmatprep.subr.mxu0 0.0
        %3516 = vmatpush1.msra.mxu0 0.0
        %3517 = vmatprep.subr.mxu0 0.0
        %3518 = vmatpush1.msra.mxu0 0.0
        %3519 = vmatprep.subr.mxu0 0.0
        %3520 = vmatpush1.msra.mxu0 0.0
        %3521 = vmatprep.subr.mxu0 0.0
        %3522 = vmatpush1.msra.mxu0 0.0
        %3523 = vmatprep.subr.mxu0 0.0
        %3524 = vmatpush1.msra.mxu0 0.0
        %3525 = vmatprep.subr.mxu0 0.0
        %3526 = vmatpush1.msra.mxu0 0.0
        %3527 = vmatprep.subr.mxu0 0.0
        %3528 = vmatpush1.msra.mxu0 0.0
        %3529 = vmatprep.subr.mxu0 0.0
        %3530 = vmatpush1.msra.mxu0 0.0
        %3531 = vmatprep.mubr.f32.mxu0 0.0
        %3532 = vmatmul.mubr.f32.gmra.mrb[0].mxu0 %v3291
        %v3533 = vpop.f32.mrb[0].mxu0
        %v3534 = vadd.f32 %v3464, %v3533
        %v3535 = vpop.f32.mrb[0].mxu0
        %3536 = vdwg.mxu0
        %3537 = vmatprep.subr.mxu0 0.0
        %3538 = vmatpush1.msra.mxu0 %v3222
        %3539 = vmatprep.subr.mxu0 0.0
        %3540 = vmatpush1.msra.mxu0 0.0
        %3541 = vmatprep.subr.mxu0 0.0
        %3542 = vmatpush1.msra.mxu0 0.0
        %3543 = vmatprep.subr.mxu0 0.0
        %3544 = vmatpush1.msra.mxu0 0.0
        %3545 = vmatprep.subr.mxu0 0.0
        %3546 = vmatpush1.msra.mxu0 0.0
        %3547 = vmatprep.subr.mxu0 0.0
        %3548 = vmatpush1.msra.mxu0 0.0
        %3549 = vmatprep.subr.mxu0 0.0
        %3550 = vmatpush1.msra.mxu0 0.0
        %3551 = vmatprep.subr.mxu0 0.0
        %3552 = vmatpush1.msra.mxu0 0.0
        %3553 = vmatprep.subr.mxu0 0.0
        %3554 = vmatpush1.msra.mxu0 0.0
        %3555 = vmatprep.subr.mxu0 0.0
        %3556 = vmatpush1.msra.mxu0 0.0
        %3557 = vmatprep.subr.mxu0 0.0
        %3558 = vmatpush1.msra.mxu0 0.0
        %3559 = vmatprep.subr.mxu0 0.0
        %3560 = vmatpush1.msra.mxu0 0.0
        %3561 = vmatprep.subr.mxu0 0.0
        %3562 = vmatpush1.msra.mxu0 0.0
        %3563 = vmatprep.subr.mxu0 0.0
        %3564 = vmatpush1.msra.mxu0 0.0
        %3565 = vmatprep.subr.mxu0 0.0
        %3566 = vmatpush1.msra.mxu0 0.0
        %3567 = vmatprep.subr.mxu0 0.0
        %3568 = vmatpush1.msra.mxu0 0.0
        %3569 = vmatprep.subr.mxu0 0.0
        %3570 = vmatpush1.msra.mxu0 0.0
        %3571 = vmatprep.subr.mxu0 0.0
        %3572 = vmatpush1.msra.mxu0 0.0
        %3573 = vmatprep.subr.mxu0 0.0
        %3574 = vmatpush1.msra.mxu0 0.0
        %3575 = vmatprep.subr.mxu0 0.0
        %3576 = vmatpush1.msra.mxu0 0.0
        %3577 = vmatprep.subr.mxu0 0.0
        %3578 = vmatpush1.msra.mxu0 0.0
        %3579 = vmatprep.subr.mxu0 0.0
        %3580 = vmatpush1.msra.mxu0 0.0
        %3581 = vmatprep.subr.mxu0 0.0
        %3582 = vmatpush1.msra.mxu0 0.0
        %3583 = vmatprep.subr.mxu0 0.0
        %3584 = vmatpush1.msra.mxu0 0.0
        %3585 = vmatprep.subr.mxu0 0.0
        %3586 = vmatpush1.msra.mxu0 0.0
        %3587 = vmatprep.subr.mxu0 0.0
        %3588 = vmatpush1.msra.mxu0 0.0
        %3589 = vmatprep.subr.mxu0 0.0
        %3590 = vmatpush1.msra.mxu0 0.0
        %3591 = vmatprep.subr.mxu0 0.0
        %3592 = vmatpush1.msra.mxu0 0.0
        %3593 = vmatprep.subr.mxu0 0.0
        %3594 = vmatpush1.msra.mxu0 0.0
        %3595 = vmatprep.subr.mxu0 0.0
        %3596 = vmatpush1.msra.mxu0 0.0
        %3597 = vmatprep.subr.mxu0 0.0
        %3598 = vmatpush1.msra.mxu0 0.0
        %3599 = vmatprep.subr.mxu0 0.0
        %3600 = vmatpush1.msra.mxu0 0.0
        %3601 = vmatprep.mubr.f32.mxu0 0.0
        %3602 = vmatmul.mubr.f32.gmra.mrb[0].mxu0 %v2881
        %v3603 = vpop.f32.mrb[0].mxu0
        %v3604 = vadd.f32 0.0, %v3603
        %v3605 = vpop.f32.mrb[0].mxu0
        %3606 = vdwg.mxu0
        %s3607 = scalar_lea.vmem [#allocation18], 256
        %v3608 = vld [vmem:[%s3607] sm:$0xff]
        %v3609 = vld [vmem:[%s3607 + $0x8] sm:$0xff]
        %v3610 = vld [vmem:[%s3607 + $0x10] sm:$0xff]
        %v3611 = vld [vmem:[%s3607 + $0x18] sm:$0xff]
        %v3612 = vld [vmem:[%s3607 + $0x20] sm:$0xff]
        %v3613 = vld [vmem:[%s3607 + $0x28] sm:$0xff]
        %v3614 = vld [vmem:[%s3607 + $0x30] sm:$0xff]
        %v3615 = vld [vmem:[%s3607 + $0x38] sm:$0xff]
        %v3616 = vld [vmem:[%s3607 + $0x40] sm:$0xff]
        %v3617 = vld [vmem:[%s3607 + $0x48] sm:$0xff]
        %v3618 = vld [vmem:[%s3607 + $0x50] sm:$0xff]
        %v3619 = vld [vmem:[%s3607 + $0x58] sm:$0xff]
        %v3620 = vld [vmem:[%s3607 + $0x60] sm:$0xff]
        %v3621 = vld [vmem:[%s3607 + $0x68] sm:$0xff]
        %v3622 = vld [vmem:[%s3607 + $0x70] sm:$0xff]
        %v3623 = vld [vmem:[%s3607 + $0x78] sm:$0xff]
        %3624 = vmatprep.subr.mxu0 0.0
        %3625 = vmatpush1.msra.mxu0 %v3608
        %3626 = vmatprep.subr.mxu0 0.0
        %3627 = vmatpush1.msra.mxu0 %v3609
        %3628 = vmatprep.subr.mxu0 0.0
        %3629 = vmatpush1.msra.mxu0 %v3610
        %3630 = vmatprep.subr.mxu0 0.0
        %3631 = vmatpush1.msra.mxu0 %v3611
        %3632 = vmatprep.subr.mxu0 0.0
        %3633 = vmatpush1.msra.mxu0 %v3612
        %3634 = vmatprep.subr.mxu0 0.0
        %3635 = vmatpush1.msra.mxu0 %v3613
        %3636 = vmatprep.subr.mxu0 0.0
        %3637 = vmatpush1.msra.mxu0 %v3614
        %3638 = vmatprep.subr.mxu0 0.0
        %3639 = vmatpush1.msra.mxu0 %v3615
        %3640 = vmatprep.subr.mxu0 0.0
        %3641 = vmatpush1.msra.mxu0 %v3616
        %3642 = vmatprep.subr.mxu0 0.0
        %3643 = vmatpush1.msra.mxu0 %v3617
        %3644 = vmatprep.subr.mxu0 0.0
        %3645 = vmatpush1.msra.mxu0 %v3618
        %3646 = vmatprep.subr.mxu0 0.0
        %3647 = vmatpush1.msra.mxu0 %v3619
        %3648 = vmatprep.subr.mxu0 0.0
        %3649 = vmatpush1.msra.mxu0 %v3620
        %3650 = vmatprep.subr.mxu0 0.0
        %3651 = vmatpush1.msra.mxu0 %v3621
        %3652 = vmatprep.subr.mxu0 0.0
        %3653 = vmatpush1.msra.mxu0 %v3622
        %3654 = vmatprep.subr.mxu0 0.0
        %3655 = vmatpush1.msra.mxu0 %v3623
        %3656 = vmatprep.subr.mxu0 0.0
        %3657 = vmatpush1.msra.mxu0 0.0
        %3658 = vmatprep.subr.mxu0 0.0
        %3659 = vmatpush1.msra.mxu0 0.0
        %3660 = vmatprep.subr.mxu0 0.0
        %3661 = vmatpush1.msra.mxu0 0.0
        %3662 = vmatprep.subr.mxu0 0.0
        %3663 = vmatpush1.msra.mxu0 0.0
        %3664 = vmatprep.subr.mxu0 0.0
        %3665 = vmatpush1.msra.mxu0 0.0
        %3666 = vmatprep.subr.mxu0 0.0
        %3667 = vmatpush1.msra.mxu0 0.0
        %3668 = vmatprep.subr.mxu0 0.0
        %3669 = vmatpush1.msra.mxu0 0.0
        %3670 = vmatprep.subr.mxu0 0.0
        %3671 = vmatpush1.msra.mxu0 0.0
        %3672 = vmatprep.subr.mxu0 0.0
        %3673 = vmatpush1.msra.mxu0 0.0
        %3674 = vmatprep.subr.mxu0 0.0
        %3675 = vmatpush1.msra.mxu0 0.0
        %3676 = vmatprep.subr.mxu0 0.0
        %3677 = vmatpush1.msra.mxu0 0.0
        %3678 = vmatprep.subr.mxu0 0.0
        %3679 = vmatpush1.msra.mxu0 0.0
        %3680 = vmatprep.subr.mxu0 0.0
        %3681 = vmatpush1.msra.mxu0 0.0
        %3682 = vmatprep.subr.mxu0 0.0
        %3683 = vmatpush1.msra.mxu0 0.0
        %3684 = vmatprep.subr.mxu0 0.0
        %3685 = vmatpush1.msra.mxu0 0.0
        %3686 = vmatprep.subr.mxu0 0.0
        %3687 = vmatpush1.msra.mxu0 0.0
        %3688 = vmatprep.mubr.f32.mxu0 0.0
        %3689 = vmatmul.mubr.f32.gmra.mrb[0].mxu0 %v3604
        %v3690 = vpop.f32.mrb[0].mxu0
        %v3691 = vadd.f32 0.0, %v3690
        %v3692 = vpop.f32.mrb[0].mxu0
        %3693 = vdwg.mxu0
        %v3694 = vadd.f32 %v3534, %v3691
        %v3695 = vld [vmem:[%s16] sm:$0x1]
        %v3697 = vlaneseq
        %v3698 = vshrl.u32 %v3697, 7
        %v3699 = vsub.s32 0, %v3698
        %v3700 = vrot.slane %v3695, %v3699
        %v3702 = vadd.f32 %v3694, %v3700
        %v3703 = vadd.f32 %v3702, %v3211
        %3704 = vst [vmem:[%s707] sm:$0x7] %v3703
        %p3705 = scmp.lt.s32.totalorder %s36, 1
        %s3706 = scalar_select %p3705, %s36, 1
        %s3707 = smul.addr %s3706, 4
        %s3708 = scalar_lea.vmem %s17, %s3707
        // Predicated region
        $region133: #{tpu_custom_call.1} parent=87 // pred_check
          %p3709 = pneg %p416
        $region134: #{tpu_custom_call.1} parent=87 // pred_check_branch
          %3711 = sbr.rel (%p3709) target = $region136
        $region135: #{tpu_custom_call.1} parent=87 // pred_region
          _
        $region136: #{tpu_custom_call.1} parent=87 // pred_fallthru
          _
      $region88: #{tpu_custom_call.1} parent=5 // pred_fallthru
        _
      %p3712 = scmp.le.s32.totalorder 2, %s31
      // Predicated region
      $region137: #{tpu_custom_call.1} parent=5 // pred_check
        %p3713 = pneg %p3712
      $region138: #{tpu_custom_call.1} parent=5 // pred_check_branch
        %3715 = sbr.rel (%p3713) target = $region140
      $region139: #{tpu_custom_call.1} parent=5 // pred_region
        %s3716 = ssub.s32 %s31, 2
        // Predicated region
        $region141: #{tpu_custom_call.1} parent=139 // pred_check
          %p3717 = pneg %p422
        $region142: #{tpu_custom_call.1} parent=139 // pred_check_branch
          %3719 = sbr.rel (%p3717) target = $region144
        $region143: #{tpu_custom_call.1} parent=139 // pred_region
          %p3720 = scmp.lt.s32.totalorder %s37, 1
          %s3721 = scalar_select %p3720, %s37, 1
          %s3722 = smul.addr %s3721, 4
          %s3723 = scalar_lea.vmem %s17, %s3722
        $region144: #{tpu_custom_call.1} parent=139 // pred_fallthru
          _
      $region140: #{tpu_custom_call.1} parent=5 // pred_fallthru
        _
    $region6: #{tpu_custom_call.1} parent=1 // loop_footer
      %s35 = sadd.s32 1, %s31
    $region7: #{tpu_custom_call.1} parent=1 // loop_footer_branch
      %30 = sbr.rel target = $region3
    $region8: #{tpu_custom_call.1} parent=1 // loop_exit
      _
    %3724 = vsyncpa [#allocation3], 1
    %s3725 = scalar_lea.sflag [#allocation3], 1
    %3726 = vsyncpa %s3725, 1
    %3727 = vsyncpa [#allocation5], 1
    %3728 = vsyncpa [#allocation8], 1
    %3729 = vsyncpa [#allocation11], 1
    %3730 = vsyncpa [#allocation14], 1
    %3731 = vsyncpa [#allocation17], 1

</llo_original>
